<compile_context>
chip_gen: v7x
topology: tpu7x:2x2x1
jax: 0.10.0
libtpu: 0.0.40
codegen_flags: <defaults>
</compile_context>

<pallas_src>
import functools

import jax
import jax.numpy as jnp
from jax.experimental import pallas as pl
from jax.experimental.pallas import tpu as pltpu


def _round_up(x, m):
    return ((x + m - 1) // m) * m


# ----------------------------------------------------------------------------
# Pallas kernel: whole forward pass in a single invocation.
# ----------------------------------------------------------------------------
def gru_lm_kernel(
    idx_ref,      # (T*Bp, 1) int32   token ids, time-major, batch-padded
    gitab_ref,    # (Vr, 3*Hp) f32    fused embedding->gate lookup table [r|z|n]
    h0_ref,       # (Bp, Hp)   f32    initial hidden (zero-padded)
    wh_ref,       # (Hp, 3*Hp) f32    fused hidden->gate weights [r|z|n]
    bhn_ref,      # (1, Hp)    f32    hidden bias of the n gate (cannot fold)
    wfc_ref,      # (Hp, Vp)   f32    vocab projection (padded)
    bfc_ref,      # (1, Vp)    f32
    logits_ref,   # out: (Bp, T*Vp) f32  batch-major logits, step t at lanes [t*Vp, (t+1)*Vp)
    hout_ref,     # out: (Bp, Hp)   f32  final hidden
    gi_scratch,   # VMEM (T*Bp, 3*Hp) f32
    *, T, Bp, Hp, Vp, Vr,
):
    f32 = jnp.float32
    TBp = T * Bp

    # ---- Phase 1: fused embedding-gather + input projection for ALL steps --
    # One-hot matmul gather (exact): rows of gi_table already hold
    # emb @ [W_ir|W_iz|W_in] + (b_ir+b_hr | b_iz+b_hz | b_in).
    onehot = (idx_ref[...] ==
              jax.lax.broadcasted_iota(jnp.int32, (TBp, Vr), 1)).astype(f32)
    gi_scratch[...] = jnp.dot(onehot, gitab_ref[...],
                              preferred_element_type=f32)

    # Hoisted broadcasts (JAX does not CSE broadcast_in_dim across the unroll).
    bhn = jnp.broadcast_to(bhn_ref[...], (Bp, Hp))
    bfc = jnp.broadcast_to(bfc_ref[...], (Bp, Vp))

    # ---- Phase 2 + interleaved Phase 3: GRU recurrence + vocab projection --
    # T is small and static -> statically unrolled; all slices are static and
    # every gate lives at a 128-lane-aligned offset (0, Hp, 2*Hp).
    h = h0_ref[...]                                            # (Bp, Hp) f32
    for t in range(T):
        row = t * Bp
        gi = gi_scratch[pl.ds(row, Bp), :]                     # (Bp, 3Hp)
        gh = jnp.dot(h, wh_ref[...], preferred_element_type=f32)   # (Bp, 3Hp)
        r = jax.nn.sigmoid(gi[:, 0:Hp] + gh[:, 0:Hp])
        z = jax.nn.sigmoid(gi[:, Hp:2 * Hp] + gh[:, Hp:2 * Hp])
        n = jnp.tanh(gi[:, 2 * Hp:3 * Hp] + r * (gh[:, 2 * Hp:3 * Hp] + bhn))
        h = (1.0 - z) * n + z * h

        # Interleaved vocab projection: depends only on this step's h, so the
        # scheduler can overlap it with the next step's recurrence matmul.
        # Dense (Bp, Vp) store at a 128-aligned lane offset -> unmasked vst.
        logits_ref[:, pl.ds(t * Vp, Vp)] = (
            jnp.dot(h, wfc_ref[...], preferred_element_type=f32) + bfc)

    hout_ref[...] = h


# ----------------------------------------------------------------------------
# One-time parameter preparation: fuse gates, lane-align to Hp=128, fold the
# embedding into the input-projection lookup table, pad vocab to Vp.
# ----------------------------------------------------------------------------
def prepare_params(params):
    f32 = jnp.float32
    V, E = params["embedding"].shape
    H = params["w_hr"].shape[0]
    Hp = _round_up(H, 128)        # each gate gets its own lane-aligned block
    Vp = _round_up(V, 128)        # logits lane padding
    Vr = _round_up(V, 128)        # one-hot contraction rows

    pad_w = lambda w: jnp.pad(w.astype(f32), ((0, 0), (0, Hp - H)))   # (in,H)->(in,Hp)
    pad_b = lambda b: jnp.pad(b.astype(f32), ((0, 0), (0, Hp - H)))   # (1,H)->(1,Hp)
    pad_hh = lambda w: jnp.pad(w.astype(f32), ((0, Hp - H), (0, Hp - H)))

    # Fused input->gate weights / biases, [r | z | n], each gate Hp lanes wide.
    wi = jnp.concatenate([pad_w(params["w_ir"]),
                          pad_w(params["w_iz"]),
                          pad_w(params["w_in"])], axis=1)             # (E, 3Hp)
    # Fold b_hr / b_hz here (b_hn must stay inside r*(...) for correctness).
    bi = jnp.concatenate([pad_b(params["b_ir"] + params["b_hr"]),
                          pad_b(params["b_iz"] + params["b_hz"]),
                          pad_b(params["b_in"])], axis=1)             # (1, 3Hp)

    # Embedding folded into the input projection: per-token gate lookup table.
    emb = params["embedding"].astype(f32)                              # (V, E)
    gi_table = jnp.zeros((Vr, 3 * Hp), f32).at[:V, :].set(emb @ wi + bi)

    # Fused hidden->gate weights, padded both ways so padded h lanes stay 0.
    wh = jnp.concatenate([pad_hh(params["w_hr"]),
                          pad_hh(params["w_hz"]),
                          pad_hh(params["w_hn"])], axis=1)            # (Hp, 3Hp)
    bhn = pad_b(params["b_hn"])                                        # (1, Hp)

    wfc = jnp.pad(params["w_fc"].astype(f32), ((0, Hp - H), (0, Vp - V)))  # (Hp, Vp)
    bfc = jnp.pad(params["b_fc"].astype(f32), ((0, 0), (0, Vp - V)))       # (1, Vp)

    return {"gi_table": gi_table, "wh": wh, "bhn": bhn,
            "wfc": wfc, "bfc": bfc,
            "vocab_size": V, "hidden_dim": H, "emb_dim": E}


# ----------------------------------------------------------------------------
# Wrapper: only tiny int32 index glue + padding, then one pallas_call.
# ----------------------------------------------------------------------------
def rnn_lm_forward(prep, input_seq, hidden_state):
    """input_seq: (B, T) int32, hidden_state: (1, B, H) f32.
    Returns (logits (B, T, V) f32, hidden_state (1, B, H) f32)."""
    B, T = input_seq.shape
    H = prep["hidden_dim"]
    V = prep["vocab_size"]
    Hp = prep["wh"].shape[0]
    Vp = prep["wfc"].shape[1]
    Vr = prep["gi_table"].shape[0]
    Bp = _round_up(B, 8)                       # sublane-pad the batch

    # Token ids, time-major, batch-padded (padded rows use token 0), (T*Bp, 1).
    idx_tm = jnp.transpose(input_seq.astype(jnp.int32), (1, 0))       # (T, B)
    idx_tm = jnp.pad(idx_tm, ((0, 0), (0, Bp - B)))                   # (T, Bp)
    idx2d = idx_tm.reshape(T * Bp, 1)

    # Initial hidden, padded to (Bp, Hp) with zeros.
    h0 = jnp.pad(hidden_state[0].astype(jnp.float32),
                 ((0, Bp - B), (0, Hp - H)))                          # (Bp, Hp)

    kernel = functools.partial(gru_lm_kernel, T=T, Bp=Bp, Hp=Hp, Vp=Vp, Vr=Vr)

    logits2d, h_out = pl.pallas_call(
        kernel,
        out_shape=(
            jax.ShapeDtypeStruct((Bp, T * Vp), jnp.float32),  # batch-major logits
            jax.ShapeDtypeStruct((Bp, Hp), jnp.float32),      # final hidden
        ),
        scratch_shapes=[
            pltpu.VMEM((T * Bp, 3 * Hp), jnp.float32),        # gi for all steps
        ],
    )(idx2d, prep["gi_table"], h0, prep["wh"], prep["bhn"],
      prep["wfc"], prep["bfc"])

    # Batch-major already -> free reshape + slice, NO transpose of the logits.
    logits = logits2d.reshape(Bp, T, Vp)[:B, :, :V]                   # (B, T, V)
    return logits, h_out[:B, :H][None]                                # (1, B, H)


# ----------------------------------------------------------------------------
# Pure-JAX reference (same math, lax.scan, unfused weights) for sanity check.
# ----------------------------------------------------------------------------
def rnn_lm_reference(params, input_seq, hidden_state):
    embedded = jnp.take(params["embedding"], input_seq, axis=0)  # (B, T, E)
    x_tm = jnp.transpose(embedded, (1, 0, 2))                    # (T, B, E)
    h = hidden_state[0]

    def step(h, x):
        r = jax.nn.sigmoid(x @ params["w_ir"] + params["b_ir"]
                           + h @ params["w_hr"] + params["b_hr"])
        z = jax.nn.sigmoid(x @ params["w_iz"] + params["b_iz"]
                           + h @ params["w_hz"] + params["b_hz"])
        n = jnp.tanh(x @ params["w_in"] + params["b_in"]
                     + r * (h @ params["w_hn"] + params["b_hn"]))
        h_new = (1.0 - z) * n + z * h
        logits = h_new @ params["w_fc"] + params["b_fc"]
        return h_new, logits

    h_final, logits_tm = jax.lax.scan(step, h, x_tm)
    return jnp.transpose(logits_tm, (1, 0, 2)), h_final[None]


# ----------------------------------------------------------------------------
# Deterministic parameter construction (shapes from the PyTorch __init__).
# ----------------------------------------------------------------------------
def init_params(key, vocab_size, emb_dim, hidden_dim):
    ks = jax.random.split(key, 16)
    s_in = 1.0 / jnp.sqrt(hidden_dim)
    u = lambda k, shape: jax.random.uniform(
        k, shape, jnp.float32, minval=-s_in, maxval=s_in)
    return {
        "embedding": jax.random.normal(ks[0], (vocab_size, emb_dim), jnp.float32),
        # GRU input->hidden (stored transposed vs. PyTorch: (E, H))
        "w_ir": u(ks[1], (emb_dim, hidden_dim)),
        "w_iz": u(ks[2], (emb_dim, hidden_dim)),
        "w_in": u(ks[3], (emb_dim, hidden_dim)),
        # GRU hidden->hidden (H, H)
        "w_hr": u(ks[4], (hidden_dim, hidden_dim)),
        "w_hz": u(ks[5], (hidden_dim, hidden_dim)),
        "w_hn": u(ks[6], (hidden_dim, hidden_dim)),
        # GRU biases (1, H)
        "b_ir": u(ks[7], (1, hidden_dim)),
        "b_iz": u(ks[8], (1, hidden_dim)),
        "b_in": u(ks[9], (1, hidden_dim)),
        "b_hr": u(ks[10], (1, hidden_dim)),
        "b_hz": u(ks[11], (1, hidden_dim)),
        "b_hn": u(ks[12], (1, hidden_dim)),
        # Linear head (H, V), (1, V)
        "w_fc": u(ks[13], (hidden_dim, vocab_size)),
        "b_fc": u(ks[14], (1, vocab_size)),
    }


if __name__ == "__main__":
    # Small shapes consistent with the module: vocab of 27 chars,
    # emb_dim=16, hidden_dim=32, batch=2, seq=8.
    VOCAB, EMB, HID = 27, 16, 32
    B, T = 2, 8

    key = jax.random.PRNGKey(0)
    pkey, dkey = jax.random.split(key)
    params = init_params(pkey, VOCAB, EMB, HID)
    prep = prepare_params(params)   # fuse gates + fold embedding + pad, once

    input_seq = jax.random.randint(dkey, (B, T), 0, VOCAB, dtype=jnp.int32)
    hidden_state = jnp.zeros((1, B, HID), jnp.float32)  # init_hidden(batch)

    fwd = jax.jit(functools.partial(rnn_lm_forward, prep))
    logits, h_out = fwd(input_seq, hidden_state)
    jax.block_until_ready((logits, h_out))

    # Sanity check against the pure-JAX reference (unfused weights).
    ref_logits, ref_h = rnn_lm_reference(params, input_seq, hidden_state)
    assert logits.shape == (B, T, VOCAB) and h_out.shape == (1, B, HID)
    assert jnp.allclose(logits, ref_logits, atol=1e-3, rtol=1e-3)
    assert jnp.allclose(h_out, ref_h, atol=1e-3, rtol=1e-3)

    print("KERNEL_OK")
</pallas_src>

<mosaic_0001>
module attributes {stable_mosaic.version = 11 : i64} {
  func.func @gru_lm_kernel(%arg0: memref<64x1xi32, #tpu.memory_space<vmem>>, %arg1: memref<128x384xf32, #tpu.memory_space<vmem>>, %arg2: memref<8x128xf32, #tpu.memory_space<vmem>>, %arg3: memref<128x384xf32, #tpu.memory_space<vmem>>, %arg4: memref<1x128xf32, #tpu.memory_space<vmem>>, %arg5: memref<128x128xf32, #tpu.memory_space<vmem>>, %arg6: memref<1x128xf32, #tpu.memory_space<vmem>>, %arg7: memref<8x1024xf32, #tpu.memory_space<vmem>>, %arg8: memref<8x128xf32, #tpu.memory_space<vmem>>, %arg9: memref<64x384xf32, #tpu.memory_space<vmem>>) attributes {dimension_semantics = [], scalar_prefetch = 0 : i64, scratch_operands = 1 : i64, tpu.core_type = #tpu.core_type<tc>} {
    %c0 = arith.constant 0 : index
    %c0_0 = arith.constant 0 : index
    %0 = vector.load %arg0[%c0, %c0_0] : memref<64x1xi32, #tpu.memory_space<vmem>>, vector<64x1xi32>
    %1 = tpu.iota {dimensions = array<i32: 1>} : vector<64x128xi32>
    %2 = vector.broadcast %0 : vector<64x1xi32> to vector<64x128xi32>
    %3 = arith.cmpi eq, %2, %1 : vector<64x128xi32>
    %4 = arith.extui %3 : vector<64x128xi1> to vector<64x128xi32>
    %5 = arith.sitofp %4 : vector<64x128xi32> to vector<64x128xf32>
    %c0_1 = arith.constant 0 : index
    %c0_2 = arith.constant 0 : index
    %6 = vector.load %arg1[%c0_1, %c0_2] : memref<128x384xf32, #tpu.memory_space<vmem>>, vector<128x384xf32>
    %cst = arith.constant dense<0.000000e+00> : vector<64x384xf32>
    %7 = tpu.matmul %5, %6, %cst {dimension_numbers = #tpu.dot_dimension_numbers<[1], [0], [0], [1], [0, 0, 1, 1], [], []>} : vector<64x128xf32>, vector<128x384xf32>, vector<64x384xf32> -> vector<64x384xf32>
    %c0_3 = arith.constant 0 : index
    %c0_4 = arith.constant 0 : index
    %8 = vector.load %arg9[%c0_3, %c0_4] : memref<64x384xf32, #tpu.memory_space<vmem>>, vector<64x384xf32>
    tpu.vector_store %arg9[%c0_3, %c0_4], %7 {strides = array<i32>} : memref<64x384xf32, #tpu.memory_space<vmem>>, vector<64x384xf32>,
    %c0_5 = arith.constant 0 : index
    %c0_6 = arith.constant 0 : index
    %9 = vector.load %arg4[%c0_5, %c0_6] : memref<1x128xf32, #tpu.memory_space<vmem>>, vector<1x128xf32>
    %10 = vector.shape_cast %9 : vector<1x128xf32> to vector<1x128xf32>
    %11 = vector.broadcast %10 : vector<1x128xf32> to vector<8x128xf32>
    %c0_7 = arith.constant 0 : index
    %c0_8 = arith.constant 0 : index
    %12 = vector.load %arg6[%c0_7, %c0_8] : memref<1x128xf32, #tpu.memory_space<vmem>>, vector<1x128xf32>
    %13 = vector.shape_cast %12 : vector<1x128xf32> to vector<1x128xf32>
    %14 = vector.broadcast %13 : vector<1x128xf32> to vector<8x128xf32>
    %c0_9 = arith.constant 0 : index
    %c0_10 = arith.constant 0 : index
    %15 = vector.load %arg2[%c0_9, %c0_10] : memref<8x128xf32, #tpu.memory_space<vmem>>, vector<8x128xf32>
    %c0_11 = arith.constant 0 : index
    %c0_12 = arith.constant 0 : index
    %16 = vector.load %arg9[%c0_11, %c0_12] : memref<64x384xf32, #tpu.memory_space<vmem>>, vector<8x384xf32>
    %c0_13 = arith.constant 0 : index
    %c0_14 = arith.constant 0 : index
    %17 = vector.load %arg3[%c0_13, %c0_14] : memref<128x384xf32, #tpu.memory_space<vmem>>, vector<128x384xf32>
    %cst_15 = arith.constant dense<0.000000e+00> : vector<8x384xf32>
    %18 = tpu.matmul %15, %17, %cst_15 {dimension_numbers = #tpu.dot_dimension_numbers<[1], [0], [0], [1], [0, 0, 1, 1], [], []>} : vector<8x128xf32>, vector<128x384xf32>, vector<8x384xf32> -> vector<8x384xf32>
    %19 = vector.extract_strided_slice %16 {offsets = [0, 0], sizes = [8, 128], strides = [1, 1]} : vector<8x384xf32> to vector<8x128xf32>
    %20 = vector.extract_strided_slice %18 {offsets = [0, 0], sizes = [8, 128], strides = [1, 1]} : vector<8x384xf32> to vector<8x128xf32>
    %21 = arith.addf %19, %20 : vector<8x128xf32>
    %22 = arith.negf %21 : vector<8x128xf32>
    %23 = math.exp %22 : vector<8x128xf32>
    %cst_16 = arith.constant 1.000000e+00 : f32
    %24 = vector.broadcast %cst_16 : f32 to vector<8x128xf32>
    %25 = arith.addf %24, %23 : vector<8x128xf32>
    %26 = arith.divf %24, %25 : vector<8x128xf32>
    %27 = vector.extract_strided_slice %16 {offsets = [0, 128], sizes = [8, 128], strides = [1, 1]} : vector<8x384xf32> to vector<8x128xf32>
    %28 = vector.extract_strided_slice %18 {offsets = [0, 128], sizes = [8, 128], strides = [1, 1]} : vector<8x384xf32> to vector<8x128xf32>
    %29 = arith.addf %27, %28 : vector<8x128xf32>
    %30 = arith.negf %29 : vector<8x128xf32>
    %31 = math.exp %30 : vector<8x128xf32>
    %cst_17 = arith.constant 1.000000e+00 : f32
    %32 = vector.broadcast %cst_17 : f32 to vector<8x128xf32>
    %33 = arith.addf %32, %31 : vector<8x128xf32>
    %34 = arith.divf %32, %33 : vector<8x128xf32>
    %35 = vector.extract_strided_slice %16 {offsets = [0, 256], sizes = [8, 128], strides = [1, 1]} : vector<8x384xf32> to vector<8x128xf32>
    %36 = vector.extract_strided_slice %18 {offsets = [0, 256], sizes = [8, 128], strides = [1, 1]} : vector<8x384xf32> to vector<8x128xf32>
    %37 = arith.addf %36, %11 : vector<8x128xf32>
    %38 = arith.mulf %26, %37 : vector<8x128xf32>
    %39 = arith.addf %35, %38 : vector<8x128xf32>
    %40 = math.tanh %39 : vector<8x128xf32>
    %cst_18 = arith.constant 1.000000e+00 : f32
    %41 = vector.broadcast %cst_18 : f32 to vector<8x128xf32>
    %42 = arith.subf %41, %34 : vector<8x128xf32>
    %43 = arith.mulf %42, %40 : vector<8x128xf32>
    %44 = arith.mulf %34, %15 : vector<8x128xf32>
    %45 = arith.addf %43, %44 : vector<8x128xf32>
    %c0_19 = arith.constant 0 : index
    %c0_20 = arith.constant 0 : index
    %46 = vector.load %arg5[%c0_19, %c0_20] : memref<128x128xf32, #tpu.memory_space<vmem>>, vector<128x128xf32>
    %cst_21 = arith.constant dense<0.000000e+00> : vector<8x128xf32>
    %47 = tpu.matmul %45, %46, %cst_21 {dimension_numbers = #tpu.dot_dimension_numbers<[1], [0], [0], [1], [0, 0, 1, 1], [], []>} : vector<8x128xf32>, vector<128x128xf32>, vector<8x128xf32> -> vector<8x128xf32>
    %48 = arith.addf %47, %14 : vector<8x128xf32>
    %c0_22 = arith.constant 0 : index
    %c0_23 = arith.constant 0 : index
    %49 = vector.load %arg7[%c0_22, %c0_23] : memref<8x1024xf32, #tpu.memory_space<vmem>>, vector<8x128xf32>
    tpu.vector_store %arg7[%c0_22, %c0_23], %48 {strides = array<i32>} : memref<8x1024xf32, #tpu.memory_space<vmem>>, vector<8x128xf32>,
    %c8 = arith.constant 8 : index
    %c0_24 = arith.constant 0 : index
    %50 = vector.load %arg9[%c8, %c0_24] : memref<64x384xf32, #tpu.memory_space<vmem>>, vector<8x384xf32>
    %c0_25 = arith.constant 0 : index
    %c0_26 = arith.constant 0 : index
    %51 = vector.load %arg3[%c0_25, %c0_26] : memref<128x384xf32, #tpu.memory_space<vmem>>, vector<128x384xf32>
    %cst_27 = arith.constant dense<0.000000e+00> : vector<8x384xf32>
    %52 = tpu.matmul %45, %51, %cst_27 {dimension_numbers = #tpu.dot_dimension_numbers<[1], [0], [0], [1], [0, 0, 1, 1], [], []>} : vector<8x128xf32>, vector<128x384xf32>, vector<8x384xf32> -> vector<8x384xf32>
    %53 = vector.extract_strided_slice %50 {offsets = [0, 0], sizes = [8, 128], strides = [1, 1]} : vector<8x384xf32> to vector<8x128xf32>
    %54 = vector.extract_strided_slice %52 {offsets = [0, 0], sizes = [8, 128], strides = [1, 1]} : vector<8x384xf32> to vector<8x128xf32>
    %55 = arith.addf %53, %54 : vector<8x128xf32>
    %56 = arith.negf %55 : vector<8x128xf32>
    %57 = math.exp %56 : vector<8x128xf32>
    %cst_28 = arith.constant 1.000000e+00 : f32
    %58 = vector.broadcast %cst_28 : f32 to vector<8x128xf32>
    %59 = arith.addf %58, %57 : vector<8x128xf32>
    %60 = arith.divf %58, %59 : vector<8x128xf32>
    %61 = vector.extract_strided_slice %50 {offsets = [0, 128], sizes = [8, 128], strides = [1, 1]} : vector<8x384xf32> to vector<8x128xf32>
    %62 = vector.extract_strided_slice %52 {offsets = [0, 128], sizes = [8, 128], strides = [1, 1]} : vector<8x384xf32> to vector<8x128xf32>
    %63 = arith.addf %61, %62 : vector<8x128xf32>
    %64 = arith.negf %63 : vector<8x128xf32>
    %65 = math.exp %64 : vector<8x128xf32>
    %cst_29 = arith.constant 1.000000e+00 : f32
    %66 = vector.broadcast %cst_29 : f32 to vector<8x128xf32>
    %67 = arith.addf %66, %65 : vector<8x128xf32>
    %68 = arith.divf %66, %67 : vector<8x128xf32>
    %69 = vector.extract_strided_slice %50 {offsets = [0, 256], sizes = [8, 128], strides = [1, 1]} : vector<8x384xf32> to vector<8x128xf32>
    %70 = vector.extract_strided_slice %52 {offsets = [0, 256], sizes = [8, 128], strides = [1, 1]} : vector<8x384xf32> to vector<8x128xf32>
    %71 = arith.addf %70, %11 : vector<8x128xf32>
    %72 = arith.mulf %60, %71 : vector<8x128xf32>
    %73 = arith.addf %69, %72 : vector<8x128xf32>
    %74 = math.tanh %73 : vector<8x128xf32>
    %cst_30 = arith.constant 1.000000e+00 : f32
    %75 = vector.broadcast %cst_30 : f32 to vector<8x128xf32>
    %76 = arith.subf %75, %68 : vector<8x128xf32>
    %77 = arith.mulf %76, %74 : vector<8x128xf32>
    %78 = arith.mulf %68, %45 : vector<8x128xf32>
    %79 = arith.addf %77, %78 : vector<8x128xf32>
    %c0_31 = arith.constant 0 : index
    %c0_32 = arith.constant 0 : index
    %80 = vector.load %arg5[%c0_31, %c0_32] : memref<128x128xf32, #tpu.memory_space<vmem>>, vector<128x128xf32>
    %cst_33 = arith.constant dense<0.000000e+00> : vector<8x128xf32>
    %81 = tpu.matmul %79, %80, %cst_33 {dimension_numbers = #tpu.dot_dimension_numbers<[1], [0], [0], [1], [0, 0, 1, 1], [], []>} : vector<8x128xf32>, vector<128x128xf32>, vector<8x128xf32> -> vector<8x128xf32>
    %82 = arith.addf %81, %14 : vector<8x128xf32>
    %c0_34 = arith.constant 0 : index
    %c128 = arith.constant 128 : index
    %83 = vector.load %arg7[%c0_34, %c128] : memref<8x1024xf32, #tpu.memory_space<vmem>>, vector<8x128xf32>
    tpu.vector_store %arg7[%c0_34, %c128], %82 {strides = array<i32>} : memref<8x1024xf32, #tpu.memory_space<vmem>>, vector<8x128xf32>,
    %c16 = arith.constant 16 : index
    %c0_35 = arith.constant 0 : index
    %84 = vector.load %arg9[%c16, %c0_35] : memref<64x384xf32, #tpu.memory_space<vmem>>, vector<8x384xf32>
    %c0_36 = arith.constant 0 : index
    %c0_37 = arith.constant 0 : index
    %85 = vector.load %arg3[%c0_36, %c0_37] : memref<128x384xf32, #tpu.memory_space<vmem>>, vector<128x384xf32>
    %cst_38 = arith.constant dense<0.000000e+00> : vector<8x384xf32>
    %86 = tpu.matmul %79, %85, %cst_38 {dimension_numbers = #tpu.dot_dimension_numbers<[1], [0], [0], [1], [0, 0, 1, 1], [], []>} : vector<8x128xf32>, vector<128x384xf32>, vector<8x384xf32> -> vector<8x384xf32>
    %87 = vector.extract_strided_slice %84 {offsets = [0, 0], sizes = [8, 128], strides = [1, 1]} : vector<8x384xf32> to vector<8x128xf32>
    %88 = vector.extract_strided_slice %86 {offsets = [0, 0], sizes = [8, 128], strides = [1, 1]} : vector<8x384xf32> to vector<8x128xf32>
    %89 = arith.addf %87, %88 : vector<8x128xf32>
    %90 = arith.negf %89 : vector<8x128xf32>
    %91 = math.exp %90 : vector<8x128xf32>
    %cst_39 = arith.constant 1.000000e+00 : f32
    %92 = vector.broadcast %cst_39 : f32 to vector<8x128xf32>
    %93 = arith.addf %92, %91 : vector<8x128xf32>
    %94 = arith.divf %92, %93 : vector<8x128xf32>
    %95 = vector.extract_strided_slice %84 {offsets = [0, 128], sizes = [8, 128], strides = [1, 1]} : vector<8x384xf32> to vector<8x128xf32>
    %96 = vector.extract_strided_slice %86 {offsets = [0, 128], sizes = [8, 128], strides = [1, 1]} : vector<8x384xf32> to vector<8x128xf32>
    %97 = arith.addf %95, %96 : vector<8x128xf32>
    %98 = arith.negf %97 : vector<8x128xf32>
    %99 = math.exp %98 : vector<8x128xf32>
    %cst_40 = arith.constant 1.000000e+00 : f32
    %100 = vector.broadcast %cst_40 : f32 to vector<8x128xf32>
    %101 = arith.addf %100, %99 : vector<8x128xf32>
    %102 = arith.divf %100, %101 : vector<8x128xf32>
    %103 = vector.extract_strided_slice %84 {offsets = [0, 256], sizes = [8, 128], strides = [1, 1]} : vector<8x384xf32> to vector<8x128xf32>
    %104 = vector.extract_strided_slice %86 {offsets = [0, 256], sizes = [8, 128], strides = [1, 1]} : vector<8x384xf32> to vector<8x128xf32>
    %105 = arith.addf %104, %11 : vector<8x128xf32>
    %106 = arith.mulf %94, %105 : vector<8x128xf32>
    %107 = arith.addf %103, %106 : vector<8x128xf32>
    %108 = math.tanh %107 : vector<8x128xf32>
    %cst_41 = arith.constant 1.000000e+00 : f32
    %109 = vector.broadcast %cst_41 : f32 to vector<8x128xf32>
    %110 = arith.subf %109, %102 : vector<8x128xf32>
    %111 = arith.mulf %110, %108 : vector<8x128xf32>
    %112 = arith.mulf %102, %79 : vector<8x128xf32>
    %113 = arith.addf %111, %112 : vector<8x128xf32>
    %c0_42 = arith.constant 0 : index
    %c0_43 = arith.constant 0 : index
    %114 = vector.load %arg5[%c0_42, %c0_43] : memref<128x128xf32, #tpu.memory_space<vmem>>, vector<128x128xf32>
    %cst_44 = arith.constant dense<0.000000e+00> : vector<8x128xf32>
    %115 = tpu.matmul %113, %114, %cst_44 {dimension_numbers = #tpu.dot_dimension_numbers<[1], [0], [0], [1], [0, 0, 1, 1], [], []>} : vector<8x128xf32>, vector<128x128xf32>, vector<8x128xf32> -> vector<8x128xf32>
    %116 = arith.addf %115, %14 : vector<8x128xf32>
    %c0_45 = arith.constant 0 : index
    %c256 = arith.constant 256 : index
    %117 = vector.load %arg7[%c0_45, %c256] : memref<8x1024xf32, #tpu.memory_space<vmem>>, vector<8x128xf32>
    tpu.vector_store %arg7[%c0_45, %c256], %116 {strides = array<i32>} : memref<8x1024xf32, #tpu.memory_space<vmem>>, vector<8x128xf32>,
    %c24 = arith.constant 24 : index
    %c0_46 = arith.constant 0 : index
    %118 = vector.load %arg9[%c24, %c0_46] : memref<64x384xf32, #tpu.memory_space<vmem>>, vector<8x384xf32>
    %c0_47 = arith.constant 0 : index
    %c0_48 = arith.constant 0 : index
    %119 = vector.load %arg3[%c0_47, %c0_48] : memref<128x384xf32, #tpu.memory_space<vmem>>, vector<128x384xf32>
    %cst_49 = arith.constant dense<0.000000e+00> : vector<8x384xf32>
    %120 = tpu.matmul %113, %119, %cst_49 {dimension_numbers = #tpu.dot_dimension_numbers<[1], [0], [0], [1], [0, 0, 1, 1], [], []>} : vector<8x128xf32>, vector<128x384xf32>, vector<8x384xf32> -> vector<8x384xf32>
    %121 = vector.extract_strided_slice %118 {offsets = [0, 0], sizes = [8, 128], strides = [1, 1]} : vector<8x384xf32> to vector<8x128xf32>
    %122 = vector.extract_strided_slice %120 {offsets = [0, 0], sizes = [8, 128], strides = [1, 1]} : vector<8x384xf32> to vector<8x128xf32>
    %123 = arith.addf %121, %122 : vector<8x128xf32>
    %124 = arith.negf %123 : vector<8x128xf32>
    %125 = math.exp %124 : vector<8x128xf32>
    %cst_50 = arith.constant 1.000000e+00 : f32
    %126 = vector.broadcast %cst_50 : f32 to vector<8x128xf32>
    %127 = arith.addf %126, %125 : vector<8x128xf32>
    %128 = arith.divf %126, %127 : vector<8x128xf32>
    %129 = vector.extract_strided_slice %118 {offsets = [0, 128], sizes = [8, 128], strides = [1, 1]} : vector<8x384xf32> to vector<8x128xf32>
    %130 = vector.extract_strided_slice %120 {offsets = [0, 128], sizes = [8, 128], strides = [1, 1]} : vector<8x384xf32> to vector<8x128xf32>
    %131 = arith.addf %129, %130 : vector<8x128xf32>
    %132 = arith.negf %131 : vector<8x128xf32>
    %133 = math.exp %132 : vector<8x128xf32>
    %cst_51 = arith.constant 1.000000e+00 : f32
    %134 = vector.broadcast %cst_51 : f32 to vector<8x128xf32>
    %135 = arith.addf %134, %133 : vector<8x128xf32>
    %136 = arith.divf %134, %135 : vector<8x128xf32>
    %137 = vector.extract_strided_slice %118 {offsets = [0, 256], sizes = [8, 128], strides = [1, 1]} : vector<8x384xf32> to vector<8x128xf32>
    %138 = vector.extract_strided_slice %120 {offsets = [0, 256], sizes = [8, 128], strides = [1, 1]} : vector<8x384xf32> to vector<8x128xf32>
    %139 = arith.addf %138, %11 : vector<8x128xf32>
    %140 = arith.mulf %128, %139 : vector<8x128xf32>
    %141 = arith.addf %137, %140 : vector<8x128xf32>
    %142 = math.tanh %141 : vector<8x128xf32>
    %cst_52 = arith.constant 1.000000e+00 : f32
    %143 = vector.broadcast %cst_52 : f32 to vector<8x128xf32>
    %144 = arith.subf %143, %136 : vector<8x128xf32>
    %145 = arith.mulf %144, %142 : vector<8x128xf32>
    %146 = arith.mulf %136, %113 : vector<8x128xf32>
    %147 = arith.addf %145, %146 : vector<8x128xf32>
    %c0_53 = arith.constant 0 : index
    %c0_54 = arith.constant 0 : index
    %148 = vector.load %arg5[%c0_53, %c0_54] : memref<128x128xf32, #tpu.memory_space<vmem>>, vector<128x128xf32>
    %cst_55 = arith.constant dense<0.000000e+00> : vector<8x128xf32>
    %149 = tpu.matmul %147, %148, %cst_55 {dimension_numbers = #tpu.dot_dimension_numbers<[1], [0], [0], [1], [0, 0, 1, 1], [], []>} : vector<8x128xf32>, vector<128x128xf32>, vector<8x128xf32> -> vector<8x128xf32>
    %150 = arith.addf %149, %14 : vector<8x128xf32>
    %c0_56 = arith.constant 0 : index
    %c384 = arith.constant 384 : index
    %151 = vector.load %arg7[%c0_56, %c384] : memref<8x1024xf32, #tpu.memory_space<vmem>>, vector<8x128xf32>
    tpu.vector_store %arg7[%c0_56, %c384], %150 {strides = array<i32>} : memref<8x1024xf32, #tpu.memory_space<vmem>>, vector<8x128xf32>,
    %c32 = arith.constant 32 : index
    %c0_57 = arith.constant 0 : index
    %152 = vector.load %arg9[%c32, %c0_57] : memref<64x384xf32, #tpu.memory_space<vmem>>, vector<8x384xf32>
    %c0_58 = arith.constant 0 : index
    %c0_59 = arith.constant 0 : index
    %153 = vector.load %arg3[%c0_58, %c0_59] : memref<128x384xf32, #tpu.memory_space<vmem>>, vector<128x384xf32>
    %cst_60 = arith.constant dense<0.000000e+00> : vector<8x384xf32>
    %154 = tpu.matmul %147, %153, %cst_60 {dimension_numbers = #tpu.dot_dimension_numbers<[1], [0], [0], [1], [0, 0, 1, 1], [], []>} : vector<8x128xf32>, vector<128x384xf32>, vector<8x384xf32> -> vector<8x384xf32>
    %155 = vector.extract_strided_slice %152 {offsets = [0, 0], sizes = [8, 128], strides = [1, 1]} : vector<8x384xf32> to vector<8x128xf32>
    %156 = vector.extract_strided_slice %154 {offsets = [0, 0], sizes = [8, 128], strides = [1, 1]} : vector<8x384xf32> to vector<8x128xf32>
    %157 = arith.addf %155, %156 : vector<8x128xf32>
    %158 = arith.negf %157 : vector<8x128xf32>
    %159 = math.exp %158 : vector<8x128xf32>
    %cst_61 = arith.constant 1.000000e+00 : f32
    %160 = vector.broadcast %cst_61 : f32 to vector<8x128xf32>
    %161 = arith.addf %160, %159 : vector<8x128xf32>
    %162 = arith.divf %160, %161 : vector<8x128xf32>
    %163 = vector.extract_strided_slice %152 {offsets = [0, 128], sizes = [8, 128], strides = [1, 1]} : vector<8x384xf32> to vector<8x128xf32>
    %164 = vector.extract_strided_slice %154 {offsets = [0, 128], sizes = [8, 128], strides = [1, 1]} : vector<8x384xf32> to vector<8x128xf32>
    %165 = arith.addf %163, %164 : vector<8x128xf32>
    %166 = arith.negf %165 : vector<8x128xf32>
    %167 = math.exp %166 : vector<8x128xf32>
    %cst_62 = arith.constant 1.000000e+00 : f32
    %168 = vector.broadcast %cst_62 : f32 to vector<8x128xf32>
    %169 = arith.addf %168, %167 : vector<8x128xf32>
    %170 = arith.divf %168, %169 : vector<8x128xf32>
    %171 = vector.extract_strided_slice %152 {offsets = [0, 256], sizes = [8, 128], strides = [1, 1]} : vector<8x384xf32> to vector<8x128xf32>
    %172 = vector.extract_strided_slice %154 {offsets = [0, 256], sizes = [8, 128], strides = [1, 1]} : vector<8x384xf32> to vector<8x128xf32>
    %173 = arith.addf %172, %11 : vector<8x128xf32>
    %174 = arith.mulf %162, %173 : vector<8x128xf32>
    %175 = arith.addf %171, %174 : vector<8x128xf32>
    %176 = math.tanh %175 : vector<8x128xf32>
    %cst_63 = arith.constant 1.000000e+00 : f32
    %177 = vector.broadcast %cst_63 : f32 to vector<8x128xf32>
    %178 = arith.subf %177, %170 : vector<8x128xf32>
    %179 = arith.mulf %178, %176 : vector<8x128xf32>
    %180 = arith.mulf %170, %147 : vector<8x128xf32>
    %181 = arith.addf %179, %180 : vector<8x128xf32>
    %c0_64 = arith.constant 0 : index
    %c0_65 = arith.constant 0 : index
    %182 = vector.load %arg5[%c0_64, %c0_65] : memref<128x128xf32, #tpu.memory_space<vmem>>, vector<128x128xf32>
    %cst_66 = arith.constant dense<0.000000e+00> : vector<8x128xf32>
    %183 = tpu.matmul %181, %182, %cst_66 {dimension_numbers = #tpu.dot_dimension_numbers<[1], [0], [0], [1], [0, 0, 1, 1], [], []>} : vector<8x128xf32>, vector<128x128xf32>, vector<8x128xf32> -> vector<8x128xf32>
    %184 = arith.addf %183, %14 : vector<8x128xf32>
    %c0_67 = arith.constant 0 : index
    %c512 = arith.constant 512 : index
    %185 = vector.load %arg7[%c0_67, %c512] : memref<8x1024xf32, #tpu.memory_space<vmem>>, vector<8x128xf32>
    tpu.vector_store %arg7[%c0_67, %c512], %184 {strides = array<i32>} : memref<8x1024xf32, #tpu.memory_space<vmem>>, vector<8x128xf32>,
    %c40 = arith.constant 40 : index
    %c0_68 = arith.constant 0 : index
    %186 = vector.load %arg9[%c40, %c0_68] : memref<64x384xf32, #tpu.memory_space<vmem>>, vector<8x384xf32>
    %c0_69 = arith.constant 0 : index
    %c0_70 = arith.constant 0 : index
    %187 = vector.load %arg3[%c0_69, %c0_70] : memref<128x384xf32, #tpu.memory_space<vmem>>, vector<128x384xf32>
    %cst_71 = arith.constant dense<0.000000e+00> : vector<8x384xf32>
    %188 = tpu.matmul %181, %187, %cst_71 {dimension_numbers = #tpu.dot_dimension_numbers<[1], [0], [0], [1], [0, 0, 1, 1], [], []>} : vector<8x128xf32>, vector<128x384xf32>, vector<8x384xf32> -> vector<8x384xf32>
    %189 = vector.extract_strided_slice %186 {offsets = [0, 0], sizes = [8, 128], strides = [1, 1]} : vector<8x384xf32> to vector<8x128xf32>
    %190 = vector.extract_strided_slice %188 {offsets = [0, 0], sizes = [8, 128], strides = [1, 1]} : vector<8x384xf32> to vector<8x128xf32>
    %191 = arith.addf %189, %190 : vector<8x128xf32>
    %192 = arith.negf %191 : vector<8x128xf32>
    %193 = math.exp %192 : vector<8x128xf32>
    %cst_72 = arith.constant 1.000000e+00 : f32
    %194 = vector.broadcast %cst_72 : f32 to vector<8x128xf32>
    %195 = arith.addf %194, %193 : vector<8x128xf32>
    %196 = arith.divf %194, %195 : vector<8x128xf32>
    %197 = vector.extract_strided_slice %186 {offsets = [0, 128], sizes = [8, 128], strides = [1, 1]} : vector<8x384xf32> to vector<8x128xf32>
    %198 = vector.extract_strided_slice %188 {offsets = [0, 128], sizes = [8, 128], strides = [1, 1]} : vector<8x384xf32> to vector<8x128xf32>
    %199 = arith.addf %197, %198 : vector<8x128xf32>
    %200 = arith.negf %199 : vector<8x128xf32>
    %201 = math.exp %200 : vector<8x128xf32>
    %cst_73 = arith.constant 1.000000e+00 : f32
    %202 = vector.broadcast %cst_73 : f32 to vector<8x128xf32>
    %203 = arith.addf %202, %201 : vector<8x128xf32>
    %204 = arith.divf %202, %203 : vector<8x128xf32>
    %205 = vector.extract_strided_slice %186 {offsets = [0, 256], sizes = [8, 128], strides = [1, 1]} : vector<8x384xf32> to vector<8x128xf32>
    %206 = vector.extract_strided_slice %188 {offsets = [0, 256], sizes = [8, 128], strides = [1, 1]} : vector<8x384xf32> to vector<8x128xf32>
    %207 = arith.addf %206, %11 : vector<8x128xf32>
    %208 = arith.mulf %196, %207 : vector<8x128xf32>
    %209 = arith.addf %205, %208 : vector<8x128xf32>
    %210 = math.tanh %209 : vector<8x128xf32>
    %cst_74 = arith.constant 1.000000e+00 : f32
    %211 = vector.broadcast %cst_74 : f32 to vector<8x128xf32>
    %212 = arith.subf %211, %204 : vector<8x128xf32>
    %213 = arith.mulf %212, %210 : vector<8x128xf32>
    %214 = arith.mulf %204, %181 : vector<8x128xf32>
    %215 = arith.addf %213, %214 : vector<8x128xf32>
    %c0_75 = arith.constant 0 : index
    %c0_76 = arith.constant 0 : index
    %216 = vector.load %arg5[%c0_75, %c0_76] : memref<128x128xf32, #tpu.memory_space<vmem>>, vector<128x128xf32>
    %cst_77 = arith.constant dense<0.000000e+00> : vector<8x128xf32>
    %217 = tpu.matmul %215, %216, %cst_77 {dimension_numbers = #tpu.dot_dimension_numbers<[1], [0], [0], [1], [0, 0, 1, 1], [], []>} : vector<8x128xf32>, vector<128x128xf32>, vector<8x128xf32> -> vector<8x128xf32>
    %218 = arith.addf %217, %14 : vector<8x128xf32>
    %c0_78 = arith.constant 0 : index
    %c640 = arith.constant 640 : index
    %219 = vector.load %arg7[%c0_78, %c640] : memref<8x1024xf32, #tpu.memory_space<vmem>>, vector<8x128xf32>
    tpu.vector_store %arg7[%c0_78, %c640], %218 {strides = array<i32>} : memref<8x1024xf32, #tpu.memory_space<vmem>>, vector<8x128xf32>,
    %c48 = arith.constant 48 : index
    %c0_79 = arith.constant 0 : index
    %220 = vector.load %arg9[%c48, %c0_79] : memref<64x384xf32, #tpu.memory_space<vmem>>, vector<8x384xf32>
    %c0_80 = arith.constant 0 : index
    %c0_81 = arith.constant 0 : index
    %221 = vector.load %arg3[%c0_80, %c0_81] : memref<128x384xf32, #tpu.memory_space<vmem>>, vector<128x384xf32>
    %cst_82 = arith.constant dense<0.000000e+00> : vector<8x384xf32>
    %222 = tpu.matmul %215, %221, %cst_82 {dimension_numbers = #tpu.dot_dimension_numbers<[1], [0], [0], [1], [0, 0, 1, 1], [], []>} : vector<8x128xf32>, vector<128x384xf32>, vector<8x384xf32> -> vector<8x384xf32>
    %223 = vector.extract_strided_slice %220 {offsets = [0, 0], sizes = [8, 128], strides = [1, 1]} : vector<8x384xf32> to vector<8x128xf32>
    %224 = vector.extract_strided_slice %222 {offsets = [0, 0], sizes = [8, 128], strides = [1, 1]} : vector<8x384xf32> to vector<8x128xf32>
    %225 = arith.addf %223, %224 : vector<8x128xf32>
    %226 = arith.negf %225 : vector<8x128xf32>
    %227 = math.exp %226 : vector<8x128xf32>
    %cst_83 = arith.constant 1.000000e+00 : f32
    %228 = vector.broadcast %cst_83 : f32 to vector<8x128xf32>
    %229 = arith.addf %228, %227 : vector<8x128xf32>
    %230 = arith.divf %228, %229 : vector<8x128xf32>
    %231 = vector.extract_strided_slice %220 {offsets = [0, 128], sizes = [8, 128], strides = [1, 1]} : vector<8x384xf32> to vector<8x128xf32>
    %232 = vector.extract_strided_slice %222 {offsets = [0, 128], sizes = [8, 128], strides = [1, 1]} : vector<8x384xf32> to vector<8x128xf32>
    %233 = arith.addf %231, %232 : vector<8x128xf32>
    %234 = arith.negf %233 : vector<8x128xf32>
    %235 = math.exp %234 : vector<8x128xf32>
    %cst_84 = arith.constant 1.000000e+00 : f32
    %236 = vector.broadcast %cst_84 : f32 to vector<8x128xf32>
    %237 = arith.addf %236, %235 : vector<8x128xf32>
    %238 = arith.divf %236, %237 : vector<8x128xf32>
    %239 = vector.extract_strided_slice %220 {offsets = [0, 256], sizes = [8, 128], strides = [1, 1]} : vector<8x384xf32> to vector<8x128xf32>
    %240 = vector.extract_strided_slice %222 {offsets = [0, 256], sizes = [8, 128], strides = [1, 1]} : vector<8x384xf32> to vector<8x128xf32>
    %241 = arith.addf %240, %11 : vector<8x128xf32>
    %242 = arith.mulf %230, %241 : vector<8x128xf32>
    %243 = arith.addf %239, %242 : vector<8x128xf32>
    %244 = math.tanh %243 : vector<8x128xf32>
    %cst_85 = arith.constant 1.000000e+00 : f32
    %245 = vector.broadcast %cst_85 : f32 to vector<8x128xf32>
    %246 = arith.subf %245, %238 : vector<8x128xf32>
    %247 = arith.mulf %246, %244 : vector<8x128xf32>
    %248 = arith.mulf %238, %215 : vector<8x128xf32>
    %249 = arith.addf %247, %248 : vector<8x128xf32>
    %c0_86 = arith.constant 0 : index
    %c0_87 = arith.constant 0 : index
    %250 = vector.load %arg5[%c0_86, %c0_87] : memref<128x128xf32, #tpu.memory_space<vmem>>, vector<128x128xf32>
    %cst_88 = arith.constant dense<0.000000e+00> : vector<8x128xf32>
    %251 = tpu.matmul %249, %250, %cst_88 {dimension_numbers = #tpu.dot_dimension_numbers<[1], [0], [0], [1], [0, 0, 1, 1], [], []>} : vector<8x128xf32>, vector<128x128xf32>, vector<8x128xf32> -> vector<8x128xf32>
    %252 = arith.addf %251, %14 : vector<8x128xf32>
    %c0_89 = arith.constant 0 : index
    %c768 = arith.constant 768 : index
    %253 = vector.load %arg7[%c0_89, %c768] : memref<8x1024xf32, #tpu.memory_space<vmem>>, vector<8x128xf32>
    tpu.vector_store %arg7[%c0_89, %c768], %252 {strides = array<i32>} : memref<8x1024xf32, #tpu.memory_space<vmem>>, vector<8x128xf32>,
    %c56 = arith.constant 56 : index
    %c0_90 = arith.constant 0 : index
    %254 = vector.load %arg9[%c56, %c0_90] : memref<64x384xf32, #tpu.memory_space<vmem>>, vector<8x384xf32>
    %c0_91 = arith.constant 0 : index
    %c0_92 = arith.constant 0 : index
    %255 = vector.load %arg3[%c0_91, %c0_92] : memref<128x384xf32, #tpu.memory_space<vmem>>, vector<128x384xf32>
    %cst_93 = arith.constant dense<0.000000e+00> : vector<8x384xf32>
    %256 = tpu.matmul %249, %255, %cst_93 {dimension_numbers = #tpu.dot_dimension_numbers<[1], [0], [0], [1], [0, 0, 1, 1], [], []>} : vector<8x128xf32>, vector<128x384xf32>, vector<8x384xf32> -> vector<8x384xf32>
    %257 = vector.extract_strided_slice %254 {offsets = [0, 0], sizes = [8, 128], strides = [1, 1]} : vector<8x384xf32> to vector<8x128xf32>
    %258 = vector.extract_strided_slice %256 {offsets = [0, 0], sizes = [8, 128], strides = [1, 1]} : vector<8x384xf32> to vector<8x128xf32>
    %259 = arith.addf %257, %258 : vector<8x128xf32>
    %260 = arith.negf %259 : vector<8x128xf32>
    %261 = math.exp %260 : vector<8x128xf32>
    %cst_94 = arith.constant 1.000000e+00 : f32
    %262 = vector.broadcast %cst_94 : f32 to vector<8x128xf32>
    %263 = arith.addf %262, %261 : vector<8x128xf32>
    %264 = arith.divf %262, %263 : vector<8x128xf32>
    %265 = vector.extract_strided_slice %254 {offsets = [0, 128], sizes = [8, 128], strides = [1, 1]} : vector<8x384xf32> to vector<8x128xf32>
    %266 = vector.extract_strided_slice %256 {offsets = [0, 128], sizes = [8, 128], strides = [1, 1]} : vector<8x384xf32> to vector<8x128xf32>
    %267 = arith.addf %265, %266 : vector<8x128xf32>
    %268 = arith.negf %267 : vector<8x128xf32>
    %269 = math.exp %268 : vector<8x128xf32>
    %cst_95 = arith.constant 1.000000e+00 : f32
    %270 = vector.broadcast %cst_95 : f32 to vector<8x128xf32>
    %271 = arith.addf %270, %269 : vector<8x128xf32>
    %272 = arith.divf %270, %271 : vector<8x128xf32>
    %273 = vector.extract_strided_slice %254 {offsets = [0, 256], sizes = [8, 128], strides = [1, 1]} : vector<8x384xf32> to vector<8x128xf32>
    %274 = vector.extract_strided_slice %256 {offsets = [0, 256], sizes = [8, 128], strides = [1, 1]} : vector<8x384xf32> to vector<8x128xf32>
    %275 = arith.addf %274, %11 : vector<8x128xf32>
    %276 = arith.mulf %264, %275 : vector<8x128xf32>
    %277 = arith.addf %273, %276 : vector<8x128xf32>
    %278 = math.tanh %277 : vector<8x128xf32>
    %cst_96 = arith.constant 1.000000e+00 : f32
    %279 = vector.broadcast %cst_96 : f32 to vector<8x128xf32>
    %280 = arith.subf %279, %272 : vector<8x128xf32>
    %281 = arith.mulf %280, %278 : vector<8x128xf32>
    %282 = arith.mulf %272, %249 : vector<8x128xf32>
    %283 = arith.addf %281, %282 : vector<8x128xf32>
    %c0_97 = arith.constant 0 : index
    %c0_98 = arith.constant 0 : index
    %284 = vector.load %arg5[%c0_97, %c0_98] : memref<128x128xf32, #tpu.memory_space<vmem>>, vector<128x128xf32>
    %cst_99 = arith.constant dense<0.000000e+00> : vector<8x128xf32>
    %285 = tpu.matmul %283, %284, %cst_99 {dimension_numbers = #tpu.dot_dimension_numbers<[1], [0], [0], [1], [0, 0, 1, 1], [], []>} : vector<8x128xf32>, vector<128x128xf32>, vector<8x128xf32> -> vector<8x128xf32>
    %286 = arith.addf %285, %14 : vector<8x128xf32>
    %c0_100 = arith.constant 0 : index
    %c896 = arith.constant 896 : index
    %287 = vector.load %arg7[%c0_100, %c896] : memref<8x1024xf32, #tpu.memory_space<vmem>>, vector<8x128xf32>
    tpu.vector_store %arg7[%c0_100, %c896], %286 {strides = array<i32>} : memref<8x1024xf32, #tpu.memory_space<vmem>>, vector<8x128xf32>,
    %c0_101 = arith.constant 0 : index
    %c0_102 = arith.constant 0 : index
    %288 = vector.load %arg8[%c0_101, %c0_102] : memref<8x128xf32, #tpu.memory_space<vmem>>, vector<8x128xf32>
    tpu.vector_store %arg8[%c0_101, %c0_102], %283 {strides = array<i32>} : memref<8x128xf32, #tpu.memory_space<vmem>>, vector<8x128xf32>,
    return
  }
}

</mosaic_0001>

<llo_original>
// kernel: rnn_lm_forward.1
$region0: #{rnn_lm_forward.1}
  #allocation0 [shape = 'u32[]', space=smem, size = 0x4, offset = 0x4, fixed_abs, tag = 'smem constant byte address 0x4 - core index']
  #allocation1 [shape = 'u32[144,128]{1,0:T(1,128)}', space=vmem, size = 0x12000, scoped, tag = 'internal scratch']
  #allocation2 [shape = 'f32[64,384]{1,0:T(8,128)}', space=vmem, size = 0x18000, scoped, tag = 'scratch operand']
  %s0 = inlined_call_operand.vmem [shape: s32[64,1], index: 0, kind: input, shape index: {}]
  %s1 = inlined_call_operand.hbm [shape: f32[128,384], index: 1, kind: input, shape index: {}]
  %s2 = inlined_call_operand.vmem [shape: f32[8,128], index: 2, kind: input, shape index: {}]
  %s3 = inlined_call_operand.hbm [shape: f32[128,384], index: 3, kind: input, shape index: {}]
  %s4 = inlined_call_operand.vmem [shape: f32[1,128], index: 4, kind: input, shape index: {}]
  %s5 = inlined_call_operand.vmem [shape: f32[128,128], index: 5, kind: input, shape index: {}]
  %s6 = inlined_call_operand.vmem [shape: f32[1,128], index: 6, kind: input, shape index: {}]
  %s7 = inlined_call_operand.vmem [shape: f32[8,1024], index: 7, kind: output, shape index: {0}]
  %s8 = inlined_call_operand.vmem [shape: f32[8,128], index: 8, kind: output, shape index: {1}]
  %9 = xla_tuple %s7, %s8
  %s10 = sld [smem:[#allocation0]]
  $region54: #{rnn_lm_forward.1} parent=0
    _
  %s12 = ssub.s32 1, %s10
  %s13 = scalar_select 0, %s12, %s10
  $region1: #{rnn_lm_forward.1} parent=0
    #allocation3 [shape = 'u8[196608]{0}', space=vmem, size = 0x30000, scoped, tag = 'input window, operand 1, single buffered']
    #allocation4 [shape = 's32[1]{0}', space=sflag, size = 0x4, scoped, tag = 'scoped memory for rnn_lm_forward.1']
    #allocation5 [shape = 'u8[196608]{0}', space=vmem, size = 0x30000, scoped, tag = 'input window, operand 3, single buffered']
    #allocation6 [shape = 's32[1]{0}', space=sflag, size = 0x4, scoped, tag = 'scoped memory for rnn_lm_forward.1']
    %14 = vsyncpa [#allocation4], 0
    %15 = vsyncpa [#allocation6], 0
    // Predicated region
    $region2: #{rnn_lm_forward.1} parent=1 // pred_check
      _
    $region3: #{rnn_lm_forward.1} parent=1 // pred_check_branch
      %17 = sbr.rel (0) target = $region5
    $region4: #{rnn_lm_forward.1} parent=1 // pred_region
      _
    $region5: #{rnn_lm_forward.1} parent=1 // pred_fallthru
      _
    // Predicated region
    $region6: #{rnn_lm_forward.1} parent=1 // pred_check
      _
    $region7: #{rnn_lm_forward.1} parent=1 // pred_check_branch
      %19 = sbr.rel (0) target = $region9
    $region8: #{rnn_lm_forward.1} parent=1 // pred_region
      %s21 = ssub.s32 6144, 6144
      %22 = vsyncadd [#allocation4], %s21
      %s23 = sshll.u32 [#allocation3], 4
      %s24 = int_to_ptr.vmem [resolvable:$true] %s23
      %29 = dma.hbm_to_vmem [thread:$0]  %s1, 6144, %s24, [#allocation4], 384, 384, 24
    $region9: #{rnn_lm_forward.1} parent=1 // pred_fallthru
      _
    // Predicated region
    $region10: #{rnn_lm_forward.1} parent=1 // pred_check
      _
    $region11: #{rnn_lm_forward.1} parent=1 // pred_check_branch
      %31 = sbr.rel (0) target = $region13
    $region12: #{rnn_lm_forward.1} parent=1 // pred_region
      _
    $region13: #{rnn_lm_forward.1} parent=1 // pred_fallthru
      _
    // Predicated region
    $region14: #{rnn_lm_forward.1} parent=1 // pred_check
      _
    $region15: #{rnn_lm_forward.1} parent=1 // pred_check_branch
      %33 = sbr.rel (0) target = $region17
    $region16: #{rnn_lm_forward.1} parent=1 // pred_region
      %s35 = ssub.s32 6144, 6144
      %36 = vsyncadd [#allocation6], %s35
      %s37 = sshll.u32 [#allocation5], 4
      %s38 = int_to_ptr.vmem [resolvable:$true] %s37
      %43 = dma.hbm_to_vmem [thread:$0]  %s3, 6144, %s38, [#allocation6], 384, 384, 24
    $region17: #{rnn_lm_forward.1} parent=1 // pred_fallthru
      _
    // Predicated region
    $region18: #{rnn_lm_forward.1} parent=1 // pred_check
      _
    $region19: #{rnn_lm_forward.1} parent=1 // pred_check_branch
      %45 = sbr.rel (0) target = $region21
    $region20: #{rnn_lm_forward.1} parent=1 // pred_region
      _
    $region21: #{rnn_lm_forward.1} parent=1 // pred_fallthru
      _
    // Predicated region
    $region22: #{rnn_lm_forward.1} parent=1 // pred_check
      _
    $region23: #{rnn_lm_forward.1} parent=1 // pred_check_branch
      %47 = sbr.rel (0) target = $region25
    $region24: #{rnn_lm_forward.1} parent=1 // pred_region
      _
    $region25: #{rnn_lm_forward.1} parent=1 // pred_fallthru
      _
    // Predicated region
    $region26: #{rnn_lm_forward.1} parent=1 // pred_check
      _
    $region27: #{rnn_lm_forward.1} parent=1 // pred_check_branch
      %49 = sbr.rel (0) target = $region29
    $region28: #{rnn_lm_forward.1} parent=1 // pred_region
      _
    $region29: #{rnn_lm_forward.1} parent=1 // pred_fallthru
      _
    // Predicated region
    $region30: #{rnn_lm_forward.1} parent=1 // pred_check
      _
    $region31: #{rnn_lm_forward.1} parent=1 // pred_check_branch
      %51 = sbr.rel (0) target = $region33
    $region32: #{rnn_lm_forward.1} parent=1 // pred_region
      %52 = dma.done [#allocation4], 6144
    $region33: #{rnn_lm_forward.1} parent=1 // pred_fallthru
      _
    // Predicated region
    $region34: #{rnn_lm_forward.1} parent=1 // pred_check
      _
    $region35: #{rnn_lm_forward.1} parent=1 // pred_check_branch
      %54 = sbr.rel (0) target = $region37
    $region36: #{rnn_lm_forward.1} parent=1 // pred_region
      %55 = dma.done [#allocation6], 6144
    $region37: #{rnn_lm_forward.1} parent=1 // pred_fallthru
      _
    %v56 = vld [vmem:[%s0] sm:$0xff]
    %v57 = vld [vmem:[%s0 + $0x8] sm:$0xff]
    %v58 = vld [vmem:[%s0 + $0x10] sm:$0xff]
    %v59 = vld [vmem:[%s0 + $0x18] sm:$0xff]
    %v60 = vld [vmem:[%s0 + $0x20] sm:$0xff]
    %v61 = vld [vmem:[%s0 + $0x28] sm:$0xff]
    %v62 = vld [vmem:[%s0 + $0x30] sm:$0xff]
    %v63 = vld [vmem:[%s0 + $0x38] sm:$0xff]
    %v64 = vlaneseq
    %v65 = vand.u32 %v64, 127
    %66 = vset.pattern.permute.xlu0 0
    %67 = vperm.xlu0 %66, %v56
    %v68 = vpop.permute.xlu0 %67
    %69 = vset.pattern.permute.xlu0 0
    %70 = vperm.xlu0 %69, %v57
    %v71 = vpop.permute.xlu0 %70
    %72 = vset.pattern.permute.xlu0 0
    %73 = vperm.xlu0 %72, %v58
    %v74 = vpop.permute.xlu0 %73
    %75 = vset.pattern.permute.xlu0 0
    %76 = vperm.xlu0 %75, %v59
    %v77 = vpop.permute.xlu0 %76
    %78 = vset.pattern.permute.xlu0 0
    %79 = vperm.xlu0 %78, %v60
    %v80 = vpop.permute.xlu0 %79
    %81 = vset.pattern.permute.xlu0 0
    %82 = vperm.xlu0 %81, %v61
    %v83 = vpop.permute.xlu0 %82
    %84 = vset.pattern.permute.xlu0 0
    %85 = vperm.xlu0 %84, %v62
    %v86 = vpop.permute.xlu0 %85
    %87 = vset.pattern.permute.xlu0 0
    %88 = vperm.xlu0 %87, %v63
    %v89 = vpop.permute.xlu0 %88
    %vm90 = vcmp.eq.s32.totalorder %v68, %v65
    %vm91 = vcmp.eq.s32.totalorder %v71, %v65
    %vm92 = vcmp.eq.s32.totalorder %v74, %v65
    %vm93 = vcmp.eq.s32.totalorder %v77, %v65
    %vm94 = vcmp.eq.s32.totalorder %v80, %v65
    %vm95 = vcmp.eq.s32.totalorder %v83, %v65
    %vm96 = vcmp.eq.s32.totalorder %v86, %v65
    %vm97 = vcmp.eq.s32.totalorder %v89, %v65
    %v98 = vsel %vm90, 1, 0
    %v99 = vsel %vm91, 1, 0
    %v100 = vsel %vm92, 1, 0
    %v101 = vsel %vm93, 1, 0
    %v102 = vsel %vm94, 1, 0
    %v103 = vsel %vm95, 1, 0
    %v104 = vsel %vm96, 1, 0
    %v105 = vsel %vm97, 1, 0
    %v106 = vcvt.s32.f32 %v98
    %v107 = vcvt.s32.f32 %v99
    %v108 = vcvt.s32.f32 %v100
    %v109 = vcvt.s32.f32 %v101
    %v110 = vcvt.s32.f32 %v102
    %v111 = vcvt.s32.f32 %v103
    %v112 = vcvt.s32.f32 %v104
    %v113 = vcvt.s32.f32 %v105
    %v114 = vld [vmem:[#allocation3] sm:$0xff]
    %v115 = vld [vmem:[#allocation3 + $0x8] sm:$0xff]
    %v116 = vld [vmem:[#allocation3 + $0x10] sm:$0xff]
    %v117 = vld [vmem:[#allocation3 + $0x18] sm:$0xff]
    %v118 = vld [vmem:[#allocation3 + $0x20] sm:$0xff]
    %v119 = vld [vmem:[#allocation3 + $0x28] sm:$0xff]
    %v120 = vld [vmem:[#allocation3 + $0x30] sm:$0xff]
    %v121 = vld [vmem:[#allocation3 + $0x38] sm:$0xff]
    %v122 = vld [vmem:[#allocation3 + $0x40] sm:$0xff]
    %v123 = vld [vmem:[#allocation3 + $0x48] sm:$0xff]
    %v124 = vld [vmem:[#allocation3 + $0x50] sm:$0xff]
    %v125 = vld [vmem:[#allocation3 + $0x58] sm:$0xff]
    %v126 = vld [vmem:[#allocation3 + $0x60] sm:$0xff]
    %v127 = vld [vmem:[#allocation3 + $0x68] sm:$0xff]
    %v128 = vld [vmem:[#allocation3 + $0x70] sm:$0xff]
    %v129 = vld [vmem:[#allocation3 + $0x78] sm:$0xff]
    %v130 = vld [vmem:[#allocation3 + $0x80] sm:$0xff]
    %v131 = vld [vmem:[#allocation3 + $0x88] sm:$0xff]
    %v132 = vld [vmem:[#allocation3 + $0x90] sm:$0xff]
    %v133 = vld [vmem:[#allocation3 + $0x98] sm:$0xff]
    %v134 = vld [vmem:[#allocation3 + $0xa0] sm:$0xff]
    %v135 = vld [vmem:[#allocation3 + $0xa8] sm:$0xff]
    %v136 = vld [vmem:[#allocation3 + $0xb0] sm:$0xff]
    %v137 = vld [vmem:[#allocation3 + $0xb8] sm:$0xff]
    %v138 = vld [vmem:[#allocation3 + $0xc0] sm:$0xff]
    %v139 = vld [vmem:[#allocation3 + $0xc8] sm:$0xff]
    %v140 = vld [vmem:[#allocation3 + $0xd0] sm:$0xff]
    %v141 = vld [vmem:[#allocation3 + $0xd8] sm:$0xff]
    %v142 = vld [vmem:[#allocation3 + $0xe0] sm:$0xff]
    %v143 = vld [vmem:[#allocation3 + $0xe8] sm:$0xff]
    %v144 = vld [vmem:[#allocation3 + $0xf0] sm:$0xff]
    %v145 = vld [vmem:[#allocation3 + $0xf8] sm:$0xff]
    %v146 = vld [vmem:[#allocation3 + $0x100] sm:$0xff]
    %v147 = vld [vmem:[#allocation3 + $0x108] sm:$0xff]
    %v148 = vld [vmem:[#allocation3 + $0x110] sm:$0xff]
    %v149 = vld [vmem:[#allocation3 + $0x118] sm:$0xff]
    %v150 = vld [vmem:[#allocation3 + $0x120] sm:$0xff]
    %v151 = vld [vmem:[#allocation3 + $0x128] sm:$0xff]
    %v152 = vld [vmem:[#allocation3 + $0x130] sm:$0xff]
    %v153 = vld [vmem:[#allocation3 + $0x138] sm:$0xff]
    %v154 = vld [vmem:[#allocation3 + $0x140] sm:$0xff]
    %v155 = vld [vmem:[#allocation3 + $0x148] sm:$0xff]
    %v156 = vld [vmem:[#allocation3 + $0x150] sm:$0xff]
    %v157 = vld [vmem:[#allocation3 + $0x158] sm:$0xff]
    %v158 = vld [vmem:[#allocation3 + $0x160] sm:$0xff]
    %v159 = vld [vmem:[#allocation3 + $0x168] sm:$0xff]
    %v160 = vld [vmem:[#allocation3 + $0x170] sm:$0xff]
    %v161 = vld [vmem:[#allocation3 + $0x178] sm:$0xff]
    %162 = vmatprep.subr.mxu0 %v115
    %163 = vmatpush1.msra.mxu0 %v114
    %164 = vmatprep.subr.mxu0 %v118
    %165 = vmatpush1.msra.mxu0 %v117
    %166 = vmatprep.subr.mxu0 %v121
    %167 = vmatpush1.msra.mxu0 %v120
    %168 = vmatprep.subr.mxu0 %v124
    %169 = vmatpush1.msra.mxu0 %v123
    %170 = vmatprep.subr.mxu0 %v127
    %171 = vmatpush1.msra.mxu0 %v126
    %172 = vmatprep.subr.mxu0 %v130
    %173 = vmatpush1.msra.mxu0 %v129
    %174 = vmatprep.subr.mxu0 %v133
    %175 = vmatpush1.msra.mxu0 %v132
    %176 = vmatprep.subr.mxu0 %v136
    %177 = vmatpush1.msra.mxu0 %v135
    %178 = vmatprep.subr.mxu0 %v139
    %179 = vmatpush1.msra.mxu0 %v138
    %180 = vmatprep.subr.mxu0 %v142
    %181 = vmatpush1.msra.mxu0 %v141
    %182 = vmatprep.subr.mxu0 %v145
    %183 = vmatpush1.msra.mxu0 %v144
    %184 = vmatprep.subr.mxu0 %v148
    %185 = vmatpush1.msra.mxu0 %v147
    %186 = vmatprep.subr.mxu0 %v151
    %187 = vmatpush1.msra.mxu0 %v150
    %188 = vmatprep.subr.mxu0 %v154
    %189 = vmatpush1.msra.mxu0 %v153
    %190 = vmatprep.subr.mxu0 %v157
    %191 = vmatpush1.msra.mxu0 %v156
    %192 = vmatprep.subr.mxu0 %v160
    %193 = vmatpush1.msra.mxu0 %v159
    %194 = vmatprep.subr.mxu0 0.0
    %195 = vmatpush1.msra.mxu0 0.0
    %196 = vmatprep.subr.mxu0 0.0
    %197 = vmatpush1.msra.mxu0 0.0
    %198 = vmatprep.subr.mxu0 0.0
    %199 = vmatpush1.msra.mxu0 0.0
    %200 = vmatprep.subr.mxu0 0.0
    %201 = vmatpush1.msra.mxu0 0.0
    %202 = vmatprep.subr.mxu0 0.0
    %203 = vmatpush1.msra.mxu0 0.0
    %204 = vmatprep.subr.mxu0 0.0
    %205 = vmatpush1.msra.mxu0 0.0
    %206 = vmatprep.subr.mxu0 0.0
    %207 = vmatpush1.msra.mxu0 0.0
    %208 = vmatprep.subr.mxu0 0.0
    %209 = vmatpush1.msra.mxu0 0.0
    %210 = vmatprep.subr.mxu0 0.0
    %211 = vmatpush1.msra.mxu0 0.0
    %212 = vmatprep.subr.mxu0 0.0
    %213 = vmatpush1.msra.mxu0 0.0
    %214 = vmatprep.subr.mxu0 0.0
    %215 = vmatpush1.msra.mxu0 0.0
    %216 = vmatprep.subr.mxu0 0.0
    %217 = vmatpush1.msra.mxu0 0.0
    %218 = vmatprep.subr.mxu0 0.0
    %219 = vmatpush1.msra.mxu0 0.0
    %220 = vmatprep.subr.mxu0 0.0
    %221 = vmatpush1.msra.mxu0 0.0
    %222 = vmatprep.subr.mxu0 0.0
    %223 = vmatpush1.msra.mxu0 0.0
    %224 = vmatprep.subr.mxu0 0.0
    %225 = vmatpush1.msra.mxu0 0.0
    %226 = vmatprep.mubr.f32.mxu0 0.0
    %227 = vmatmul.mubr.f32.gmra.mrb[0].mxu0 %v106
    %v228 = vpop.f32.mrb[0].mxu0
    %v229 = vadd.f32 0.0, %v228
    %v230 = vpop.f32.mrb[0].mxu0
    %v231 = vadd.f32 0.0, %v230
    %232 = vmatprep.mubr.f32.mxu0 0.0
    %233 = vmatmul.mubr.f32.gmra.mrb[0].mxu0 %v107
    %v234 = vpop.f32.mrb[0].mxu0
    %v235 = vadd.f32 0.0, %v234
    %v236 = vpop.f32.mrb[0].mxu0
    %v237 = vadd.f32 0.0, %v236
    %238 = vmatprep.mubr.f32.mxu0 0.0
    %239 = vmatmul.mubr.f32.gmra.mrb[0].mxu0 %v108
    %v240 = vpop.f32.mrb[0].mxu0
    %v241 = vadd.f32 0.0, %v240
    %v242 = vpop.f32.mrb[0].mxu0
    %v243 = vadd.f32 0.0, %v242
    %244 = vmatprep.mubr.f32.mxu0 0.0
    %245 = vmatmul.mubr.f32.gmra.mrb[0].mxu0 %v109
    %v246 = vpop.f32.mrb[0].mxu0
    %v247 = vadd.f32 0.0, %v246
    %v248 = vpop.f32.mrb[0].mxu0
    %v249 = vadd.f32 0.0, %v248
    %250 = vmatprep.mubr.f32.mxu0 0.0
    %251 = vmatmul.mubr.f32.gmra.mrb[0].mxu0 %v110
    %v252 = vpop.f32.mrb[0].mxu0
    %v253 = vadd.f32 0.0, %v252
    %v254 = vpop.f32.mrb[0].mxu0
    %v255 = vadd.f32 0.0, %v254
    %256 = vmatprep.mubr.f32.mxu0 0.0
    %257 = vmatmul.mubr.f32.gmra.mrb[0].mxu0 %v111
    %v258 = vpop.f32.mrb[0].mxu0
    %v259 = vadd.f32 0.0, %v258
    %v260 = vpop.f32.mrb[0].mxu0
    %v261 = vadd.f32 0.0, %v260
    %262 = vmatprep.mubr.f32.mxu0 0.0
    %263 = vmatmul.mubr.f32.gmra.mrb[0].mxu0 %v112
    %v264 = vpop.f32.mrb[0].mxu0
    %v265 = vadd.f32 0.0, %v264
    %v266 = vpop.f32.mrb[0].mxu0
    %v267 = vadd.f32 0.0, %v266
    %268 = vmatprep.mubr.f32.mxu0 0.0
    %269 = vmatmul.mubr.f32.gmra.mrb[0].mxu0 %v113
    %v270 = vpop.f32.mrb[0].mxu0
    %v271 = vadd.f32 0.0, %v270
    %v272 = vpop.f32.mrb[0].mxu0
    %v273 = vadd.f32 0.0, %v272
    %274 = vdwg.mxu0
    %275 = vmatprep.subr.mxu0 0.0
    %276 = vmatpush1.msra.mxu0 %v116
    %277 = vmatprep.subr.mxu0 0.0
    %278 = vmatpush1.msra.mxu0 %v119
    %279 = vmatprep.subr.mxu0 0.0
    %280 = vmatpush1.msra.mxu0 %v122
    %281 = vmatprep.subr.mxu0 0.0
    %282 = vmatpush1.msra.mxu0 %v125
    %283 = vmatprep.subr.mxu0 0.0
    %284 = vmatpush1.msra.mxu0 %v128
    %285 = vmatprep.subr.mxu0 0.0
    %286 = vmatpush1.msra.mxu0 %v131
    %287 = vmatprep.subr.mxu0 0.0
    %288 = vmatpush1.msra.mxu0 %v134
    %289 = vmatprep.subr.mxu0 0.0
    %290 = vmatpush1.msra.mxu0 %v137
    %291 = vmatprep.subr.mxu0 0.0
    %292 = vmatpush1.msra.mxu0 %v140
    %293 = vmatprep.subr.mxu0 0.0
    %294 = vmatpush1.msra.mxu0 %v143
    %295 = vmatprep.subr.mxu0 0.0
    %296 = vmatpush1.msra.mxu0 %v146
    %297 = vmatprep.subr.mxu0 0.0
    %298 = vmatpush1.msra.mxu0 %v149
    %299 = vmatprep.subr.mxu0 0.0
    %300 = vmatpush1.msra.mxu0 %v152
    %301 = vmatprep.subr.mxu0 0.0
    %302 = vmatpush1.msra.mxu0 %v155
    %303 = vmatprep.subr.mxu0 0.0
    %304 = vmatpush1.msra.mxu0 %v158
    %305 = vmatprep.subr.mxu0 0.0
    %306 = vmatpush1.msra.mxu0 %v161
    %307 = vmatprep.subr.mxu0 0.0
    %308 = vmatpush1.msra.mxu0 0.0
    %309 = vmatprep.subr.mxu0 0.0
    %310 = vmatpush1.msra.mxu0 0.0
    %311 = vmatprep.subr.mxu0 0.0
    %312 = vmatpush1.msra.mxu0 0.0
    %313 = vmatprep.subr.mxu0 0.0
    %314 = vmatpush1.msra.mxu0 0.0
    %315 = vmatprep.subr.mxu0 0.0
    %316 = vmatpush1.msra.mxu0 0.0
    %317 = vmatprep.subr.mxu0 0.0
    %318 = vmatpush1.msra.mxu0 0.0
    %319 = vmatprep.subr.mxu0 0.0
    %320 = vmatpush1.msra.mxu0 0.0
    %321 = vmatprep.subr.mxu0 0.0
    %322 = vmatpush1.msra.mxu0 0.0
    %323 = vmatprep.subr.mxu0 0.0
    %324 = vmatpush1.msra.mxu0 0.0
    %325 = vmatprep.subr.mxu0 0.0
    %326 = vmatpush1.msra.mxu0 0.0
    %327 = vmatprep.subr.mxu0 0.0
    %328 = vmatpush1.msra.mxu0 0.0
    %329 = vmatprep.subr.mxu0 0.0
    %330 = vmatpush1.msra.mxu0 0.0
    %331 = vmatprep.subr.mxu0 0.0
    %332 = vmatpush1.msra.mxu0 0.0
    %333 = vmatprep.subr.mxu0 0.0
    %334 = vmatpush1.msra.mxu0 0.0
    %335 = vmatprep.subr.mxu0 0.0
    %336 = vmatpush1.msra.mxu0 0.0
    %337 = vmatprep.subr.mxu0 0.0
    %338 = vmatpush1.msra.mxu0 0.0
    %339 = vmatprep.mubr.f32.mxu0 0.0
    %340 = vmatmul.mubr.f32.gmra.mrb[0].mxu0 %v106
    %v341 = vpop.f32.mrb[0].mxu0
    %v342 = vadd.f32 0.0, %v341
    %v343 = vpop.f32.mrb[0].mxu0
    %344 = vmatprep.mubr.f32.mxu0 0.0
    %345 = vmatmul.mubr.f32.gmra.mrb[0].mxu0 %v107
    %v346 = vpop.f32.mrb[0].mxu0
    %v347 = vadd.f32 0.0, %v346
    %v348 = vpop.f32.mrb[0].mxu0
    %349 = vmatprep.mubr.f32.mxu0 0.0
    %350 = vmatmul.mubr.f32.gmra.mrb[0].mxu0 %v108
    %v351 = vpop.f32.mrb[0].mxu0
    %v352 = vadd.f32 0.0, %v351
    %v353 = vpop.f32.mrb[0].mxu0
    %354 = vmatprep.mubr.f32.mxu0 0.0
    %355 = vmatmul.mubr.f32.gmra.mrb[0].mxu0 %v109
    %v356 = vpop.f32.mrb[0].mxu0
    %v357 = vadd.f32 0.0, %v356
    %v358 = vpop.f32.mrb[0].mxu0
    %359 = vmatprep.mubr.f32.mxu0 0.0
    %360 = vmatmul.mubr.f32.gmra.mrb[0].mxu0 %v110
    %v361 = vpop.f32.mrb[0].mxu0
    %v362 = vadd.f32 0.0, %v361
    %v363 = vpop.f32.mrb[0].mxu0
    %364 = vmatprep.mubr.f32.mxu0 0.0
    %365 = vmatmul.mubr.f32.gmra.mrb[0].mxu0 %v111
    %v366 = vpop.f32.mrb[0].mxu0
    %v367 = vadd.f32 0.0, %v366
    %v368 = vpop.f32.mrb[0].mxu0
    %369 = vmatprep.mubr.f32.mxu0 0.0
    %370 = vmatmul.mubr.f32.gmra.mrb[0].mxu0 %v112
    %v371 = vpop.f32.mrb[0].mxu0
    %v372 = vadd.f32 0.0, %v371
    %v373 = vpop.f32.mrb[0].mxu0
    %374 = vmatprep.mubr.f32.mxu0 0.0
    %375 = vmatmul.mubr.f32.gmra.mrb[0].mxu0 %v113
    %v376 = vpop.f32.mrb[0].mxu0
    %v377 = vadd.f32 0.0, %v376
    %v378 = vpop.f32.mrb[0].mxu0
    %379 = vdwg.mxu0
    %380 = vst [vmem:[#allocation2] sm:$0xff] %v229
    %381 = vst [vmem:[#allocation2 + $0x8] sm:$0xff] %v231
    %382 = vst [vmem:[#allocation2 + $0x10] sm:$0xff] %v342
    %383 = vst [vmem:[#allocation2 + $0x18] sm:$0xff] %v235
    %384 = vst [vmem:[#allocation2 + $0x20] sm:$0xff] %v237
    %385 = vst [vmem:[#allocation2 + $0x28] sm:$0xff] %v347
    %386 = vst [vmem:[#allocation2 + $0x30] sm:$0xff] %v241
    %387 = vst [vmem:[#allocation2 + $0x38] sm:$0xff] %v243
    %388 = vst [vmem:[#allocation2 + $0x40] sm:$0xff] %v352
    %389 = vst [vmem:[#allocation2 + $0x48] sm:$0xff] %v247
    %390 = vst [vmem:[#allocation2 + $0x50] sm:$0xff] %v249
    %391 = vst [vmem:[#allocation2 + $0x58] sm:$0xff] %v357
    %392 = vst [vmem:[#allocation2 + $0x60] sm:$0xff] %v253
    %393 = vst [vmem:[#allocation2 + $0x68] sm:$0xff] %v255
    %394 = vst [vmem:[#allocation2 + $0x70] sm:$0xff] %v362
    %395 = vst [vmem:[#allocation2 + $0x78] sm:$0xff] %v259
    %396 = vst [vmem:[#allocation2 + $0x80] sm:$0xff] %v261
    %397 = vst [vmem:[#allocation2 + $0x88] sm:$0xff] %v367
    %398 = vst [vmem:[#allocation2 + $0x90] sm:$0xff] %v265
    %399 = vst [vmem:[#allocation2 + $0x98] sm:$0xff] %v267
    %400 = vst [vmem:[#allocation2 + $0xa0] sm:$0xff] %v372
    %401 = vst [vmem:[#allocation2 + $0xa8] sm:$0xff] %v271
    %402 = vst [vmem:[#allocation2 + $0xb0] sm:$0xff] %v273
    %403 = vst [vmem:[#allocation2 + $0xb8] sm:$0xff] %v377
    %v404 = vld [vmem:[%s4] sm:$0x1]
    %v406 = vlaneseq
    %v407 = vshrl.u32 %v406, 7
    %v408 = vsub.s32 0, %v407
    %v409 = vrot.slane %v404, %v408
    %v411 = vld [vmem:[%s6] sm:$0x1]
    %v413 = vlaneseq
    %v414 = vshrl.u32 %v413, 7
    %v415 = vsub.s32 0, %v414
    %v416 = vrot.slane %v411, %v415
    %v418 = vld [vmem:[%s2] sm:$0xff]
    %v419 = vld [vmem:[#allocation2] sm:$0xff]
    %v420 = vld [vmem:[#allocation2 + $0x8] sm:$0xff]
    %v421 = vld [vmem:[#allocation2 + $0x10] sm:$0xff]
    %v422 = vld [vmem:[#allocation5] sm:$0xff]
    %v423 = vld [vmem:[#allocation5 + $0x8] sm:$0xff]
    %v424 = vld [vmem:[#allocation5 + $0x10] sm:$0xff]
    %v425 = vld [vmem:[#allocation5 + $0x18] sm:$0xff]
    %v426 = vld [vmem:[#allocation5 + $0x20] sm:$0xff]
    %v427 = vld [vmem:[#allocation5 + $0x28] sm:$0xff]
    %v428 = vld [vmem:[#allocation5 + $0x30] sm:$0xff]
    %v429 = vld [vmem:[#allocation5 + $0x38] sm:$0xff]
    %v430 = vld [vmem:[#allocation5 + $0x40] sm:$0xff]
    %v431 = vld [vmem:[#allocation5 + $0x48] sm:$0xff]
    %v432 = vld [vmem:[#allocation5 + $0x50] sm:$0xff]
    %v433 = vld [vmem:[#allocation5 + $0x58] sm:$0xff]
    %v434 = vld [vmem:[#allocation5 + $0x60] sm:$0xff]
    %v435 = vld [vmem:[#allocation5 + $0x68] sm:$0xff]
    %v436 = vld [vmem:[#allocation5 + $0x70] sm:$0xff]
    %v437 = vld [vmem:[#allocation5 + $0x78] sm:$0xff]
    %v438 = vld [vmem:[#allocation5 + $0x80] sm:$0xff]
    %v439 = vld [vmem:[#allocation5 + $0x88] sm:$0xff]
    %v440 = vld [vmem:[#allocation5 + $0x90] sm:$0xff]
    %v441 = vld [vmem:[#allocation5 + $0x98] sm:$0xff]
    %v442 = vld [vmem:[#allocation5 + $0xa0] sm:$0xff]
    %v443 = vld [vmem:[#allocation5 + $0xa8] sm:$0xff]
    %v444 = vld [vmem:[#allocation5 + $0xb0] sm:$0xff]
    %v445 = vld [vmem:[#allocation5 + $0xb8] sm:$0xff]
    %v446 = vld [vmem:[#allocation5 + $0xc0] sm:$0xff]
    %v447 = vld [vmem:[#allocation5 + $0xc8] sm:$0xff]
    %v448 = vld [vmem:[#allocation5 + $0xd0] sm:$0xff]
    %v449 = vld [vmem:[#allocation5 + $0xd8] sm:$0xff]
    %v450 = vld [vmem:[#allocation5 + $0xe0] sm:$0xff]
    %v451 = vld [vmem:[#allocation5 + $0xe8] sm:$0xff]
    %v452 = vld [vmem:[#allocation5 + $0xf0] sm:$0xff]
    %v453 = vld [vmem:[#allocation5 + $0xf8] sm:$0xff]
    %v454 = vld [vmem:[#allocation5 + $0x100] sm:$0xff]
    %v455 = vld [vmem:[#allocation5 + $0x108] sm:$0xff]
    %v456 = vld [vmem:[#allocation5 + $0x110] sm:$0xff]
    %v457 = vld [vmem:[#allocation5 + $0x118] sm:$0xff]
    %v458 = vld [vmem:[#allocation5 + $0x120] sm:$0xff]
    %v459 = vld [vmem:[#allocation5 + $0x128] sm:$0xff]
    %v460 = vld [vmem:[#allocation5 + $0x130] sm:$0xff]
    %v461 = vld [vmem:[#allocation5 + $0x138] sm:$0xff]
    %v462 = vld [vmem:[#allocation5 + $0x140] sm:$0xff]
    %v463 = vld [vmem:[#allocation5 + $0x148] sm:$0xff]
    %v464 = vld [vmem:[#allocation5 + $0x150] sm:$0xff]
    %v465 = vld [vmem:[#allocation5 + $0x158] sm:$0xff]
    %v466 = vld [vmem:[#allocation5 + $0x160] sm:$0xff]
    %v467 = vld [vmem:[#allocation5 + $0x168] sm:$0xff]
    %v468 = vld [vmem:[#allocation5 + $0x170] sm:$0xff]
    %v469 = vld [vmem:[#allocation5 + $0x178] sm:$0xff]
    %470 = vmatprep.subr.mxu0 %v423
    %471 = vmatpush1.msra.mxu0 %v422
    %472 = vmatprep.subr.mxu0 %v426
    %473 = vmatpush1.msra.mxu0 %v425
    %474 = vmatprep.subr.mxu0 %v429
    %475 = vmatpush1.msra.mxu0 %v428
    %476 = vmatprep.subr.mxu0 %v432
    %477 = vmatpush1.msra.mxu0 %v431
    %478 = vmatprep.subr.mxu0 %v435
    %479 = vmatpush1.msra.mxu0 %v434
    %480 = vmatprep.subr.mxu0 %v438
    %481 = vmatpush1.msra.mxu0 %v437
    %482 = vmatprep.subr.mxu0 %v441
    %483 = vmatpush1.msra.mxu0 %v440
    %484 = vmatprep.subr.mxu0 %v444
    %485 = vmatpush1.msra.mxu0 %v443
    %486 = vmatprep.subr.mxu0 %v447
    %487 = vmatpush1.msra.mxu0 %v446
    %488 = vmatprep.subr.mxu0 %v450
    %489 = vmatpush1.msra.mxu0 %v449
    %490 = vmatprep.subr.mxu0 %v453
    %491 = vmatpush1.msra.mxu0 %v452
    %492 = vmatprep.subr.mxu0 %v456
    %493 = vmatpush1.msra.mxu0 %v455
    %494 = vmatprep.subr.mxu0 %v459
    %495 = vmatpush1.msra.mxu0 %v458
    %496 = vmatprep.subr.mxu0 %v462
    %497 = vmatpush1.msra.mxu0 %v461
    %498 = vmatprep.subr.mxu0 %v465
    %499 = vmatpush1.msra.mxu0 %v464
    %500 = vmatprep.subr.mxu0 %v468
    %501 = vmatpush1.msra.mxu0 %v467
    %502 = vmatprep.subr.mxu0 0.0
    %503 = vmatpush1.msra.mxu0 0.0
    %504 = vmatprep.subr.mxu0 0.0
    %505 = vmatpush1.msra.mxu0 0.0
    %506 = vmatprep.subr.mxu0 0.0
    %507 = vmatpush1.msra.mxu0 0.0
    %508 = vmatprep.subr.mxu0 0.0
    %509 = vmatpush1.msra.mxu0 0.0
    %510 = vmatprep.subr.mxu0 0.0
    %511 = vmatpush1.msra.mxu0 0.0
    %512 = vmatprep.subr.mxu0 0.0
    %513 = vmatpush1.msra.mxu0 0.0
    %514 = vmatprep.subr.mxu0 0.0
    %515 = vmatpush1.msra.mxu0 0.0
    %516 = vmatprep.subr.mxu0 0.0
    %517 = vmatpush1.msra.mxu0 0.0
    %518 = vmatprep.subr.mxu0 0.0
    %519 = vmatpush1.msra.mxu0 0.0
    %520 = vmatprep.subr.mxu0 0.0
    %521 = vmatpush1.msra.mxu0 0.0
    %522 = vmatprep.subr.mxu0 0.0
    %523 = vmatpush1.msra.mxu0 0.0
    %524 = vmatprep.subr.mxu0 0.0
    %525 = vmatpush1.msra.mxu0 0.0
    %526 = vmatprep.subr.mxu0 0.0
    %527 = vmatpush1.msra.mxu0 0.0
    %528 = vmatprep.subr.mxu0 0.0
    %529 = vmatpush1.msra.mxu0 0.0
    %530 = vmatprep.subr.mxu0 0.0
    %531 = vmatpush1.msra.mxu0 0.0
    %532 = vmatprep.subr.mxu0 0.0
    %533 = vmatpush1.msra.mxu0 0.0
    %534 = vmatprep.mubr.f32.mxu0 0.0
    %535 = vmatmul.mubr.f32.gmra.mrb[0].mxu0 %v418
    %v536 = vpop.f32.mrb[0].mxu0
    %v537 = vadd.f32 0.0, %v536
    %v538 = vpop.f32.mrb[0].mxu0
    %v539 = vadd.f32 0.0, %v538
    %540 = vdwg.mxu0
    %541 = vmatprep.subr.mxu0 0.0
    %542 = vmatpush1.msra.mxu0 %v424
    %543 = vmatprep.subr.mxu0 0.0
    %544 = vmatpush1.msra.mxu0 %v427
    %545 = vmatprep.subr.mxu0 0.0
    %546 = vmatpush1.msra.mxu0 %v430
    %547 = vmatprep.subr.mxu0 0.0
    %548 = vmatpush1.msra.mxu0 %v433
    %549 = vmatprep.subr.mxu0 0.0
    %550 = vmatpush1.msra.mxu0 %v436
    %551 = vmatprep.subr.mxu0 0.0
    %552 = vmatpush1.msra.mxu0 %v439
    %553 = vmatprep.subr.mxu0 0.0
    %554 = vmatpush1.msra.mxu0 %v442
    %555 = vmatprep.subr.mxu0 0.0
    %556 = vmatpush1.msra.mxu0 %v445
    %557 = vmatprep.subr.mxu0 0.0
    %558 = vmatpush1.msra.mxu0 %v448
    %559 = vmatprep.subr.mxu0 0.0
    %560 = vmatpush1.msra.mxu0 %v451
    %561 = vmatprep.subr.mxu0 0.0
    %562 = vmatpush1.msra.mxu0 %v454
    %563 = vmatprep.subr.mxu0 0.0
    %564 = vmatpush1.msra.mxu0 %v457
    %565 = vmatprep.subr.mxu0 0.0
    %566 = vmatpush1.msra.mxu0 %v460
    %567 = vmatprep.subr.mxu0 0.0
    %568 = vmatpush1.msra.mxu0 %v463
    %569 = vmatprep.subr.mxu0 0.0
    %570 = vmatpush1.msra.mxu0 %v466
    %571 = vmatprep.subr.mxu0 0.0
    %572 = vmatpush1.msra.mxu0 %v469
    %573 = vmatprep.subr.mxu0 0.0
    %574 = vmatpush1.msra.mxu0 0.0
    %575 = vmatprep.subr.mxu0 0.0
    %576 = vmatpush1.msra.mxu0 0.0
    %577 = vmatprep.subr.mxu0 0.0
    %578 = vmatpush1.msra.mxu0 0.0
    %579 = vmatprep.subr.mxu0 0.0
    %580 = vmatpush1.msra.mxu0 0.0
    %581 = vmatprep.subr.mxu0 0.0
    %582 = vmatpush1.msra.mxu0 0.0
    %583 = vmatprep.subr.mxu0 0.0
    %584 = vmatpush1.msra.mxu0 0.0
    %585 = vmatprep.subr.mxu0 0.0
    %586 = vmatpush1.msra.mxu0 0.0
    %587 = vmatprep.subr.mxu0 0.0
    %588 = vmatpush1.msra.mxu0 0.0
    %589 = vmatprep.subr.mxu0 0.0
    %590 = vmatpush1.msra.mxu0 0.0
    %591 = vmatprep.subr.mxu0 0.0
    %592 = vmatpush1.msra.mxu0 0.0
    %593 = vmatprep.subr.mxu0 0.0
    %594 = vmatpush1.msra.mxu0 0.0
    %595 = vmatprep.subr.mxu0 0.0
    %596 = vmatpush1.msra.mxu0 0.0
    %597 = vmatprep.subr.mxu0 0.0
    %598 = vmatpush1.msra.mxu0 0.0
    %599 = vmatprep.subr.mxu0 0.0
    %600 = vmatpush1.msra.mxu0 0.0
    %601 = vmatprep.subr.mxu0 0.0
    %602 = vmatpush1.msra.mxu0 0.0
    %603 = vmatprep.subr.mxu0 0.0
    %604 = vmatpush1.msra.mxu0 0.0
    %605 = vmatprep.mubr.f32.mxu0 0.0
    %606 = vmatmul.mubr.f32.gmra.mrb[0].mxu0 %v418
    %v607 = vpop.f32.mrb[0].mxu0
    %v608 = vadd.f32 0.0, %v607
    %v609 = vpop.f32.mrb[0].mxu0
    %610 = vdwg.mxu0
    %v611 = vadd.f32 %v419, %v537
    %v612 = vxor.u32 %v611, 2147483648
    %v613 = vmul.f32 %v612, 1.442695
    %v614 = vpow.pop %v613
    %v615 = vadd.f32 %v614, 1.0
    %v616 = vrcp.pop %v615
    %v617 = vmul.f32 1.0, %v616
    %v618 = vadd.f32 %v420, %v539
    %v619 = vxor.u32 %v618, 2147483648
    %v620 = vmul.f32 %v619, 1.442695
    %v621 = vpow.pop %v620
    %v622 = vadd.f32 %v621, 1.0
    %v623 = vrcp.pop %v622
    %v624 = vmul.f32 1.0, %v623
    %v625 = vadd.f32 %v608, %v409
    %v626 = vmul.f32 %v617, %v625
    %v627 = vadd.f32 %v421, %v626
    %v628 = vtanh.pop %v627
    %v629 = vsub.f32 1.0, %v624
    %v630 = vmul.f32 %v629, %v628
    %v631 = vmul.f32 %v624, %v418
    %v632 = vadd.f32 %v630, %v631
    %v633 = vld [vmem:[%s5] sm:$0xff]
    %v634 = vld [vmem:[%s5 + $0x8] sm:$0xff]
    %v635 = vld [vmem:[%s5 + $0x10] sm:$0xff]
    %v636 = vld [vmem:[%s5 + $0x18] sm:$0xff]
    %v637 = vld [vmem:[%s5 + $0x20] sm:$0xff]
    %v638 = vld [vmem:[%s5 + $0x28] sm:$0xff]
    %v639 = vld [vmem:[%s5 + $0x30] sm:$0xff]
    %v640 = vld [vmem:[%s5 + $0x38] sm:$0xff]
    %v641 = vld [vmem:[%s5 + $0x40] sm:$0xff]
    %v642 = vld [vmem:[%s5 + $0x48] sm:$0xff]
    %v643 = vld [vmem:[%s5 + $0x50] sm:$0xff]
    %v644 = vld [vmem:[%s5 + $0x58] sm:$0xff]
    %v645 = vld [vmem:[%s5 + $0x60] sm:$0xff]
    %v646 = vld [vmem:[%s5 + $0x68] sm:$0xff]
    %v647 = vld [vmem:[%s5 + $0x70] sm:$0xff]
    %v648 = vld [vmem:[%s5 + $0x78] sm:$0xff]
    %649 = vmatprep.subr.mxu0 0.0
    %650 = vmatpush1.msra.mxu0 %v633
    %651 = vmatprep.subr.mxu0 0.0
    %652 = vmatpush1.msra.mxu0 %v634
    %653 = vmatprep.subr.mxu0 0.0
    %654 = vmatpush1.msra.mxu0 %v635
    %655 = vmatprep.subr.mxu0 0.0
    %656 = vmatpush1.msra.mxu0 %v636
    %657 = vmatprep.subr.mxu0 0.0
    %658 = vmatpush1.msra.mxu0 %v637
    %659 = vmatprep.subr.mxu0 0.0
    %660 = vmatpush1.msra.mxu0 %v638
    %661 = vmatprep.subr.mxu0 0.0
    %662 = vmatpush1.msra.mxu0 %v639
    %663 = vmatprep.subr.mxu0 0.0
    %664 = vmatpush1.msra.mxu0 %v640
    %665 = vmatprep.subr.mxu0 0.0
    %666 = vmatpush1.msra.mxu0 %v641
    %667 = vmatprep.subr.mxu0 0.0
    %668 = vmatpush1.msra.mxu0 %v642
    %669 = vmatprep.subr.mxu0 0.0
    %670 = vmatpush1.msra.mxu0 %v643
    %671 = vmatprep.subr.mxu0 0.0
    %672 = vmatpush1.msra.mxu0 %v644
    %673 = vmatprep.subr.mxu0 0.0
    %674 = vmatpush1.msra.mxu0 %v645
    %675 = vmatprep.subr.mxu0 0.0
    %676 = vmatpush1.msra.mxu0 %v646
    %677 = vmatprep.subr.mxu0 0.0
    %678 = vmatpush1.msra.mxu0 %v647
    %679 = vmatprep.subr.mxu0 0.0
    %680 = vmatpush1.msra.mxu0 %v648
    %681 = vmatprep.subr.mxu0 0.0
    %682 = vmatpush1.msra.mxu0 0.0
    %683 = vmatprep.subr.mxu0 0.0
    %684 = vmatpush1.msra.mxu0 0.0
    %685 = vmatprep.subr.mxu0 0.0
    %686 = vmatpush1.msra.mxu0 0.0
    %687 = vmatprep.subr.mxu0 0.0
    %688 = vmatpush1.msra.mxu0 0.0
    %689 = vmatprep.subr.mxu0 0.0
    %690 = vmatpush1.msra.mxu0 0.0
    %691 = vmatprep.subr.mxu0 0.0
    %692 = vmatpush1.msra.mxu0 0.0
    %693 = vmatprep.subr.mxu0 0.0
    %694 = vmatpush1.msra.mxu0 0.0
    %695 = vmatprep.subr.mxu0 0.0
    %696 = vmatpush1.msra.mxu0 0.0
    %697 = vmatprep.subr.mxu0 0.0
    %698 = vmatpush1.msra.mxu0 0.0
    %699 = vmatprep.subr.mxu0 0.0
    %700 = vmatpush1.msra.mxu0 0.0
    %701 = vmatprep.subr.mxu0 0.0
    %702 = vmatpush1.msra.mxu0 0.0
    %703 = vmatprep.subr.mxu0 0.0
    %704 = vmatpush1.msra.mxu0 0.0
    %705 = vmatprep.subr.mxu0 0.0
    %706 = vmatpush1.msra.mxu0 0.0
    %707 = vmatprep.subr.mxu0 0.0
    %708 = vmatpush1.msra.mxu0 0.0
    %709 = vmatprep.subr.mxu0 0.0
    %710 = vmatpush1.msra.mxu0 0.0
    %711 = vmatprep.subr.mxu0 0.0
    %712 = vmatpush1.msra.mxu0 0.0
    %713 = vmatprep.mubr.f32.mxu0 0.0
    %714 = vmatmul.mubr.f32.gmra.mrb[0].mxu0 %v632
    %v715 = vpop.f32.mrb[0].mxu0
    %v716 = vadd.f32 %v416, %v715
    %v717 = vpop.f32.mrb[0].mxu0
    %718 = vdwg.mxu0
    %719 = vst [vmem:[%s7] sm:$0xff] %v716
    %v720 = vld [vmem:[#allocation2 + $0x18] sm:$0xff]
    %v721 = vld [vmem:[#allocation2 + $0x20] sm:$0xff]
    %v722 = vld [vmem:[#allocation2 + $0x28] sm:$0xff]
    %v723 = vld [vmem:[#allocation5] sm:$0xff]
    %v724 = vld [vmem:[#allocation5 + $0x8] sm:$0xff]
    %v725 = vld [vmem:[#allocation5 + $0x10] sm:$0xff]
    %v726 = vld [vmem:[#allocation5 + $0x18] sm:$0xff]
    %v727 = vld [vmem:[#allocation5 + $0x20] sm:$0xff]
    %v728 = vld [vmem:[#allocation5 + $0x28] sm:$0xff]
    %v729 = vld [vmem:[#allocation5 + $0x30] sm:$0xff]
    %v730 = vld [vmem:[#allocation5 + $0x38] sm:$0xff]
    %v731 = vld [vmem:[#allocation5 + $0x40] sm:$0xff]
    %v732 = vld [vmem:[#allocation5 + $0x48] sm:$0xff]
    %v733 = vld [vmem:[#allocation5 + $0x50] sm:$0xff]
    %v734 = vld [vmem:[#allocation5 + $0x58] sm:$0xff]
    %v735 = vld [vmem:[#allocation5 + $0x60] sm:$0xff]
    %v736 = vld [vmem:[#allocation5 + $0x68] sm:$0xff]
    %v737 = vld [vmem:[#allocation5 + $0x70] sm:$0xff]
    %v738 = vld [vmem:[#allocation5 + $0x78] sm:$0xff]
    %v739 = vld [vmem:[#allocation5 + $0x80] sm:$0xff]
    %v740 = vld [vmem:[#allocation5 + $0x88] sm:$0xff]
    %v741 = vld [vmem:[#allocation5 + $0x90] sm:$0xff]
    %v742 = vld [vmem:[#allocation5 + $0x98] sm:$0xff]
    %v743 = vld [vmem:[#allocation5 + $0xa0] sm:$0xff]
    %v744 = vld [vmem:[#allocation5 + $0xa8] sm:$0xff]
    %v745 = vld [vmem:[#allocation5 + $0xb0] sm:$0xff]
    %v746 = vld [vmem:[#allocation5 + $0xb8] sm:$0xff]
    %v747 = vld [vmem:[#allocation5 + $0xc0] sm:$0xff]
    %v748 = vld [vmem:[#allocation5 + $0xc8] sm:$0xff]
    %v749 = vld [vmem:[#allocation5 + $0xd0] sm:$0xff]
    %v750 = vld [vmem:[#allocation5 + $0xd8] sm:$0xff]
    %v751 = vld [vmem:[#allocation5 + $0xe0] sm:$0xff]
    %v752 = vld [vmem:[#allocation5 + $0xe8] sm:$0xff]
    %v753 = vld [vmem:[#allocation5 + $0xf0] sm:$0xff]
    %v754 = vld [vmem:[#allocation5 + $0xf8] sm:$0xff]
    %v755 = vld [vmem:[#allocation5 + $0x100] sm:$0xff]
    %v756 = vld [vmem:[#allocation5 + $0x108] sm:$0xff]
    %v757 = vld [vmem:[#allocation5 + $0x110] sm:$0xff]
    %v758 = vld [vmem:[#allocation5 + $0x118] sm:$0xff]
    %v759 = vld [vmem:[#allocation5 + $0x120] sm:$0xff]
    %v760 = vld [vmem:[#allocation5 + $0x128] sm:$0xff]
    %v761 = vld [vmem:[#allocation5 + $0x130] sm:$0xff]
    %v762 = vld [vmem:[#allocation5 + $0x138] sm:$0xff]
    %v763 = vld [vmem:[#allocation5 + $0x140] sm:$0xff]
    %v764 = vld [vmem:[#allocation5 + $0x148] sm:$0xff]
    %v765 = vld [vmem:[#allocation5 + $0x150] sm:$0xff]
    %v766 = vld [vmem:[#allocation5 + $0x158] sm:$0xff]
    %v767 = vld [vmem:[#allocation5 + $0x160] sm:$0xff]
    %v768 = vld [vmem:[#allocation5 + $0x168] sm:$0xff]
    %v769 = vld [vmem:[#allocation5 + $0x170] sm:$0xff]
    %v770 = vld [vmem:[#allocation5 + $0x178] sm:$0xff]
    %771 = vmatprep.subr.mxu0 %v724
    %772 = vmatpush1.msra.mxu0 %v723
    %773 = vmatprep.subr.mxu0 %v727
    %774 = vmatpush1.msra.mxu0 %v726
    %775 = vmatprep.subr.mxu0 %v730
    %776 = vmatpush1.msra.mxu0 %v729
    %777 = vmatprep.subr.mxu0 %v733
    %778 = vmatpush1.msra.mxu0 %v732
    %779 = vmatprep.subr.mxu0 %v736
    %780 = vmatpush1.msra.mxu0 %v735
    %781 = vmatprep.subr.mxu0 %v739
    %782 = vmatpush1.msra.mxu0 %v738
    %783 = vmatprep.subr.mxu0 %v742
    %784 = vmatpush1.msra.mxu0 %v741
    %785 = vmatprep.subr.mxu0 %v745
    %786 = vmatpush1.msra.mxu0 %v744
    %787 = vmatprep.subr.mxu0 %v748
    %788 = vmatpush1.msra.mxu0 %v747
    %789 = vmatprep.subr.mxu0 %v751
    %790 = vmatpush1.msra.mxu0 %v750
    %791 = vmatprep.subr.mxu0 %v754
    %792 = vmatpush1.msra.mxu0 %v753
    %793 = vmatprep.subr.mxu0 %v757
    %794 = vmatpush1.msra.mxu0 %v756
    %795 = vmatprep.subr.mxu0 %v760
    %796 = vmatpush1.msra.mxu0 %v759
    %797 = vmatprep.subr.mxu0 %v763
    %798 = vmatpush1.msra.mxu0 %v762
    %799 = vmatprep.subr.mxu0 %v766
    %800 = vmatpush1.msra.mxu0 %v765
    %801 = vmatprep.subr.mxu0 %v769
    %802 = vmatpush1.msra.mxu0 %v768
    %803 = vmatprep.subr.mxu0 0.0
    %804 = vmatpush1.msra.mxu0 0.0
    %805 = vmatprep.subr.mxu0 0.0
    %806 = vmatpush1.msra.mxu0 0.0
    %807 = vmatprep.subr.mxu0 0.0
    %808 = vmatpush1.msra.mxu0 0.0
    %809 = vmatprep.subr.mxu0 0.0
    %810 = vmatpush1.msra.mxu0 0.0
    %811 = vmatprep.subr.mxu0 0.0
    %812 = vmatpush1.msra.mxu0 0.0
    %813 = vmatprep.subr.mxu0 0.0
    %814 = vmatpush1.msra.mxu0 0.0
    %815 = vmatprep.subr.mxu0 0.0
    %816 = vmatpush1.msra.mxu0 0.0
    %817 = vmatprep.subr.mxu0 0.0
    %818 = vmatpush1.msra.mxu0 0.0
    %819 = vmatprep.subr.mxu0 0.0
    %820 = vmatpush1.msra.mxu0 0.0
    %821 = vmatprep.subr.mxu0 0.0
    %822 = vmatpush1.msra.mxu0 0.0
    %823 = vmatprep.subr.mxu0 0.0
    %824 = vmatpush1.msra.mxu0 0.0
    %825 = vmatprep.subr.mxu0 0.0
    %826 = vmatpush1.msra.mxu0 0.0
    %827 = vmatprep.subr.mxu0 0.0
    %828 = vmatpush1.msra.mxu0 0.0
    %829 = vmatprep.subr.mxu0 0.0
    %830 = vmatpush1.msra.mxu0 0.0
    %831 = vmatprep.subr.mxu0 0.0
    %832 = vmatpush1.msra.mxu0 0.0
    %833 = vmatprep.subr.mxu0 0.0
    %834 = vmatpush1.msra.mxu0 0.0
    %835 = vmatprep.mubr.f32.mxu0 0.0
    %836 = vmatmul.mubr.f32.gmra.mrb[0].mxu0 %v632
    %v837 = vpop.f32.mrb[0].mxu0
    %v838 = vadd.f32 0.0, %v837
    %v839 = vpop.f32.mrb[0].mxu0
    %v840 = vadd.f32 0.0, %v839
    %841 = vdwg.mxu0
    %842 = vmatprep.subr.mxu0 0.0
    %843 = vmatpush1.msra.mxu0 %v725
    %844 = vmatprep.subr.mxu0 0.0
    %845 = vmatpush1.msra.mxu0 %v728
    %846 = vmatprep.subr.mxu0 0.0
    %847 = vmatpush1.msra.mxu0 %v731
    %848 = vmatprep.subr.mxu0 0.0
    %849 = vmatpush1.msra.mxu0 %v734
    %850 = vmatprep.subr.mxu0 0.0
    %851 = vmatpush1.msra.mxu0 %v737
    %852 = vmatprep.subr.mxu0 0.0
    %853 = vmatpush1.msra.mxu0 %v740
    %854 = vmatprep.subr.mxu0 0.0
    %855 = vmatpush1.msra.mxu0 %v743
    %856 = vmatprep.subr.mxu0 0.0
    %857 = vmatpush1.msra.mxu0 %v746
    %858 = vmatprep.subr.mxu0 0.0
    %859 = vmatpush1.msra.mxu0 %v749
    %860 = vmatprep.subr.mxu0 0.0
    %861 = vmatpush1.msra.mxu0 %v752
    %862 = vmatprep.subr.mxu0 0.0
    %863 = vmatpush1.msra.mxu0 %v755
    %864 = vmatprep.subr.mxu0 0.0
    %865 = vmatpush1.msra.mxu0 %v758
    %866 = vmatprep.subr.mxu0 0.0
    %867 = vmatpush1.msra.mxu0 %v761
    %868 = vmatprep.subr.mxu0 0.0
    %869 = vmatpush1.msra.mxu0 %v764
    %870 = vmatprep.subr.mxu0 0.0
    %871 = vmatpush1.msra.mxu0 %v767
    %872 = vmatprep.subr.mxu0 0.0
    %873 = vmatpush1.msra.mxu0 %v770
    %874 = vmatprep.subr.mxu0 0.0
    %875 = vmatpush1.msra.mxu0 0.0
    %876 = vmatprep.subr.mxu0 0.0
    %877 = vmatpush1.msra.mxu0 0.0
    %878 = vmatprep.subr.mxu0 0.0
    %879 = vmatpush1.msra.mxu0 0.0
    %880 = vmatprep.subr.mxu0 0.0
    %881 = vmatpush1.msra.mxu0 0.0
    %882 = vmatprep.subr.mxu0 0.0
    %883 = vmatpush1.msra.mxu0 0.0
    %884 = vmatprep.subr.mxu0 0.0
    %885 = vmatpush1.msra.mxu0 0.0
    %886 = vmatprep.subr.mxu0 0.0
    %887 = vmatpush1.msra.mxu0 0.0
    %888 = vmatprep.subr.mxu0 0.0
    %889 = vmatpush1.msra.mxu0 0.0
    %890 = vmatprep.subr.mxu0 0.0
    %891 = vmatpush1.msra.mxu0 0.0
    %892 = vmatprep.subr.mxu0 0.0
    %893 = vmatpush1.msra.mxu0 0.0
    %894 = vmatprep.subr.mxu0 0.0
    %895 = vmatpush1.msra.mxu0 0.0
    %896 = vmatprep.subr.mxu0 0.0
    %897 = vmatpush1.msra.mxu0 0.0
    %898 = vmatprep.subr.mxu0 0.0
    %899 = vmatpush1.msra.mxu0 0.0
    %900 = vmatprep.subr.mxu0 0.0
    %901 = vmatpush1.msra.mxu0 0.0
    %902 = vmatprep.subr.mxu0 0.0
    %903 = vmatpush1.msra.mxu0 0.0
    %904 = vmatprep.subr.mxu0 0.0
    %905 = vmatpush1.msra.mxu0 0.0
    %906 = vmatprep.mubr.f32.mxu0 0.0
    %907 = vmatmul.mubr.f32.gmra.mrb[0].mxu0 %v632
    %v908 = vpop.f32.mrb[0].mxu0
    %v909 = vadd.f32 0.0, %v908
    %v910 = vpop.f32.mrb[0].mxu0
    %911 = vdwg.mxu0
    %v912 = vadd.f32 %v720, %v838
    %v913 = vxor.u32 %v912, 2147483648
    %v914 = vmul.f32 %v913, 1.442695
    %v915 = vpow.pop %v914
    %v916 = vadd.f32 %v915, 1.0
    %v917 = vrcp.pop %v916
    %v918 = vmul.f32 1.0, %v917
    %v919 = vadd.f32 %v721, %v840
    %v920 = vxor.u32 %v919, 2147483648
    %v921 = vmul.f32 %v920, 1.442695
    %v922 = vpow.pop %v921
    %v923 = vadd.f32 %v922, 1.0
    %v924 = vrcp.pop %v923
    %v925 = vmul.f32 1.0, %v924
    %v926 = vadd.f32 %v909, %v409
    %v927 = vmul.f32 %v918, %v926
    %v928 = vadd.f32 %v722, %v927
    %v929 = vtanh.pop %v928
    %v930 = vsub.f32 1.0, %v925
    %v931 = vmul.f32 %v930, %v929
    %v932 = vmul.f32 %v925, %v632
    %v933 = vadd.f32 %v931, %v932
    %v934 = vld [vmem:[%s5] sm:$0xff]
    %v935 = vld [vmem:[%s5 + $0x8] sm:$0xff]
    %v936 = vld [vmem:[%s5 + $0x10] sm:$0xff]
    %v937 = vld [vmem:[%s5 + $0x18] sm:$0xff]
    %v938 = vld [vmem:[%s5 + $0x20] sm:$0xff]
    %v939 = vld [vmem:[%s5 + $0x28] sm:$0xff]
    %v940 = vld [vmem:[%s5 + $0x30] sm:$0xff]
    %v941 = vld [vmem:[%s5 + $0x38] sm:$0xff]
    %v942 = vld [vmem:[%s5 + $0x40] sm:$0xff]
    %v943 = vld [vmem:[%s5 + $0x48] sm:$0xff]
    %v944 = vld [vmem:[%s5 + $0x50] sm:$0xff]
    %v945 = vld [vmem:[%s5 + $0x58] sm:$0xff]
    %v946 = vld [vmem:[%s5 + $0x60] sm:$0xff]
    %v947 = vld [vmem:[%s5 + $0x68] sm:$0xff]
    %v948 = vld [vmem:[%s5 + $0x70] sm:$0xff]
    %v949 = vld [vmem:[%s5 + $0x78] sm:$0xff]
    %950 = vmatprep.subr.mxu0 0.0
    %951 = vmatpush1.msra.mxu0 %v934
    %952 = vmatprep.subr.mxu0 0.0
    %953 = vmatpush1.msra.mxu0 %v935
    %954 = vmatprep.subr.mxu0 0.0
    %955 = vmatpush1.msra.mxu0 %v936
    %956 = vmatprep.subr.mxu0 0.0
    %957 = vmatpush1.msra.mxu0 %v937
    %958 = vmatprep.subr.mxu0 0.0
    %959 = vmatpush1.msra.mxu0 %v938
    %960 = vmatprep.subr.mxu0 0.0
    %961 = vmatpush1.msra.mxu0 %v939
    %962 = vmatprep.subr.mxu0 0.0
    %963 = vmatpush1.msra.mxu0 %v940
    %964 = vmatprep.subr.mxu0 0.0
    %965 = vmatpush1.msra.mxu0 %v941
    %966 = vmatprep.subr.mxu0 0.0
    %967 = vmatpush1.msra.mxu0 %v942
    %968 = vmatprep.subr.mxu0 0.0
    %969 = vmatpush1.msra.mxu0 %v943
    %970 = vmatprep.subr.mxu0 0.0
    %971 = vmatpush1.msra.mxu0 %v944
    %972 = vmatprep.subr.mxu0 0.0
    %973 = vmatpush1.msra.mxu0 %v945
    %974 = vmatprep.subr.mxu0 0.0
    %975 = vmatpush1.msra.mxu0 %v946
    %976 = vmatprep.subr.mxu0 0.0
    %977 = vmatpush1.msra.mxu0 %v947
    %978 = vmatprep.subr.mxu0 0.0
    %979 = vmatpush1.msra.mxu0 %v948
    %980 = vmatprep.subr.mxu0 0.0
    %981 = vmatpush1.msra.mxu0 %v949
    %982 = vmatprep.subr.mxu0 0.0
    %983 = vmatpush1.msra.mxu0 0.0
    %984 = vmatprep.subr.mxu0 0.0
    %985 = vmatpush1.msra.mxu0 0.0
    %986 = vmatprep.subr.mxu0 0.0
    %987 = vmatpush1.msra.mxu0 0.0
    %988 = vmatprep.subr.mxu0 0.0
    %989 = vmatpush1.msra.mxu0 0.0
    %990 = vmatprep.subr.mxu0 0.0
    %991 = vmatpush1.msra.mxu0 0.0
    %992 = vmatprep.subr.mxu0 0.0
    %993 = vmatpush1.msra.mxu0 0.0
    %994 = vmatprep.subr.mxu0 0.0
    %995 = vmatpush1.msra.mxu0 0.0
    %996 = vmatprep.subr.mxu0 0.0
    %997 = vmatpush1.msra.mxu0 0.0
    %998 = vmatprep.subr.mxu0 0.0
    %999 = vmatpush1.msra.mxu0 0.0
    %1000 = vmatprep.subr.mxu0 0.0
    %1001 = vmatpush1.msra.mxu0 0.0
    %1002 = vmatprep.subr.mxu0 0.0
    %1003 = vmatpush1.msra.mxu0 0.0
    %1004 = vmatprep.subr.mxu0 0.0
    %1005 = vmatpush1.msra.mxu0 0.0
    %1006 = vmatprep.subr.mxu0 0.0
    %1007 = vmatpush1.msra.mxu0 0.0
    %1008 = vmatprep.subr.mxu0 0.0
    %1009 = vmatpush1.msra.mxu0 0.0
    %1010 = vmatprep.subr.mxu0 0.0
    %1011 = vmatpush1.msra.mxu0 0.0
    %1012 = vmatprep.subr.mxu0 0.0
    %1013 = vmatpush1.msra.mxu0 0.0
    %1014 = vmatprep.mubr.f32.mxu0 0.0
    %1015 = vmatmul.mubr.f32.gmra.mrb[0].mxu0 %v933
    %v1016 = vpop.f32.mrb[0].mxu0
    %v1017 = vadd.f32 %v416, %v1016
    %v1018 = vpop.f32.mrb[0].mxu0
    %1019 = vdwg.mxu0
    %1020 = vst [vmem:[%s7 + $0x8] sm:$0xff] %v1017
    %v1021 = vld [vmem:[#allocation2 + $0x30] sm:$0xff]
    %v1022 = vld [vmem:[#allocation2 + $0x38] sm:$0xff]
    %v1023 = vld [vmem:[#allocation2 + $0x40] sm:$0xff]
    %v1024 = vld [vmem:[#allocation5] sm:$0xff]
    %v1025 = vld [vmem:[#allocation5 + $0x8] sm:$0xff]
    %v1026 = vld [vmem:[#allocation5 + $0x10] sm:$0xff]
    %v1027 = vld [vmem:[#allocation5 + $0x18] sm:$0xff]
    %v1028 = vld [vmem:[#allocation5 + $0x20] sm:$0xff]
    %v1029 = vld [vmem:[#allocation5 + $0x28] sm:$0xff]
    %v1030 = vld [vmem:[#allocation5 + $0x30] sm:$0xff]
    %v1031 = vld [vmem:[#allocation5 + $0x38] sm:$0xff]
    %v1032 = vld [vmem:[#allocation5 + $0x40] sm:$0xff]
    %v1033 = vld [vmem:[#allocation5 + $0x48] sm:$0xff]
    %v1034 = vld [vmem:[#allocation5 + $0x50] sm:$0xff]
    %v1035 = vld [vmem:[#allocation5 + $0x58] sm:$0xff]
    %v1036 = vld [vmem:[#allocation5 + $0x60] sm:$0xff]
    %v1037 = vld [vmem:[#allocation5 + $0x68] sm:$0xff]
    %v1038 = vld [vmem:[#allocation5 + $0x70] sm:$0xff]
    %v1039 = vld [vmem:[#allocation5 + $0x78] sm:$0xff]
    %v1040 = vld [vmem:[#allocation5 + $0x80] sm:$0xff]
    %v1041 = vld [vmem:[#allocation5 + $0x88] sm:$0xff]
    %v1042 = vld [vmem:[#allocation5 + $0x90] sm:$0xff]
    %v1043 = vld [vmem:[#allocation5 + $0x98] sm:$0xff]
    %v1044 = vld [vmem:[#allocation5 + $0xa0] sm:$0xff]
    %v1045 = vld [vmem:[#allocation5 + $0xa8] sm:$0xff]
    %v1046 = vld [vmem:[#allocation5 + $0xb0] sm:$0xff]
    %v1047 = vld [vmem:[#allocation5 + $0xb8] sm:$0xff]
    %v1048 = vld [vmem:[#allocation5 + $0xc0] sm:$0xff]
    %v1049 = vld [vmem:[#allocation5 + $0xc8] sm:$0xff]
    %v1050 = vld [vmem:[#allocation5 + $0xd0] sm:$0xff]
    %v1051 = vld [vmem:[#allocation5 + $0xd8] sm:$0xff]
    %v1052 = vld [vmem:[#allocation5 + $0xe0] sm:$0xff]
    %v1053 = vld [vmem:[#allocation5 + $0xe8] sm:$0xff]
    %v1054 = vld [vmem:[#allocation5 + $0xf0] sm:$0xff]
    %v1055 = vld [vmem:[#allocation5 + $0xf8] sm:$0xff]
    %v1056 = vld [vmem:[#allocation5 + $0x100] sm:$0xff]
    %v1057 = vld [vmem:[#allocation5 + $0x108] sm:$0xff]
    %v1058 = vld [vmem:[#allocation5 + $0x110] sm:$0xff]
    %v1059 = vld [vmem:[#allocation5 + $0x118] sm:$0xff]
    %v1060 = vld [vmem:[#allocation5 + $0x120] sm:$0xff]
    %v1061 = vld [vmem:[#allocation5 + $0x128] sm:$0xff]
    %v1062 = vld [vmem:[#allocation5 + $0x130] sm:$0xff]
    %v1063 = vld [vmem:[#allocation5 + $0x138] sm:$0xff]
    %v1064 = vld [vmem:[#allocation5 + $0x140] sm:$0xff]
    %v1065 = vld [vmem:[#allocation5 + $0x148] sm:$0xff]
    %v1066 = vld [vmem:[#allocation5 + $0x150] sm:$0xff]
    %v1067 = vld [vmem:[#allocation5 + $0x158] sm:$0xff]
    %v1068 = vld [vmem:[#allocation5 + $0x160] sm:$0xff]
    %v1069 = vld [vmem:[#allocation5 + $0x168] sm:$0xff]
    %v1070 = vld [vmem:[#allocation5 + $0x170] sm:$0xff]
    %v1071 = vld [vmem:[#allocation5 + $0x178] sm:$0xff]
    %1072 = vmatprep.subr.mxu0 %v1025
    %1073 = vmatpush1.msra.mxu0 %v1024
    %1074 = vmatprep.subr.mxu0 %v1028
    %1075 = vmatpush1.msra.mxu0 %v1027
    %1076 = vmatprep.subr.mxu0 %v1031
    %1077 = vmatpush1.msra.mxu0 %v1030
    %1078 = vmatprep.subr.mxu0 %v1034
    %1079 = vmatpush1.msra.mxu0 %v1033
    %1080 = vmatprep.subr.mxu0 %v1037
    %1081 = vmatpush1.msra.mxu0 %v1036
    %1082 = vmatprep.subr.mxu0 %v1040
    %1083 = vmatpush1.msra.mxu0 %v1039
    %1084 = vmatprep.subr.mxu0 %v1043
    %1085 = vmatpush1.msra.mxu0 %v1042
    %1086 = vmatprep.subr.mxu0 %v1046
    %1087 = vmatpush1.msra.mxu0 %v1045
    %1088 = vmatprep.subr.mxu0 %v1049
    %1089 = vmatpush1.msra.mxu0 %v1048
    %1090 = vmatprep.subr.mxu0 %v1052
    %1091 = vmatpush1.msra.mxu0 %v1051
    %1092 = vmatprep.subr.mxu0 %v1055
    %1093 = vmatpush1.msra.mxu0 %v1054
    %1094 = vmatprep.subr.mxu0 %v1058
    %1095 = vmatpush1.msra.mxu0 %v1057
    %1096 = vmatprep.subr.mxu0 %v1061
    %1097 = vmatpush1.msra.mxu0 %v1060
    %1098 = vmatprep.subr.mxu0 %v1064
    %1099 = vmatpush1.msra.mxu0 %v1063
    %1100 = vmatprep.subr.mxu0 %v1067
    %1101 = vmatpush1.msra.mxu0 %v1066
    %1102 = vmatprep.subr.mxu0 %v1070
    %1103 = vmatpush1.msra.mxu0 %v1069
    %1104 = vmatprep.subr.mxu0 0.0
    %1105 = vmatpush1.msra.mxu0 0.0
    %1106 = vmatprep.subr.mxu0 0.0
    %1107 = vmatpush1.msra.mxu0 0.0
    %1108 = vmatprep.subr.mxu0 0.0
    %1109 = vmatpush1.msra.mxu0 0.0
    %1110 = vmatprep.subr.mxu0 0.0
    %1111 = vmatpush1.msra.mxu0 0.0
    %1112 = vmatprep.subr.mxu0 0.0
    %1113 = vmatpush1.msra.mxu0 0.0
    %1114 = vmatprep.subr.mxu0 0.0
    %1115 = vmatpush1.msra.mxu0 0.0
    %1116 = vmatprep.subr.mxu0 0.0
    %1117 = vmatpush1.msra.mxu0 0.0
    %1118 = vmatprep.subr.mxu0 0.0
    %1119 = vmatpush1.msra.mxu0 0.0
    %1120 = vmatprep.subr.mxu0 0.0
    %1121 = vmatpush1.msra.mxu0 0.0
    %1122 = vmatprep.subr.mxu0 0.0
    %1123 = vmatpush1.msra.mxu0 0.0
    %1124 = vmatprep.subr.mxu0 0.0
    %1125 = vmatpush1.msra.mxu0 0.0
    %1126 = vmatprep.subr.mxu0 0.0
    %1127 = vmatpush1.msra.mxu0 0.0
    %1128 = vmatprep.subr.mxu0 0.0
    %1129 = vmatpush1.msra.mxu0 0.0
    %1130 = vmatprep.subr.mxu0 0.0
    %1131 = vmatpush1.msra.mxu0 0.0
    %1132 = vmatprep.subr.mxu0 0.0
    %1133 = vmatpush1.msra.mxu0 0.0
    %1134 = vmatprep.subr.mxu0 0.0
    %1135 = vmatpush1.msra.mxu0 0.0
    %1136 = vmatprep.mubr.f32.mxu0 0.0
    %1137 = vmatmul.mubr.f32.gmra.mrb[0].mxu0 %v933
    %v1138 = vpop.f32.mrb[0].mxu0
    %v1139 = vadd.f32 0.0, %v1138
    %v1140 = vpop.f32.mrb[0].mxu0
    %v1141 = vadd.f32 0.0, %v1140
    %1142 = vdwg.mxu0
    %1143 = vmatprep.subr.mxu0 0.0
    %1144 = vmatpush1.msra.mxu0 %v1026
    %1145 = vmatprep.subr.mxu0 0.0
    %1146 = vmatpush1.msra.mxu0 %v1029
    %1147 = vmatprep.subr.mxu0 0.0
    %1148 = vmatpush1.msra.mxu0 %v1032
    %1149 = vmatprep.subr.mxu0 0.0
    %1150 = vmatpush1.msra.mxu0 %v1035
    %1151 = vmatprep.subr.mxu0 0.0
    %1152 = vmatpush1.msra.mxu0 %v1038
    %1153 = vmatprep.subr.mxu0 0.0
    %1154 = vmatpush1.msra.mxu0 %v1041
    %1155 = vmatprep.subr.mxu0 0.0
    %1156 = vmatpush1.msra.mxu0 %v1044
    %1157 = vmatprep.subr.mxu0 0.0
    %1158 = vmatpush1.msra.mxu0 %v1047
    %1159 = vmatprep.subr.mxu0 0.0
    %1160 = vmatpush1.msra.mxu0 %v1050
    %1161 = vmatprep.subr.mxu0 0.0
    %1162 = vmatpush1.msra.mxu0 %v1053
    %1163 = vmatprep.subr.mxu0 0.0
    %1164 = vmatpush1.msra.mxu0 %v1056
    %1165 = vmatprep.subr.mxu0 0.0
    %1166 = vmatpush1.msra.mxu0 %v1059
    %1167 = vmatprep.subr.mxu0 0.0
    %1168 = vmatpush1.msra.mxu0 %v1062
    %1169 = vmatprep.subr.mxu0 0.0
    %1170 = vmatpush1.msra.mxu0 %v1065
    %1171 = vmatprep.subr.mxu0 0.0
    %1172 = vmatpush1.msra.mxu0 %v1068
    %1173 = vmatprep.subr.mxu0 0.0
    %1174 = vmatpush1.msra.mxu0 %v1071
    %1175 = vmatprep.subr.mxu0 0.0
    %1176 = vmatpush1.msra.mxu0 0.0
    %1177 = vmatprep.subr.mxu0 0.0
    %1178 = vmatpush1.msra.mxu0 0.0
    %1179 = vmatprep.subr.mxu0 0.0
    %1180 = vmatpush1.msra.mxu0 0.0
    %1181 = vmatprep.subr.mxu0 0.0
    %1182 = vmatpush1.msra.mxu0 0.0
    %1183 = vmatprep.subr.mxu0 0.0
    %1184 = vmatpush1.msra.mxu0 0.0
    %1185 = vmatprep.subr.mxu0 0.0
    %1186 = vmatpush1.msra.mxu0 0.0
    %1187 = vmatprep.subr.mxu0 0.0
    %1188 = vmatpush1.msra.mxu0 0.0
    %1189 = vmatprep.subr.mxu0 0.0
    %1190 = vmatpush1.msra.mxu0 0.0
    %1191 = vmatprep.subr.mxu0 0.0
    %1192 = vmatpush1.msra.mxu0 0.0
    %1193 = vmatprep.subr.mxu0 0.0
    %1194 = vmatpush1.msra.mxu0 0.0
    %1195 = vmatprep.subr.mxu0 0.0
    %1196 = vmatpush1.msra.mxu0 0.0
    %1197 = vmatprep.subr.mxu0 0.0
    %1198 = vmatpush1.msra.mxu0 0.0
    %1199 = vmatprep.subr.mxu0 0.0
    %1200 = vmatpush1.msra.mxu0 0.0
    %1201 = vmatprep.subr.mxu0 0.0
    %1202 = vmatpush1.msra.mxu0 0.0
    %1203 = vmatprep.subr.mxu0 0.0
    %1204 = vmatpush1.msra.mxu0 0.0
    %1205 = vmatprep.subr.mxu0 0.0
    %1206 = vmatpush1.msra.mxu0 0.0
    %1207 = vmatprep.mubr.f32.mxu0 0.0
    %1208 = vmatmul.mubr.f32.gmra.mrb[0].mxu0 %v933
    %v1209 = vpop.f32.mrb[0].mxu0
    %v1210 = vadd.f32 0.0, %v1209
    %v1211 = vpop.f32.mrb[0].mxu0
    %1212 = vdwg.mxu0
    %v1213 = vadd.f32 %v1021, %v1139
    %v1214 = vxor.u32 %v1213, 2147483648
    %v1215 = vmul.f32 %v1214, 1.442695
    %v1216 = vpow.pop %v1215
    %v1217 = vadd.f32 %v1216, 1.0
    %v1218 = vrcp.pop %v1217
    %v1219 = vmul.f32 1.0, %v1218
    %v1220 = vadd.f32 %v1022, %v1141
    %v1221 = vxor.u32 %v1220, 2147483648
    %v1222 = vmul.f32 %v1221, 1.442695
    %v1223 = vpow.pop %v1222
    %v1224 = vadd.f32 %v1223, 1.0
    %v1225 = vrcp.pop %v1224
    %v1226 = vmul.f32 1.0, %v1225
    %v1227 = vadd.f32 %v1210, %v409
    %v1228 = vmul.f32 %v1219, %v1227
    %v1229 = vadd.f32 %v1023, %v1228
    %v1230 = vtanh.pop %v1229
    %v1231 = vsub.f32 1.0, %v1226
    %v1232 = vmul.f32 %v1231, %v1230
    %v1233 = vmul.f32 %v1226, %v933
    %v1234 = vadd.f32 %v1232, %v1233
    %v1235 = vld [vmem:[%s5] sm:$0xff]
    %v1236 = vld [vmem:[%s5 + $0x8] sm:$0xff]
    %v1237 = vld [vmem:[%s5 + $0x10] sm:$0xff]
    %v1238 = vld [vmem:[%s5 + $0x18] sm:$0xff]
    %v1239 = vld [vmem:[%s5 + $0x20] sm:$0xff]
    %v1240 = vld [vmem:[%s5 + $0x28] sm:$0xff]
    %v1241 = vld [vmem:[%s5 + $0x30] sm:$0xff]
    %v1242 = vld [vmem:[%s5 + $0x38] sm:$0xff]
    %v1243 = vld [vmem:[%s5 + $0x40] sm:$0xff]
    %v1244 = vld [vmem:[%s5 + $0x48] sm:$0xff]
    %v1245 = vld [vmem:[%s5 + $0x50] sm:$0xff]
    %v1246 = vld [vmem:[%s5 + $0x58] sm:$0xff]
    %v1247 = vld [vmem:[%s5 + $0x60] sm:$0xff]
    %v1248 = vld [vmem:[%s5 + $0x68] sm:$0xff]
    %v1249 = vld [vmem:[%s5 + $0x70] sm:$0xff]
    %v1250 = vld [vmem:[%s5 + $0x78] sm:$0xff]
    %1251 = vmatprep.subr.mxu0 0.0
    %1252 = vmatpush1.msra.mxu0 %v1235
    %1253 = vmatprep.subr.mxu0 0.0
    %1254 = vmatpush1.msra.mxu0 %v1236
    %1255 = vmatprep.subr.mxu0 0.0
    %1256 = vmatpush1.msra.mxu0 %v1237
    %1257 = vmatprep.subr.mxu0 0.0
    %1258 = vmatpush1.msra.mxu0 %v1238
    %1259 = vmatprep.subr.mxu0 0.0
    %1260 = vmatpush1.msra.mxu0 %v1239
    %1261 = vmatprep.subr.mxu0 0.0
    %1262 = vmatpush1.msra.mxu0 %v1240
    %1263 = vmatprep.subr.mxu0 0.0
    %1264 = vmatpush1.msra.mxu0 %v1241
    %1265 = vmatprep.subr.mxu0 0.0
    %1266 = vmatpush1.msra.mxu0 %v1242
    %1267 = vmatprep.subr.mxu0 0.0
    %1268 = vmatpush1.msra.mxu0 %v1243
    %1269 = vmatprep.subr.mxu0 0.0
    %1270 = vmatpush1.msra.mxu0 %v1244
    %1271 = vmatprep.subr.mxu0 0.0
    %1272 = vmatpush1.msra.mxu0 %v1245
    %1273 = vmatprep.subr.mxu0 0.0
    %1274 = vmatpush1.msra.mxu0 %v1246
    %1275 = vmatprep.subr.mxu0 0.0
    %1276 = vmatpush1.msra.mxu0 %v1247
    %1277 = vmatprep.subr.mxu0 0.0
    %1278 = vmatpush1.msra.mxu0 %v1248
    %1279 = vmatprep.subr.mxu0 0.0
    %1280 = vmatpush1.msra.mxu0 %v1249
    %1281 = vmatprep.subr.mxu0 0.0
    %1282 = vmatpush1.msra.mxu0 %v1250
    %1283 = vmatprep.subr.mxu0 0.0
    %1284 = vmatpush1.msra.mxu0 0.0
    %1285 = vmatprep.subr.mxu0 0.0
    %1286 = vmatpush1.msra.mxu0 0.0
    %1287 = vmatprep.subr.mxu0 0.0
    %1288 = vmatpush1.msra.mxu0 0.0
    %1289 = vmatprep.subr.mxu0 0.0
    %1290 = vmatpush1.msra.mxu0 0.0
    %1291 = vmatprep.subr.mxu0 0.0
    %1292 = vmatpush1.msra.mxu0 0.0
    %1293 = vmatprep.subr.mxu0 0.0
    %1294 = vmatpush1.msra.mxu0 0.0
    %1295 = vmatprep.subr.mxu0 0.0
    %1296 = vmatpush1.msra.mxu0 0.0
    %1297 = vmatprep.subr.mxu0 0.0
    %1298 = vmatpush1.msra.mxu0 0.0
    %1299 = vmatprep.subr.mxu0 0.0
    %1300 = vmatpush1.msra.mxu0 0.0
    %1301 = vmatprep.subr.mxu0 0.0
    %1302 = vmatpush1.msra.mxu0 0.0
    %1303 = vmatprep.subr.mxu0 0.0
    %1304 = vmatpush1.msra.mxu0 0.0
    %1305 = vmatprep.subr.mxu0 0.0
    %1306 = vmatpush1.msra.mxu0 0.0
    %1307 = vmatprep.subr.mxu0 0.0
    %1308 = vmatpush1.msra.mxu0 0.0
    %1309 = vmatprep.subr.mxu0 0.0
    %1310 = vmatpush1.msra.mxu0 0.0
    %1311 = vmatprep.subr.mxu0 0.0
    %1312 = vmatpush1.msra.mxu0 0.0
    %1313 = vmatprep.subr.mxu0 0.0
    %1314 = vmatpush1.msra.mxu0 0.0
    %1315 = vmatprep.mubr.f32.mxu0 0.0
    %1316 = vmatmul.mubr.f32.gmra.mrb[0].mxu0 %v1234
    %v1317 = vpop.f32.mrb[0].mxu0
    %v1318 = vadd.f32 %v416, %v1317
    %v1319 = vpop.f32.mrb[0].mxu0
    %1320 = vdwg.mxu0
    %1321 = vst [vmem:[%s7 + $0x10] sm:$0xff] %v1318
    %v1322 = vld [vmem:[#allocation2 + $0x48] sm:$0xff]
    %v1323 = vld [vmem:[#allocation2 + $0x50] sm:$0xff]
    %v1324 = vld [vmem:[#allocation2 + $0x58] sm:$0xff]
    %v1325 = vld [vmem:[#allocation5] sm:$0xff]
    %v1326 = vld [vmem:[#allocation5 + $0x8] sm:$0xff]
    %v1327 = vld [vmem:[#allocation5 + $0x10] sm:$0xff]
    %v1328 = vld [vmem:[#allocation5 + $0x18] sm:$0xff]
    %v1329 = vld [vmem:[#allocation5 + $0x20] sm:$0xff]
    %v1330 = vld [vmem:[#allocation5 + $0x28] sm:$0xff]
    %v1331 = vld [vmem:[#allocation5 + $0x30] sm:$0xff]
    %v1332 = vld [vmem:[#allocation5 + $0x38] sm:$0xff]
    %v1333 = vld [vmem:[#allocation5 + $0x40] sm:$0xff]
    %v1334 = vld [vmem:[#allocation5 + $0x48] sm:$0xff]
    %v1335 = vld [vmem:[#allocation5 + $0x50] sm:$0xff]
    %v1336 = vld [vmem:[#allocation5 + $0x58] sm:$0xff]
    %v1337 = vld [vmem:[#allocation5 + $0x60] sm:$0xff]
    %v1338 = vld [vmem:[#allocation5 + $0x68] sm:$0xff]
    %v1339 = vld [vmem:[#allocation5 + $0x70] sm:$0xff]
    %v1340 = vld [vmem:[#allocation5 + $0x78] sm:$0xff]
    %v1341 = vld [vmem:[#allocation5 + $0x80] sm:$0xff]
    %v1342 = vld [vmem:[#allocation5 + $0x88] sm:$0xff]
    %v1343 = vld [vmem:[#allocation5 + $0x90] sm:$0xff]
    %v1344 = vld [vmem:[#allocation5 + $0x98] sm:$0xff]
    %v1345 = vld [vmem:[#allocation5 + $0xa0] sm:$0xff]
    %v1346 = vld [vmem:[#allocation5 + $0xa8] sm:$0xff]
    %v1347 = vld [vmem:[#allocation5 + $0xb0] sm:$0xff]
    %v1348 = vld [vmem:[#allocation5 + $0xb8] sm:$0xff]
    %v1349 = vld [vmem:[#allocation5 + $0xc0] sm:$0xff]
    %v1350 = vld [vmem:[#allocation5 + $0xc8] sm:$0xff]
    %v1351 = vld [vmem:[#allocation5 + $0xd0] sm:$0xff]
    %v1352 = vld [vmem:[#allocation5 + $0xd8] sm:$0xff]
    %v1353 = vld [vmem:[#allocation5 + $0xe0] sm:$0xff]
    %v1354 = vld [vmem:[#allocation5 + $0xe8] sm:$0xff]
    %v1355 = vld [vmem:[#allocation5 + $0xf0] sm:$0xff]
    %v1356 = vld [vmem:[#allocation5 + $0xf8] sm:$0xff]
    %v1357 = vld [vmem:[#allocation5 + $0x100] sm:$0xff]
    %v1358 = vld [vmem:[#allocation5 + $0x108] sm:$0xff]
    %v1359 = vld [vmem:[#allocation5 + $0x110] sm:$0xff]
    %v1360 = vld [vmem:[#allocation5 + $0x118] sm:$0xff]
    %v1361 = vld [vmem:[#allocation5 + $0x120] sm:$0xff]
    %v1362 = vld [vmem:[#allocation5 + $0x128] sm:$0xff]
    %v1363 = vld [vmem:[#allocation5 + $0x130] sm:$0xff]
    %v1364 = vld [vmem:[#allocation5 + $0x138] sm:$0xff]
    %v1365 = vld [vmem:[#allocation5 + $0x140] sm:$0xff]
    %v1366 = vld [vmem:[#allocation5 + $0x148] sm:$0xff]
    %v1367 = vld [vmem:[#allocation5 + $0x150] sm:$0xff]
    %v1368 = vld [vmem:[#allocation5 + $0x158] sm:$0xff]
    %v1369 = vld [vmem:[#allocation5 + $0x160] sm:$0xff]
    %v1370 = vld [vmem:[#allocation5 + $0x168] sm:$0xff]
    %v1371 = vld [vmem:[#allocation5 + $0x170] sm:$0xff]
    %v1372 = vld [vmem:[#allocation5 + $0x178] sm:$0xff]
    %1373 = vmatprep.subr.mxu0 %v1326
    %1374 = vmatpush1.msra.mxu0 %v1325
    %1375 = vmatprep.subr.mxu0 %v1329
    %1376 = vmatpush1.msra.mxu0 %v1328
    %1377 = vmatprep.subr.mxu0 %v1332
    %1378 = vmatpush1.msra.mxu0 %v1331
    %1379 = vmatprep.subr.mxu0 %v1335
    %1380 = vmatpush1.msra.mxu0 %v1334
    %1381 = vmatprep.subr.mxu0 %v1338
    %1382 = vmatpush1.msra.mxu0 %v1337
    %1383 = vmatprep.subr.mxu0 %v1341
    %1384 = vmatpush1.msra.mxu0 %v1340
    %1385 = vmatprep.subr.mxu0 %v1344
    %1386 = vmatpush1.msra.mxu0 %v1343
    %1387 = vmatprep.subr.mxu0 %v1347
    %1388 = vmatpush1.msra.mxu0 %v1346
    %1389 = vmatprep.subr.mxu0 %v1350
    %1390 = vmatpush1.msra.mxu0 %v1349
    %1391 = vmatprep.subr.mxu0 %v1353
    %1392 = vmatpush1.msra.mxu0 %v1352
    %1393 = vmatprep.subr.mxu0 %v1356
    %1394 = vmatpush1.msra.mxu0 %v1355
    %1395 = vmatprep.subr.mxu0 %v1359
    %1396 = vmatpush1.msra.mxu0 %v1358
    %1397 = vmatprep.subr.mxu0 %v1362
    %1398 = vmatpush1.msra.mxu0 %v1361
    %1399 = vmatprep.subr.mxu0 %v1365
    %1400 = vmatpush1.msra.mxu0 %v1364
    %1401 = vmatprep.subr.mxu0 %v1368
    %1402 = vmatpush1.msra.mxu0 %v1367
    %1403 = vmatprep.subr.mxu0 %v1371
    %1404 = vmatpush1.msra.mxu0 %v1370
    %1405 = vmatprep.subr.mxu0 0.0
    %1406 = vmatpush1.msra.mxu0 0.0
    %1407 = vmatprep.subr.mxu0 0.0
    %1408 = vmatpush1.msra.mxu0 0.0
    %1409 = vmatprep.subr.mxu0 0.0
    %1410 = vmatpush1.msra.mxu0 0.0
    %1411 = vmatprep.subr.mxu0 0.0
    %1412 = vmatpush1.msra.mxu0 0.0
    %1413 = vmatprep.subr.mxu0 0.0
    %1414 = vmatpush1.msra.mxu0 0.0
    %1415 = vmatprep.subr.mxu0 0.0
    %1416 = vmatpush1.msra.mxu0 0.0
    %1417 = vmatprep.subr.mxu0 0.0
    %1418 = vmatpush1.msra.mxu0 0.0
    %1419 = vmatprep.subr.mxu0 0.0
    %1420 = vmatpush1.msra.mxu0 0.0
    %1421 = vmatprep.subr.mxu0 0.0
    %1422 = vmatpush1.msra.mxu0 0.0
    %1423 = vmatprep.subr.mxu0 0.0
    %1424 = vmatpush1.msra.mxu0 0.0
    %1425 = vmatprep.subr.mxu0 0.0
    %1426 = vmatpush1.msra.mxu0 0.0
    %1427 = vmatprep.subr.mxu0 0.0
    %1428 = vmatpush1.msra.mxu0 0.0
    %1429 = vmatprep.subr.mxu0 0.0
    %1430 = vmatpush1.msra.mxu0 0.0
    %1431 = vmatprep.subr.mxu0 0.0
    %1432 = vmatpush1.msra.mxu0 0.0
    %1433 = vmatprep.subr.mxu0 0.0
    %1434 = vmatpush1.msra.mxu0 0.0
    %1435 = vmatprep.subr.mxu0 0.0
    %1436 = vmatpush1.msra.mxu0 0.0
    %1437 = vmatprep.mubr.f32.mxu0 0.0
    %1438 = vmatmul.mubr.f32.gmra.mrb[0].mxu0 %v1234
    %v1439 = vpop.f32.mrb[0].mxu0
    %v1440 = vadd.f32 0.0, %v1439
    %v1441 = vpop.f32.mrb[0].mxu0
    %v1442 = vadd.f32 0.0, %v1441
    %1443 = vdwg.mxu0
    %1444 = vmatprep.subr.mxu0 0.0
    %1445 = vmatpush1.msra.mxu0 %v1327
    %1446 = vmatprep.subr.mxu0 0.0
    %1447 = vmatpush1.msra.mxu0 %v1330
    %1448 = vmatprep.subr.mxu0 0.0
    %1449 = vmatpush1.msra.mxu0 %v1333
    %1450 = vmatprep.subr.mxu0 0.0
    %1451 = vmatpush1.msra.mxu0 %v1336
    %1452 = vmatprep.subr.mxu0 0.0
    %1453 = vmatpush1.msra.mxu0 %v1339
    %1454 = vmatprep.subr.mxu0 0.0
    %1455 = vmatpush1.msra.mxu0 %v1342
    %1456 = vmatprep.subr.mxu0 0.0
    %1457 = vmatpush1.msra.mxu0 %v1345
    %1458 = vmatprep.subr.mxu0 0.0
    %1459 = vmatpush1.msra.mxu0 %v1348
    %1460 = vmatprep.subr.mxu0 0.0
    %1461 = vmatpush1.msra.mxu0 %v1351
    %1462 = vmatprep.subr.mxu0 0.0
    %1463 = vmatpush1.msra.mxu0 %v1354
    %1464 = vmatprep.subr.mxu0 0.0
    %1465 = vmatpush1.msra.mxu0 %v1357
    %1466 = vmatprep.subr.mxu0 0.0
    %1467 = vmatpush1.msra.mxu0 %v1360
    %1468 = vmatprep.subr.mxu0 0.0
    %1469 = vmatpush1.msra.mxu0 %v1363
    %1470 = vmatprep.subr.mxu0 0.0
    %1471 = vmatpush1.msra.mxu0 %v1366
    %1472 = vmatprep.subr.mxu0 0.0
    %1473 = vmatpush1.msra.mxu0 %v1369
    %1474 = vmatprep.subr.mxu0 0.0
    %1475 = vmatpush1.msra.mxu0 %v1372
    %1476 = vmatprep.subr.mxu0 0.0
    %1477 = vmatpush1.msra.mxu0 0.0
    %1478 = vmatprep.subr.mxu0 0.0
    %1479 = vmatpush1.msra.mxu0 0.0
    %1480 = vmatprep.subr.mxu0 0.0
    %1481 = vmatpush1.msra.mxu0 0.0
    %1482 = vmatprep.subr.mxu0 0.0
    %1483 = vmatpush1.msra.mxu0 0.0
    %1484 = vmatprep.subr.mxu0 0.0
    %1485 = vmatpush1.msra.mxu0 0.0
    %1486 = vmatprep.subr.mxu0 0.0
    %1487 = vmatpush1.msra.mxu0 0.0
    %1488 = vmatprep.subr.mxu0 0.0
    %1489 = vmatpush1.msra.mxu0 0.0
    %1490 = vmatprep.subr.mxu0 0.0
    %1491 = vmatpush1.msra.mxu0 0.0
    %1492 = vmatprep.subr.mxu0 0.0
    %1493 = vmatpush1.msra.mxu0 0.0
    %1494 = vmatprep.subr.mxu0 0.0
    %1495 = vmatpush1.msra.mxu0 0.0
    %1496 = vmatprep.subr.mxu0 0.0
    %1497 = vmatpush1.msra.mxu0 0.0
    %1498 = vmatprep.subr.mxu0 0.0
    %1499 = vmatpush1.msra.mxu0 0.0
    %1500 = vmatprep.subr.mxu0 0.0
    %1501 = vmatpush1.msra.mxu0 0.0
    %1502 = vmatprep.subr.mxu0 0.0
    %1503 = vmatpush1.msra.mxu0 0.0
    %1504 = vmatprep.subr.mxu0 0.0
    %1505 = vmatpush1.msra.mxu0 0.0
    %1506 = vmatprep.subr.mxu0 0.0
    %1507 = vmatpush1.msra.mxu0 0.0
    %1508 = vmatprep.mubr.f32.mxu0 0.0
    %1509 = vmatmul.mubr.f32.gmra.mrb[0].mxu0 %v1234
    %v1510 = vpop.f32.mrb[0].mxu0
    %v1511 = vadd.f32 0.0, %v1510
    %v1512 = vpop.f32.mrb[0].mxu0
    %1513 = vdwg.mxu0
    %v1514 = vadd.f32 %v1322, %v1440
    %v1515 = vxor.u32 %v1514, 2147483648
    %v1516 = vmul.f32 %v1515, 1.442695
    %v1517 = vpow.pop %v1516
    %v1518 = vadd.f32 %v1517, 1.0
    %v1519 = vrcp.pop %v1518
    %v1520 = vmul.f32 1.0, %v1519
    %v1521 = vadd.f32 %v1323, %v1442
    %v1522 = vxor.u32 %v1521, 2147483648
    %v1523 = vmul.f32 %v1522, 1.442695
    %v1524 = vpow.pop %v1523
    %v1525 = vadd.f32 %v1524, 1.0
    %v1526 = vrcp.pop %v1525
    %v1527 = vmul.f32 1.0, %v1526
    %v1528 = vadd.f32 %v1511, %v409
    %v1529 = vmul.f32 %v1520, %v1528
    %v1530 = vadd.f32 %v1324, %v1529
    %v1531 = vtanh.pop %v1530
    %v1532 = vsub.f32 1.0, %v1527
    %v1533 = vmul.f32 %v1532, %v1531
    %v1534 = vmul.f32 %v1527, %v1234
    %v1535 = vadd.f32 %v1533, %v1534
    %v1536 = vld [vmem:[%s5] sm:$0xff]
    %v1537 = vld [vmem:[%s5 + $0x8] sm:$0xff]
    %v1538 = vld [vmem:[%s5 + $0x10] sm:$0xff]
    %v1539 = vld [vmem:[%s5 + $0x18] sm:$0xff]
    %v1540 = vld [vmem:[%s5 + $0x20] sm:$0xff]
    %v1541 = vld [vmem:[%s5 + $0x28] sm:$0xff]
    %v1542 = vld [vmem:[%s5 + $0x30] sm:$0xff]
    %v1543 = vld [vmem:[%s5 + $0x38] sm:$0xff]
    %v1544 = vld [vmem:[%s5 + $0x40] sm:$0xff]
    %v1545 = vld [vmem:[%s5 + $0x48] sm:$0xff]
    %v1546 = vld [vmem:[%s5 + $0x50] sm:$0xff]
    %v1547 = vld [vmem:[%s5 + $0x58] sm:$0xff]
    %v1548 = vld [vmem:[%s5 + $0x60] sm:$0xff]
    %v1549 = vld [vmem:[%s5 + $0x68] sm:$0xff]
    %v1550 = vld [vmem:[%s5 + $0x70] sm:$0xff]
    %v1551 = vld [vmem:[%s5 + $0x78] sm:$0xff]
    %1552 = vmatprep.subr.mxu0 0.0
    %1553 = vmatpush1.msra.mxu0 %v1536
    %1554 = vmatprep.subr.mxu0 0.0
    %1555 = vmatpush1.msra.mxu0 %v1537
    %1556 = vmatprep.subr.mxu0 0.0
    %1557 = vmatpush1.msra.mxu0 %v1538
    %1558 = vmatprep.subr.mxu0 0.0
    %1559 = vmatpush1.msra.mxu0 %v1539
    %1560 = vmatprep.subr.mxu0 0.0
    %1561 = vmatpush1.msra.mxu0 %v1540
    %1562 = vmatprep.subr.mxu0 0.0
    %1563 = vmatpush1.msra.mxu0 %v1541
    %1564 = vmatprep.subr.mxu0 0.0
    %1565 = vmatpush1.msra.mxu0 %v1542
    %1566 = vmatprep.subr.mxu0 0.0
    %1567 = vmatpush1.msra.mxu0 %v1543
    %1568 = vmatprep.subr.mxu0 0.0
    %1569 = vmatpush1.msra.mxu0 %v1544
    %1570 = vmatprep.subr.mxu0 0.0
    %1571 = vmatpush1.msra.mxu0 %v1545
    %1572 = vmatprep.subr.mxu0 0.0
    %1573 = vmatpush1.msra.mxu0 %v1546
    %1574 = vmatprep.subr.mxu0 0.0
    %1575 = vmatpush1.msra.mxu0 %v1547
    %1576 = vmatprep.subr.mxu0 0.0
    %1577 = vmatpush1.msra.mxu0 %v1548
    %1578 = vmatprep.subr.mxu0 0.0
    %1579 = vmatpush1.msra.mxu0 %v1549
    %1580 = vmatprep.subr.mxu0 0.0
    %1581 = vmatpush1.msra.mxu0 %v1550
    %1582 = vmatprep.subr.mxu0 0.0
    %1583 = vmatpush1.msra.mxu0 %v1551
    %1584 = vmatprep.subr.mxu0 0.0
    %1585 = vmatpush1.msra.mxu0 0.0
    %1586 = vmatprep.subr.mxu0 0.0
    %1587 = vmatpush1.msra.mxu0 0.0
    %1588 = vmatprep.subr.mxu0 0.0
    %1589 = vmatpush1.msra.mxu0 0.0
    %1590 = vmatprep.subr.mxu0 0.0
    %1591 = vmatpush1.msra.mxu0 0.0
    %1592 = vmatprep.subr.mxu0 0.0
    %1593 = vmatpush1.msra.mxu0 0.0
    %1594 = vmatprep.subr.mxu0 0.0
    %1595 = vmatpush1.msra.mxu0 0.0
    %1596 = vmatprep.subr.mxu0 0.0
    %1597 = vmatpush1.msra.mxu0 0.0
    %1598 = vmatprep.subr.mxu0 0.0
    %1599 = vmatpush1.msra.mxu0 0.0
    %1600 = vmatprep.subr.mxu0 0.0
    %1601 = vmatpush1.msra.mxu0 0.0
    %1602 = vmatprep.subr.mxu0 0.0
    %1603 = vmatpush1.msra.mxu0 0.0
    %1604 = vmatprep.subr.mxu0 0.0
    %1605 = vmatpush1.msra.mxu0 0.0
    %1606 = vmatprep.subr.mxu0 0.0
    %1607 = vmatpush1.msra.mxu0 0.0
    %1608 = vmatprep.subr.mxu0 0.0
    %1609 = vmatpush1.msra.mxu0 0.0
    %1610 = vmatprep.subr.mxu0 0.0
    %1611 = vmatpush1.msra.mxu0 0.0
    %1612 = vmatprep.subr.mxu0 0.0
    %1613 = vmatpush1.msra.mxu0 0.0
    %1614 = vmatprep.subr.mxu0 0.0
    %1615 = vmatpush1.msra.mxu0 0.0
    %1616 = vmatprep.mubr.f32.mxu0 0.0
    %1617 = vmatmul.mubr.f32.gmra.mrb[0].mxu0 %v1535
    %v1618 = vpop.f32.mrb[0].mxu0
    %v1619 = vadd.f32 %v416, %v1618
    %v1620 = vpop.f32.mrb[0].mxu0
    %1621 = vdwg.mxu0
    %1622 = vst [vmem:[%s7 + $0x18] sm:$0xff] %v1619
    %v1623 = vld [vmem:[#allocation2 + $0x60] sm:$0xff]
    %v1624 = vld [vmem:[#allocation2 + $0x68] sm:$0xff]
    %v1625 = vld [vmem:[#allocation2 + $0x70] sm:$0xff]
    %v1626 = vld [vmem:[#allocation5] sm:$0xff]
    %v1627 = vld [vmem:[#allocation5 + $0x8] sm:$0xff]
    %v1628 = vld [vmem:[#allocation5 + $0x10] sm:$0xff]
    %v1629 = vld [vmem:[#allocation5 + $0x18] sm:$0xff]
    %v1630 = vld [vmem:[#allocation5 + $0x20] sm:$0xff]
    %v1631 = vld [vmem:[#allocation5 + $0x28] sm:$0xff]
    %v1632 = vld [vmem:[#allocation5 + $0x30] sm:$0xff]
    %v1633 = vld [vmem:[#allocation5 + $0x38] sm:$0xff]
    %v1634 = vld [vmem:[#allocation5 + $0x40] sm:$0xff]
    %v1635 = vld [vmem:[#allocation5 + $0x48] sm:$0xff]
    %v1636 = vld [vmem:[#allocation5 + $0x50] sm:$0xff]
    %v1637 = vld [vmem:[#allocation5 + $0x58] sm:$0xff]
    %v1638 = vld [vmem:[#allocation5 + $0x60] sm:$0xff]
    %v1639 = vld [vmem:[#allocation5 + $0x68] sm:$0xff]
    %v1640 = vld [vmem:[#allocation5 + $0x70] sm:$0xff]
    %v1641 = vld [vmem:[#allocation5 + $0x78] sm:$0xff]
    %v1642 = vld [vmem:[#allocation5 + $0x80] sm:$0xff]
    %v1643 = vld [vmem:[#allocation5 + $0x88] sm:$0xff]
    %v1644 = vld [vmem:[#allocation5 + $0x90] sm:$0xff]
    %v1645 = vld [vmem:[#allocation5 + $0x98] sm:$0xff]
    %v1646 = vld [vmem:[#allocation5 + $0xa0] sm:$0xff]
    %v1647 = vld [vmem:[#allocation5 + $0xa8] sm:$0xff]
    %v1648 = vld [vmem:[#allocation5 + $0xb0] sm:$0xff]
    %v1649 = vld [vmem:[#allocation5 + $0xb8] sm:$0xff]
    %v1650 = vld [vmem:[#allocation5 + $0xc0] sm:$0xff]
    %v1651 = vld [vmem:[#allocation5 + $0xc8] sm:$0xff]
    %v1652 = vld [vmem:[#allocation5 + $0xd0] sm:$0xff]
    %v1653 = vld [vmem:[#allocation5 + $0xd8] sm:$0xff]
    %v1654 = vld [vmem:[#allocation5 + $0xe0] sm:$0xff]
    %v1655 = vld [vmem:[#allocation5 + $0xe8] sm:$0xff]
    %v1656 = vld [vmem:[#allocation5 + $0xf0] sm:$0xff]
    %v1657 = vld [vmem:[#allocation5 + $0xf8] sm:$0xff]
    %v1658 = vld [vmem:[#allocation5 + $0x100] sm:$0xff]
    %v1659 = vld [vmem:[#allocation5 + $0x108] sm:$0xff]
    %v1660 = vld [vmem:[#allocation5 + $0x110] sm:$0xff]
    %v1661 = vld [vmem:[#allocation5 + $0x118] sm:$0xff]
    %v1662 = vld [vmem:[#allocation5 + $0x120] sm:$0xff]
    %v1663 = vld [vmem:[#allocation5 + $0x128] sm:$0xff]
    %v1664 = vld [vmem:[#allocation5 + $0x130] sm:$0xff]
    %v1665 = vld [vmem:[#allocation5 + $0x138] sm:$0xff]
    %v1666 = vld [vmem:[#allocation5 + $0x140] sm:$0xff]
    %v1667 = vld [vmem:[#allocation5 + $0x148] sm:$0xff]
    %v1668 = vld [vmem:[#allocation5 + $0x150] sm:$0xff]
    %v1669 = vld [vmem:[#allocation5 + $0x158] sm:$0xff]
    %v1670 = vld [vmem:[#allocation5 + $0x160] sm:$0xff]
    %v1671 = vld [vmem:[#allocation5 + $0x168] sm:$0xff]
    %v1672 = vld [vmem:[#allocation5 + $0x170] sm:$0xff]
    %v1673 = vld [vmem:[#allocation5 + $0x178] sm:$0xff]
    %1674 = vmatprep.subr.mxu0 %v1627
    %1675 = vmatpush1.msra.mxu0 %v1626
    %1676 = vmatprep.subr.mxu0 %v1630
    %1677 = vmatpush1.msra.mxu0 %v1629
    %1678 = vmatprep.subr.mxu0 %v1633
    %1679 = vmatpush1.msra.mxu0 %v1632
    %1680 = vmatprep.subr.mxu0 %v1636
    %1681 = vmatpush1.msra.mxu0 %v1635
    %1682 = vmatprep.subr.mxu0 %v1639
    %1683 = vmatpush1.msra.mxu0 %v1638
    %1684 = vmatprep.subr.mxu0 %v1642
    %1685 = vmatpush1.msra.mxu0 %v1641
    %1686 = vmatprep.subr.mxu0 %v1645
    %1687 = vmatpush1.msra.mxu0 %v1644
    %1688 = vmatprep.subr.mxu0 %v1648
    %1689 = vmatpush1.msra.mxu0 %v1647
    %1690 = vmatprep.subr.mxu0 %v1651
    %1691 = vmatpush1.msra.mxu0 %v1650
    %1692 = vmatprep.subr.mxu0 %v1654
    %1693 = vmatpush1.msra.mxu0 %v1653
    %1694 = vmatprep.subr.mxu0 %v1657
    %1695 = vmatpush1.msra.mxu0 %v1656
    %1696 = vmatprep.subr.mxu0 %v1660
    %1697 = vmatpush1.msra.mxu0 %v1659
    %1698 = vmatprep.subr.mxu0 %v1663
    %1699 = vmatpush1.msra.mxu0 %v1662
    %1700 = vmatprep.subr.mxu0 %v1666
    %1701 = vmatpush1.msra.mxu0 %v1665
    %1702 = vmatprep.subr.mxu0 %v1669
    %1703 = vmatpush1.msra.mxu0 %v1668
    %1704 = vmatprep.subr.mxu0 %v1672
    %1705 = vmatpush1.msra.mxu0 %v1671
    %1706 = vmatprep.subr.mxu0 0.0
    %1707 = vmatpush1.msra.mxu0 0.0
    %1708 = vmatprep.subr.mxu0 0.0
    %1709 = vmatpush1.msra.mxu0 0.0
    %1710 = vmatprep.subr.mxu0 0.0
    %1711 = vmatpush1.msra.mxu0 0.0
    %1712 = vmatprep.subr.mxu0 0.0
    %1713 = vmatpush1.msra.mxu0 0.0
    %1714 = vmatprep.subr.mxu0 0.0
    %1715 = vmatpush1.msra.mxu0 0.0
    %1716 = vmatprep.subr.mxu0 0.0
    %1717 = vmatpush1.msra.mxu0 0.0
    %1718 = vmatprep.subr.mxu0 0.0
    %1719 = vmatpush1.msra.mxu0 0.0
    %1720 = vmatprep.subr.mxu0 0.0
    %1721 = vmatpush1.msra.mxu0 0.0
    %1722 = vmatprep.subr.mxu0 0.0
    %1723 = vmatpush1.msra.mxu0 0.0
    %1724 = vmatprep.subr.mxu0 0.0
    %1725 = vmatpush1.msra.mxu0 0.0
    %1726 = vmatprep.subr.mxu0 0.0
    %1727 = vmatpush1.msra.mxu0 0.0
    %1728 = vmatprep.subr.mxu0 0.0
    %1729 = vmatpush1.msra.mxu0 0.0
    %1730 = vmatprep.subr.mxu0 0.0
    %1731 = vmatpush1.msra.mxu0 0.0
    %1732 = vmatprep.subr.mxu0 0.0
    %1733 = vmatpush1.msra.mxu0 0.0
    %1734 = vmatprep.subr.mxu0 0.0
    %1735 = vmatpush1.msra.mxu0 0.0
    %1736 = vmatprep.subr.mxu0 0.0
    %1737 = vmatpush1.msra.mxu0 0.0
    %1738 = vmatprep.mubr.f32.mxu0 0.0
    %1739 = vmatmul.mubr.f32.gmra.mrb[0].mxu0 %v1535
    %v1740 = vpop.f32.mrb[0].mxu0
    %v1741 = vadd.f32 0.0, %v1740
    %v1742 = vpop.f32.mrb[0].mxu0
    %v1743 = vadd.f32 0.0, %v1742
    %1744 = vdwg.mxu0
    %1745 = vmatprep.subr.mxu0 0.0
    %1746 = vmatpush1.msra.mxu0 %v1628
    %1747 = vmatprep.subr.mxu0 0.0
    %1748 = vmatpush1.msra.mxu0 %v1631
    %1749 = vmatprep.subr.mxu0 0.0
    %1750 = vmatpush1.msra.mxu0 %v1634
    %1751 = vmatprep.subr.mxu0 0.0
    %1752 = vmatpush1.msra.mxu0 %v1637
    %1753 = vmatprep.subr.mxu0 0.0
    %1754 = vmatpush1.msra.mxu0 %v1640
    %1755 = vmatprep.subr.mxu0 0.0
    %1756 = vmatpush1.msra.mxu0 %v1643
    %1757 = vmatprep.subr.mxu0 0.0
    %1758 = vmatpush1.msra.mxu0 %v1646
    %1759 = vmatprep.subr.mxu0 0.0
    %1760 = vmatpush1.msra.mxu0 %v1649
    %1761 = vmatprep.subr.mxu0 0.0
    %1762 = vmatpush1.msra.mxu0 %v1652
    %1763 = vmatprep.subr.mxu0 0.0
    %1764 = vmatpush1.msra.mxu0 %v1655
    %1765 = vmatprep.subr.mxu0 0.0
    %1766 = vmatpush1.msra.mxu0 %v1658
    %1767 = vmatprep.subr.mxu0 0.0
    %1768 = vmatpush1.msra.mxu0 %v1661
    %1769 = vmatprep.subr.mxu0 0.0
    %1770 = vmatpush1.msra.mxu0 %v1664
    %1771 = vmatprep.subr.mxu0 0.0
    %1772 = vmatpush1.msra.mxu0 %v1667
    %1773 = vmatprep.subr.mxu0 0.0
    %1774 = vmatpush1.msra.mxu0 %v1670
    %1775 = vmatprep.subr.mxu0 0.0
    %1776 = vmatpush1.msra.mxu0 %v1673
    %1777 = vmatprep.subr.mxu0 0.0
    %1778 = vmatpush1.msra.mxu0 0.0
    %1779 = vmatprep.subr.mxu0 0.0
    %1780 = vmatpush1.msra.mxu0 0.0
    %1781 = vmatprep.subr.mxu0 0.0
    %1782 = vmatpush1.msra.mxu0 0.0
    %1783 = vmatprep.subr.mxu0 0.0
    %1784 = vmatpush1.msra.mxu0 0.0
    %1785 = vmatprep.subr.mxu0 0.0
    %1786 = vmatpush1.msra.mxu0 0.0
    %1787 = vmatprep.subr.mxu0 0.0
    %1788 = vmatpush1.msra.mxu0 0.0
    %1789 = vmatprep.subr.mxu0 0.0
    %1790 = vmatpush1.msra.mxu0 0.0
    %1791 = vmatprep.subr.mxu0 0.0
    %1792 = vmatpush1.msra.mxu0 0.0
    %1793 = vmatprep.subr.mxu0 0.0
    %1794 = vmatpush1.msra.mxu0 0.0
    %1795 = vmatprep.subr.mxu0 0.0
    %1796 = vmatpush1.msra.mxu0 0.0
    %1797 = vmatprep.subr.mxu0 0.0
    %1798 = vmatpush1.msra.mxu0 0.0
    %1799 = vmatprep.subr.mxu0 0.0
    %1800 = vmatpush1.msra.mxu0 0.0
    %1801 = vmatprep.subr.mxu0 0.0
    %1802 = vmatpush1.msra.mxu0 0.0
    %1803 = vmatprep.subr.mxu0 0.0
    %1804 = vmatpush1.msra.mxu0 0.0
    %1805 = vmatprep.subr.mxu0 0.0
    %1806 = vmatpush1.msra.mxu0 0.0
    %1807 = vmatprep.subr.mxu0 0.0
    %1808 = vmatpush1.msra.mxu0 0.0
    %1809 = vmatprep.mubr.f32.mxu0 0.0
    %1810 = vmatmul.mubr.f32.gmra.mrb[0].mxu0 %v1535
    %v1811 = vpop.f32.mrb[0].mxu0
    %v1812 = vadd.f32 0.0, %v1811
    %v1813 = vpop.f32.mrb[0].mxu0
    %1814 = vdwg.mxu0
    %v1815 = vadd.f32 %v1623, %v1741
    %v1816 = vxor.u32 %v1815, 2147483648
    %v1817 = vmul.f32 %v1816, 1.442695
    %v1818 = vpow.pop %v1817
    %v1819 = vadd.f32 %v1818, 1.0
    %v1820 = vrcp.pop %v1819
    %v1821 = vmul.f32 1.0, %v1820
    %v1822 = vadd.f32 %v1624, %v1743
    %v1823 = vxor.u32 %v1822, 2147483648
    %v1824 = vmul.f32 %v1823, 1.442695
    %v1825 = vpow.pop %v1824
    %v1826 = vadd.f32 %v1825, 1.0
    %v1827 = vrcp.pop %v1826
    %v1828 = vmul.f32 1.0, %v1827
    %v1829 = vadd.f32 %v1812, %v409
    %v1830 = vmul.f32 %v1821, %v1829
    %v1831 = vadd.f32 %v1625, %v1830
    %v1832 = vtanh.pop %v1831
    %v1833 = vsub.f32 1.0, %v1828
    %v1834 = vmul.f32 %v1833, %v1832
    %v1835 = vmul.f32 %v1828, %v1535
    %v1836 = vadd.f32 %v1834, %v1835
    %v1837 = vld [vmem:[%s5] sm:$0xff]
    %v1838 = vld [vmem:[%s5 + $0x8] sm:$0xff]
    %v1839 = vld [vmem:[%s5 + $0x10] sm:$0xff]
    %v1840 = vld [vmem:[%s5 + $0x18] sm:$0xff]
    %v1841 = vld [vmem:[%s5 + $0x20] sm:$0xff]
    %v1842 = vld [vmem:[%s5 + $0x28] sm:$0xff]
    %v1843 = vld [vmem:[%s5 + $0x30] sm:$0xff]
    %v1844 = vld [vmem:[%s5 + $0x38] sm:$0xff]
    %v1845 = vld [vmem:[%s5 + $0x40] sm:$0xff]
    %v1846 = vld [vmem:[%s5 + $0x48] sm:$0xff]
    %v1847 = vld [vmem:[%s5 + $0x50] sm:$0xff]
    %v1848 = vld [vmem:[%s5 + $0x58] sm:$0xff]
    %v1849 = vld [vmem:[%s5 + $0x60] sm:$0xff]
    %v1850 = vld [vmem:[%s5 + $0x68] sm:$0xff]
    %v1851 = vld [vmem:[%s5 + $0x70] sm:$0xff]
    %v1852 = vld [vmem:[%s5 + $0x78] sm:$0xff]
    %1853 = vmatprep.subr.mxu0 0.0
    %1854 = vmatpush1.msra.mxu0 %v1837
    %1855 = vmatprep.subr.mxu0 0.0
    %1856 = vmatpush1.msra.mxu0 %v1838
    %1857 = vmatprep.subr.mxu0 0.0
    %1858 = vmatpush1.msra.mxu0 %v1839
    %1859 = vmatprep.subr.mxu0 0.0
    %1860 = vmatpush1.msra.mxu0 %v1840
    %1861 = vmatprep.subr.mxu0 0.0
    %1862 = vmatpush1.msra.mxu0 %v1841
    %1863 = vmatprep.subr.mxu0 0.0
    %1864 = vmatpush1.msra.mxu0 %v1842
    %1865 = vmatprep.subr.mxu0 0.0
    %1866 = vmatpush1.msra.mxu0 %v1843
    %1867 = vmatprep.subr.mxu0 0.0
    %1868 = vmatpush1.msra.mxu0 %v1844
    %1869 = vmatprep.subr.mxu0 0.0
    %1870 = vmatpush1.msra.mxu0 %v1845
    %1871 = vmatprep.subr.mxu0 0.0
    %1872 = vmatpush1.msra.mxu0 %v1846
    %1873 = vmatprep.subr.mxu0 0.0
    %1874 = vmatpush1.msra.mxu0 %v1847
    %1875 = vmatprep.subr.mxu0 0.0
    %1876 = vmatpush1.msra.mxu0 %v1848
    %1877 = vmatprep.subr.mxu0 0.0
    %1878 = vmatpush1.msra.mxu0 %v1849
    %1879 = vmatprep.subr.mxu0 0.0
    %1880 = vmatpush1.msra.mxu0 %v1850
    %1881 = vmatprep.subr.mxu0 0.0
    %1882 = vmatpush1.msra.mxu0 %v1851
    %1883 = vmatprep.subr.mxu0 0.0
    %1884 = vmatpush1.msra.mxu0 %v1852
    %1885 = vmatprep.subr.mxu0 0.0
    %1886 = vmatpush1.msra.mxu0 0.0
    %1887 = vmatprep.subr.mxu0 0.0
    %1888 = vmatpush1.msra.mxu0 0.0
    %1889 = vmatprep.subr.mxu0 0.0
    %1890 = vmatpush1.msra.mxu0 0.0
    %1891 = vmatprep.subr.mxu0 0.0
    %1892 = vmatpush1.msra.mxu0 0.0
    %1893 = vmatprep.subr.mxu0 0.0
    %1894 = vmatpush1.msra.mxu0 0.0
    %1895 = vmatprep.subr.mxu0 0.0
    %1896 = vmatpush1.msra.mxu0 0.0
    %1897 = vmatprep.subr.mxu0 0.0
    %1898 = vmatpush1.msra.mxu0 0.0
    %1899 = vmatprep.subr.mxu0 0.0
    %1900 = vmatpush1.msra.mxu0 0.0
    %1901 = vmatprep.subr.mxu0 0.0
    %1902 = vmatpush1.msra.mxu0 0.0
    %1903 = vmatprep.subr.mxu0 0.0
    %1904 = vmatpush1.msra.mxu0 0.0
    %1905 = vmatprep.subr.mxu0 0.0
    %1906 = vmatpush1.msra.mxu0 0.0
    %1907 = vmatprep.subr.mxu0 0.0
    %1908 = vmatpush1.msra.mxu0 0.0
    %1909 = vmatprep.subr.mxu0 0.0
    %1910 = vmatpush1.msra.mxu0 0.0
    %1911 = vmatprep.subr.mxu0 0.0
    %1912 = vmatpush1.msra.mxu0 0.0
    %1913 = vmatprep.subr.mxu0 0.0
    %1914 = vmatpush1.msra.mxu0 0.0
    %1915 = vmatprep.subr.mxu0 0.0
    %1916 = vmatpush1.msra.mxu0 0.0
    %1917 = vmatprep.mubr.f32.mxu0 0.0
    %1918 = vmatmul.mubr.f32.gmra.mrb[0].mxu0 %v1836
    %v1919 = vpop.f32.mrb[0].mxu0
    %v1920 = vadd.f32 %v416, %v1919
    %v1921 = vpop.f32.mrb[0].mxu0
    %1922 = vdwg.mxu0
    %1923 = vst [vmem:[%s7 + $0x20] sm:$0xff] %v1920
    %v1924 = vld [vmem:[#allocation2 + $0x78] sm:$0xff]
    %v1925 = vld [vmem:[#allocation2 + $0x80] sm:$0xff]
    %v1926 = vld [vmem:[#allocation2 + $0x88] sm:$0xff]
    %v1927 = vld [vmem:[#allocation5] sm:$0xff]
    %v1928 = vld [vmem:[#allocation5 + $0x8] sm:$0xff]
    %v1929 = vld [vmem:[#allocation5 + $0x10] sm:$0xff]
    %v1930 = vld [vmem:[#allocation5 + $0x18] sm:$0xff]
    %v1931 = vld [vmem:[#allocation5 + $0x20] sm:$0xff]
    %v1932 = vld [vmem:[#allocation5 + $0x28] sm:$0xff]
    %v1933 = vld [vmem:[#allocation5 + $0x30] sm:$0xff]
    %v1934 = vld [vmem:[#allocation5 + $0x38] sm:$0xff]
    %v1935 = vld [vmem:[#allocation5 + $0x40] sm:$0xff]
    %v1936 = vld [vmem:[#allocation5 + $0x48] sm:$0xff]
    %v1937 = vld [vmem:[#allocation5 + $0x50] sm:$0xff]
    %v1938 = vld [vmem:[#allocation5 + $0x58] sm:$0xff]
    %v1939 = vld [vmem:[#allocation5 + $0x60] sm:$0xff]
    %v1940 = vld [vmem:[#allocation5 + $0x68] sm:$0xff]
    %v1941 = vld [vmem:[#allocation5 + $0x70] sm:$0xff]
    %v1942 = vld [vmem:[#allocation5 + $0x78] sm:$0xff]
    %v1943 = vld [vmem:[#allocation5 + $0x80] sm:$0xff]
    %v1944 = vld [vmem:[#allocation5 + $0x88] sm:$0xff]
    %v1945 = vld [vmem:[#allocation5 + $0x90] sm:$0xff]
    %v1946 = vld [vmem:[#allocation5 + $0x98] sm:$0xff]
    %v1947 = vld [vmem:[#allocation5 + $0xa0] sm:$0xff]
    %v1948 = vld [vmem:[#allocation5 + $0xa8] sm:$0xff]
    %v1949 = vld [vmem:[#allocation5 + $0xb0] sm:$0xff]
    %v1950 = vld [vmem:[#allocation5 + $0xb8] sm:$0xff]
    %v1951 = vld [vmem:[#allocation5 + $0xc0] sm:$0xff]
    %v1952 = vld [vmem:[#allocation5 + $0xc8] sm:$0xff]
    %v1953 = vld [vmem:[#allocation5 + $0xd0] sm:$0xff]
    %v1954 = vld [vmem:[#allocation5 + $0xd8] sm:$0xff]
    %v1955 = vld [vmem:[#allocation5 + $0xe0] sm:$0xff]
    %v1956 = vld [vmem:[#allocation5 + $0xe8] sm:$0xff]
    %v1957 = vld [vmem:[#allocation5 + $0xf0] sm:$0xff]
    %v1958 = vld [vmem:[#allocation5 + $0xf8] sm:$0xff]
    %v1959 = vld [vmem:[#allocation5 + $0x100] sm:$0xff]
    %v1960 = vld [vmem:[#allocation5 + $0x108] sm:$0xff]
    %v1961 = vld [vmem:[#allocation5 + $0x110] sm:$0xff]
    %v1962 = vld [vmem:[#allocation5 + $0x118] sm:$0xff]
    %v1963 = vld [vmem:[#allocation5 + $0x120] sm:$0xff]
    %v1964 = vld [vmem:[#allocation5 + $0x128] sm:$0xff]
    %v1965 = vld [vmem:[#allocation5 + $0x130] sm:$0xff]
    %v1966 = vld [vmem:[#allocation5 + $0x138] sm:$0xff]
    %v1967 = vld [vmem:[#allocation5 + $0x140] sm:$0xff]
    %v1968 = vld [vmem:[#allocation5 + $0x148] sm:$0xff]
    %v1969 = vld [vmem:[#allocation5 + $0x150] sm:$0xff]
    %v1970 = vld [vmem:[#allocation5 + $0x158] sm:$0xff]
    %v1971 = vld [vmem:[#allocation5 + $0x160] sm:$0xff]
    %v1972 = vld [vmem:[#allocation5 + $0x168] sm:$0xff]
    %v1973 = vld [vmem:[#allocation5 + $0x170] sm:$0xff]
    %v1974 = vld [vmem:[#allocation5 + $0x178] sm:$0xff]
    %1975 = vmatprep.subr.mxu0 %v1928
    %1976 = vmatpush1.msra.mxu0 %v1927
    %1977 = vmatprep.subr.mxu0 %v1931
    %1978 = vmatpush1.msra.mxu0 %v1930
    %1979 = vmatprep.subr.mxu0 %v1934
    %1980 = vmatpush1.msra.mxu0 %v1933
    %1981 = vmatprep.subr.mxu0 %v1937
    %1982 = vmatpush1.msra.mxu0 %v1936
    %1983 = vmatprep.subr.mxu0 %v1940
    %1984 = vmatpush1.msra.mxu0 %v1939
    %1985 = vmatprep.subr.mxu0 %v1943
    %1986 = vmatpush1.msra.mxu0 %v1942
    %1987 = vmatprep.subr.mxu0 %v1946
    %1988 = vmatpush1.msra.mxu0 %v1945
    %1989 = vmatprep.subr.mxu0 %v1949
    %1990 = vmatpush1.msra.mxu0 %v1948
    %1991 = vmatprep.subr.mxu0 %v1952
    %1992 = vmatpush1.msra.mxu0 %v1951
    %1993 = vmatprep.subr.mxu0 %v1955
    %1994 = vmatpush1.msra.mxu0 %v1954
    %1995 = vmatprep.subr.mxu0 %v1958
    %1996 = vmatpush1.msra.mxu0 %v1957
    %1997 = vmatprep.subr.mxu0 %v1961
    %1998 = vmatpush1.msra.mxu0 %v1960
    %1999 = vmatprep.subr.mxu0 %v1964
    %2000 = vmatpush1.msra.mxu0 %v1963
    %2001 = vmatprep.subr.mxu0 %v1967
    %2002 = vmatpush1.msra.mxu0 %v1966
    %2003 = vmatprep.subr.mxu0 %v1970
    %2004 = vmatpush1.msra.mxu0 %v1969
    %2005 = vmatprep.subr.mxu0 %v1973
    %2006 = vmatpush1.msra.mxu0 %v1972
    %2007 = vmatprep.subr.mxu0 0.0
    %2008 = vmatpush1.msra.mxu0 0.0
    %2009 = vmatprep.subr.mxu0 0.0
    %2010 = vmatpush1.msra.mxu0 0.0
    %2011 = vmatprep.subr.mxu0 0.0
    %2012 = vmatpush1.msra.mxu0 0.0
    %2013 = vmatprep.subr.mxu0 0.0
    %2014 = vmatpush1.msra.mxu0 0.0
    %2015 = vmatprep.subr.mxu0 0.0
    %2016 = vmatpush1.msra.mxu0 0.0
    %2017 = vmatprep.subr.mxu0 0.0
    %2018 = vmatpush1.msra.mxu0 0.0
    %2019 = vmatprep.subr.mxu0 0.0
    %2020 = vmatpush1.msra.mxu0 0.0
    %2021 = vmatprep.subr.mxu0 0.0
    %2022 = vmatpush1.msra.mxu0 0.0
    %2023 = vmatprep.subr.mxu0 0.0
    %2024 = vmatpush1.msra.mxu0 0.0
    %2025 = vmatprep.subr.mxu0 0.0
    %2026 = vmatpush1.msra.mxu0 0.0
    %2027 = vmatprep.subr.mxu0 0.0
    %2028 = vmatpush1.msra.mxu0 0.0
    %2029 = vmatprep.subr.mxu0 0.0
    %2030 = vmatpush1.msra.mxu0 0.0
    %2031 = vmatprep.subr.mxu0 0.0
    %2032 = vmatpush1.msra.mxu0 0.0
    %2033 = vmatprep.subr.mxu0 0.0
    %2034 = vmatpush1.msra.mxu0 0.0
    %2035 = vmatprep.subr.mxu0 0.0
    %2036 = vmatpush1.msra.mxu0 0.0
    %2037 = vmatprep.subr.mxu0 0.0
    %2038 = vmatpush1.msra.mxu0 0.0
    %2039 = vmatprep.mubr.f32.mxu0 0.0
    %2040 = vmatmul.mubr.f32.gmra.mrb[0].mxu0 %v1836
    %v2041 = vpop.f32.mrb[0].mxu0
    %v2042 = vadd.f32 0.0, %v2041
    %v2043 = vpop.f32.mrb[0].mxu0
    %v2044 = vadd.f32 0.0, %v2043
    %2045 = vdwg.mxu0
    %2046 = vmatprep.subr.mxu0 0.0
    %2047 = vmatpush1.msra.mxu0 %v1929
    %2048 = vmatprep.subr.mxu0 0.0
    %2049 = vmatpush1.msra.mxu0 %v1932
    %2050 = vmatprep.subr.mxu0 0.0
    %2051 = vmatpush1.msra.mxu0 %v1935
    %2052 = vmatprep.subr.mxu0 0.0
    %2053 = vmatpush1.msra.mxu0 %v1938
    %2054 = vmatprep.subr.mxu0 0.0
    %2055 = vmatpush1.msra.mxu0 %v1941
    %2056 = vmatprep.subr.mxu0 0.0
    %2057 = vmatpush1.msra.mxu0 %v1944
    %2058 = vmatprep.subr.mxu0 0.0
    %2059 = vmatpush1.msra.mxu0 %v1947
    %2060 = vmatprep.subr.mxu0 0.0
    %2061 = vmatpush1.msra.mxu0 %v1950
    %2062 = vmatprep.subr.mxu0 0.0
    %2063 = vmatpush1.msra.mxu0 %v1953
    %2064 = vmatprep.subr.mxu0 0.0
    %2065 = vmatpush1.msra.mxu0 %v1956
    %2066 = vmatprep.subr.mxu0 0.0
    %2067 = vmatpush1.msra.mxu0 %v1959
    %2068 = vmatprep.subr.mxu0 0.0
    %2069 = vmatpush1.msra.mxu0 %v1962
    %2070 = vmatprep.subr.mxu0 0.0
    %2071 = vmatpush1.msra.mxu0 %v1965
    %2072 = vmatprep.subr.mxu0 0.0
    %2073 = vmatpush1.msra.mxu0 %v1968
    %2074 = vmatprep.subr.mxu0 0.0
    %2075 = vmatpush1.msra.mxu0 %v1971
    %2076 = vmatprep.subr.mxu0 0.0
    %2077 = vmatpush1.msra.mxu0 %v1974
    %2078 = vmatprep.subr.mxu0 0.0
    %2079 = vmatpush1.msra.mxu0 0.0
    %2080 = vmatprep.subr.mxu0 0.0
    %2081 = vmatpush1.msra.mxu0 0.0
    %2082 = vmatprep.subr.mxu0 0.0
    %2083 = vmatpush1.msra.mxu0 0.0
    %2084 = vmatprep.subr.mxu0 0.0
    %2085 = vmatpush1.msra.mxu0 0.0
    %2086 = vmatprep.subr.mxu0 0.0
    %2087 = vmatpush1.msra.mxu0 0.0
    %2088 = vmatprep.subr.mxu0 0.0
    %2089 = vmatpush1.msra.mxu0 0.0
    %2090 = vmatprep.subr.mxu0 0.0
    %2091 = vmatpush1.msra.mxu0 0.0
    %2092 = vmatprep.subr.mxu0 0.0
    %2093 = vmatpush1.msra.mxu0 0.0
    %2094 = vmatprep.subr.mxu0 0.0
    %2095 = vmatpush1.msra.mxu0 0.0
    %2096 = vmatprep.subr.mxu0 0.0
    %2097 = vmatpush1.msra.mxu0 0.0
    %2098 = vmatprep.subr.mxu0 0.0
    %2099 = vmatpush1.msra.mxu0 0.0
    %2100 = vmatprep.subr.mxu0 0.0
    %2101 = vmatpush1.msra.mxu0 0.0
    %2102 = vmatprep.subr.mxu0 0.0
    %2103 = vmatpush1.msra.mxu0 0.0
    %2104 = vmatprep.subr.mxu0 0.0
    %2105 = vmatpush1.msra.mxu0 0.0
    %2106 = vmatprep.subr.mxu0 0.0
    %2107 = vmatpush1.msra.mxu0 0.0
    %2108 = vmatprep.subr.mxu0 0.0
    %2109 = vmatpush1.msra.mxu0 0.0
    %2110 = vmatprep.mubr.f32.mxu0 0.0
    %2111 = vmatmul.mubr.f32.gmra.mrb[0].mxu0 %v1836
    %v2112 = vpop.f32.mrb[0].mxu0
    %v2113 = vadd.f32 0.0, %v2112
    %v2114 = vpop.f32.mrb[0].mxu0
    %2115 = vdwg.mxu0
    %v2116 = vadd.f32 %v1924, %v2042
    %v2117 = vxor.u32 %v2116, 2147483648
    %v2118 = vmul.f32 %v2117, 1.442695
    %v2119 = vpow.pop %v2118
    %v2120 = vadd.f32 %v2119, 1.0
    %v2121 = vrcp.pop %v2120
    %v2122 = vmul.f32 1.0, %v2121
    %v2123 = vadd.f32 %v1925, %v2044
    %v2124 = vxor.u32 %v2123, 2147483648
    %v2125 = vmul.f32 %v2124, 1.442695
    %v2126 = vpow.pop %v2125
    %v2127 = vadd.f32 %v2126, 1.0
    %v2128 = vrcp.pop %v2127
    %v2129 = vmul.f32 1.0, %v2128
    %v2130 = vadd.f32 %v2113, %v409
    %v2131 = vmul.f32 %v2122, %v2130
    %v2132 = vadd.f32 %v1926, %v2131
    %v2133 = vtanh.pop %v2132
    %v2134 = vsub.f32 1.0, %v2129
    %v2135 = vmul.f32 %v2134, %v2133
    %v2136 = vmul.f32 %v2129, %v1836
    %v2137 = vadd.f32 %v2135, %v2136
    %v2138 = vld [vmem:[%s5] sm:$0xff]
    %v2139 = vld [vmem:[%s5 + $0x8] sm:$0xff]
    %v2140 = vld [vmem:[%s5 + $0x10] sm:$0xff]
    %v2141 = vld [vmem:[%s5 + $0x18] sm:$0xff]
    %v2142 = vld [vmem:[%s5 + $0x20] sm:$0xff]
    %v2143 = vld [vmem:[%s5 + $0x28] sm:$0xff]
    %v2144 = vld [vmem:[%s5 + $0x30] sm:$0xff]
    %v2145 = vld [vmem:[%s5 + $0x38] sm:$0xff]
    %v2146 = vld [vmem:[%s5 + $0x40] sm:$0xff]
    %v2147 = vld [vmem:[%s5 + $0x48] sm:$0xff]
    %v2148 = vld [vmem:[%s5 + $0x50] sm:$0xff]
    %v2149 = vld [vmem:[%s5 + $0x58] sm:$0xff]
    %v2150 = vld [vmem:[%s5 + $0x60] sm:$0xff]
    %v2151 = vld [vmem:[%s5 + $0x68] sm:$0xff]
    %v2152 = vld [vmem:[%s5 + $0x70] sm:$0xff]
    %v2153 = vld [vmem:[%s5 + $0x78] sm:$0xff]
    %2154 = vmatprep.subr.mxu0 0.0
    %2155 = vmatpush1.msra.mxu0 %v2138
    %2156 = vmatprep.subr.mxu0 0.0
    %2157 = vmatpush1.msra.mxu0 %v2139
    %2158 = vmatprep.subr.mxu0 0.0
    %2159 = vmatpush1.msra.mxu0 %v2140
    %2160 = vmatprep.subr.mxu0 0.0
    %2161 = vmatpush1.msra.mxu0 %v2141
    %2162 = vmatprep.subr.mxu0 0.0
    %2163 = vmatpush1.msra.mxu0 %v2142
    %2164 = vmatprep.subr.mxu0 0.0
    %2165 = vmatpush1.msra.mxu0 %v2143
    %2166 = vmatprep.subr.mxu0 0.0
    %2167 = vmatpush1.msra.mxu0 %v2144
    %2168 = vmatprep.subr.mxu0 0.0
    %2169 = vmatpush1.msra.mxu0 %v2145
    %2170 = vmatprep.subr.mxu0 0.0
    %2171 = vmatpush1.msra.mxu0 %v2146
    %2172 = vmatprep.subr.mxu0 0.0
    %2173 = vmatpush1.msra.mxu0 %v2147
    %2174 = vmatprep.subr.mxu0 0.0
    %2175 = vmatpush1.msra.mxu0 %v2148
    %2176 = vmatprep.subr.mxu0 0.0
    %2177 = vmatpush1.msra.mxu0 %v2149
    %2178 = vmatprep.subr.mxu0 0.0
    %2179 = vmatpush1.msra.mxu0 %v2150
    %2180 = vmatprep.subr.mxu0 0.0
    %2181 = vmatpush1.msra.mxu0 %v2151
    %2182 = vmatprep.subr.mxu0 0.0
    %2183 = vmatpush1.msra.mxu0 %v2152
    %2184 = vmatprep.subr.mxu0 0.0
    %2185 = vmatpush1.msra.mxu0 %v2153
    %2186 = vmatprep.subr.mxu0 0.0
    %2187 = vmatpush1.msra.mxu0 0.0
    %2188 = vmatprep.subr.mxu0 0.0
    %2189 = vmatpush1.msra.mxu0 0.0
    %2190 = vmatprep.subr.mxu0 0.0
    %2191 = vmatpush1.msra.mxu0 0.0
    %2192 = vmatprep.subr.mxu0 0.0
    %2193 = vmatpush1.msra.mxu0 0.0
    %2194 = vmatprep.subr.mxu0 0.0
    %2195 = vmatpush1.msra.mxu0 0.0
    %2196 = vmatprep.subr.mxu0 0.0
    %2197 = vmatpush1.msra.mxu0 0.0
    %2198 = vmatprep.subr.mxu0 0.0
    %2199 = vmatpush1.msra.mxu0 0.0
    %2200 = vmatprep.subr.mxu0 0.0
    %2201 = vmatpush1.msra.mxu0 0.0
    %2202 = vmatprep.subr.mxu0 0.0
    %2203 = vmatpush1.msra.mxu0 0.0
    %2204 = vmatprep.subr.mxu0 0.0
    %2205 = vmatpush1.msra.mxu0 0.0
    %2206 = vmatprep.subr.mxu0 0.0
    %2207 = vmatpush1.msra.mxu0 0.0
    %2208 = vmatprep.subr.mxu0 0.0
    %2209 = vmatpush1.msra.mxu0 0.0
    %2210 = vmatprep.subr.mxu0 0.0
    %2211 = vmatpush1.msra.mxu0 0.0
    %2212 = vmatprep.subr.mxu0 0.0
    %2213 = vmatpush1.msra.mxu0 0.0
    %2214 = vmatprep.subr.mxu0 0.0
    %2215 = vmatpush1.msra.mxu0 0.0
    %2216 = vmatprep.subr.mxu0 0.0
    %2217 = vmatpush1.msra.mxu0 0.0
    %2218 = vmatprep.mubr.f32.mxu0 0.0
    %2219 = vmatmul.mubr.f32.gmra.mrb[0].mxu0 %v2137
    %v2220 = vpop.f32.mrb[0].mxu0
    %v2221 = vadd.f32 %v416, %v2220
    %v2222 = vpop.f32.mrb[0].mxu0
    %2223 = vdwg.mxu0
    %2224 = vst [vmem:[%s7 + $0x28] sm:$0xff] %v2221
    %v2225 = vld [vmem:[#allocation2 + $0x90] sm:$0xff]
    %v2226 = vld [vmem:[#allocation2 + $0x98] sm:$0xff]
    %v2227 = vld [vmem:[#allocation2 + $0xa0] sm:$0xff]
    %v2228 = vld [vmem:[#allocation5] sm:$0xff]
    %v2229 = vld [vmem:[#allocation5 + $0x8] sm:$0xff]
    %v2230 = vld [vmem:[#allocation5 + $0x10] sm:$0xff]
    %v2231 = vld [vmem:[#allocation5 + $0x18] sm:$0xff]
    %v2232 = vld [vmem:[#allocation5 + $0x20] sm:$0xff]
    %v2233 = vld [vmem:[#allocation5 + $0x28] sm:$0xff]
    %v2234 = vld [vmem:[#allocation5 + $0x30] sm:$0xff]
    %v2235 = vld [vmem:[#allocation5 + $0x38] sm:$0xff]
    %v2236 = vld [vmem:[#allocation5 + $0x40] sm:$0xff]
    %v2237 = vld [vmem:[#allocation5 + $0x48] sm:$0xff]
    %v2238 = vld [vmem:[#allocation5 + $0x50] sm:$0xff]
    %v2239 = vld [vmem:[#allocation5 + $0x58] sm:$0xff]
    %v2240 = vld [vmem:[#allocation5 + $0x60] sm:$0xff]
    %v2241 = vld [vmem:[#allocation5 + $0x68] sm:$0xff]
    %v2242 = vld [vmem:[#allocation5 + $0x70] sm:$0xff]
    %v2243 = vld [vmem:[#allocation5 + $0x78] sm:$0xff]
    %v2244 = vld [vmem:[#allocation5 + $0x80] sm:$0xff]
    %v2245 = vld [vmem:[#allocation5 + $0x88] sm:$0xff]
    %v2246 = vld [vmem:[#allocation5 + $0x90] sm:$0xff]
    %v2247 = vld [vmem:[#allocation5 + $0x98] sm:$0xff]
    %v2248 = vld [vmem:[#allocation5 + $0xa0] sm:$0xff]
    %v2249 = vld [vmem:[#allocation5 + $0xa8] sm:$0xff]
    %v2250 = vld [vmem:[#allocation5 + $0xb0] sm:$0xff]
    %v2251 = vld [vmem:[#allocation5 + $0xb8] sm:$0xff]
    %v2252 = vld [vmem:[#allocation5 + $0xc0] sm:$0xff]
    %v2253 = vld [vmem:[#allocation5 + $0xc8] sm:$0xff]
    %v2254 = vld [vmem:[#allocation5 + $0xd0] sm:$0xff]
    %v2255 = vld [vmem:[#allocation5 + $0xd8] sm:$0xff]
    %v2256 = vld [vmem:[#allocation5 + $0xe0] sm:$0xff]
    %v2257 = vld [vmem:[#allocation5 + $0xe8] sm:$0xff]
    %v2258 = vld [vmem:[#allocation5 + $0xf0] sm:$0xff]
    %v2259 = vld [vmem:[#allocation5 + $0xf8] sm:$0xff]
    %v2260 = vld [vmem:[#allocation5 + $0x100] sm:$0xff]
    %v2261 = vld [vmem:[#allocation5 + $0x108] sm:$0xff]
    %v2262 = vld [vmem:[#allocation5 + $0x110] sm:$0xff]
    %v2263 = vld [vmem:[#allocation5 + $0x118] sm:$0xff]
    %v2264 = vld [vmem:[#allocation5 + $0x120] sm:$0xff]
    %v2265 = vld [vmem:[#allocation5 + $0x128] sm:$0xff]
    %v2266 = vld [vmem:[#allocation5 + $0x130] sm:$0xff]
    %v2267 = vld [vmem:[#allocation5 + $0x138] sm:$0xff]
    %v2268 = vld [vmem:[#allocation5 + $0x140] sm:$0xff]
    %v2269 = vld [vmem:[#allocation5 + $0x148] sm:$0xff]
    %v2270 = vld [vmem:[#allocation5 + $0x150] sm:$0xff]
    %v2271 = vld [vmem:[#allocation5 + $0x158] sm:$0xff]
    %v2272 = vld [vmem:[#allocation5 + $0x160] sm:$0xff]
    %v2273 = vld [vmem:[#allocation5 + $0x168] sm:$0xff]
    %v2274 = vld [vmem:[#allocation5 + $0x170] sm:$0xff]
    %v2275 = vld [vmem:[#allocation5 + $0x178] sm:$0xff]
    %2276 = vmatprep.subr.mxu0 %v2229
    %2277 = vmatpush1.msra.mxu0 %v2228
    %2278 = vmatprep.subr.mxu0 %v2232
    %2279 = vmatpush1.msra.mxu0 %v2231
    %2280 = vmatprep.subr.mxu0 %v2235
    %2281 = vmatpush1.msra.mxu0 %v2234
    %2282 = vmatprep.subr.mxu0 %v2238
    %2283 = vmatpush1.msra.mxu0 %v2237
    %2284 = vmatprep.subr.mxu0 %v2241
    %2285 = vmatpush1.msra.mxu0 %v2240
    %2286 = vmatprep.subr.mxu0 %v2244
    %2287 = vmatpush1.msra.mxu0 %v2243
    %2288 = vmatprep.subr.mxu0 %v2247
    %2289 = vmatpush1.msra.mxu0 %v2246
    %2290 = vmatprep.subr.mxu0 %v2250
    %2291 = vmatpush1.msra.mxu0 %v2249
    %2292 = vmatprep.subr.mxu0 %v2253
    %2293 = vmatpush1.msra.mxu0 %v2252
    %2294 = vmatprep.subr.mxu0 %v2256
    %2295 = vmatpush1.msra.mxu0 %v2255
    %2296 = vmatprep.subr.mxu0 %v2259
    %2297 = vmatpush1.msra.mxu0 %v2258
    %2298 = vmatprep.subr.mxu0 %v2262
    %2299 = vmatpush1.msra.mxu0 %v2261
    %2300 = vmatprep.subr.mxu0 %v2265
    %2301 = vmatpush1.msra.mxu0 %v2264
    %2302 = vmatprep.subr.mxu0 %v2268
    %2303 = vmatpush1.msra.mxu0 %v2267
    %2304 = vmatprep.subr.mxu0 %v2271
    %2305 = vmatpush1.msra.mxu0 %v2270
    %2306 = vmatprep.subr.mxu0 %v2274
    %2307 = vmatpush1.msra.mxu0 %v2273
    %2308 = vmatprep.subr.mxu0 0.0
    %2309 = vmatpush1.msra.mxu0 0.0
    %2310 = vmatprep.subr.mxu0 0.0
    %2311 = vmatpush1.msra.mxu0 0.0
    %2312 = vmatprep.subr.mxu0 0.0
    %2313 = vmatpush1.msra.mxu0 0.0
    %2314 = vmatprep.subr.mxu0 0.0
    %2315 = vmatpush1.msra.mxu0 0.0
    %2316 = vmatprep.subr.mxu0 0.0
    %2317 = vmatpush1.msra.mxu0 0.0
    %2318 = vmatprep.subr.mxu0 0.0
    %2319 = vmatpush1.msra.mxu0 0.0
    %2320 = vmatprep.subr.mxu0 0.0
    %2321 = vmatpush1.msra.mxu0 0.0
    %2322 = vmatprep.subr.mxu0 0.0
    %2323 = vmatpush1.msra.mxu0 0.0
    %2324 = vmatprep.subr.mxu0 0.0
    %2325 = vmatpush1.msra.mxu0 0.0
    %2326 = vmatprep.subr.mxu0 0.0
    %2327 = vmatpush1.msra.mxu0 0.0
    %2328 = vmatprep.subr.mxu0 0.0
    %2329 = vmatpush1.msra.mxu0 0.0
    %2330 = vmatprep.subr.mxu0 0.0
    %2331 = vmatpush1.msra.mxu0 0.0
    %2332 = vmatprep.subr.mxu0 0.0
    %2333 = vmatpush1.msra.mxu0 0.0
    %2334 = vmatprep.subr.mxu0 0.0
    %2335 = vmatpush1.msra.mxu0 0.0
    %2336 = vmatprep.subr.mxu0 0.0
    %2337 = vmatpush1.msra.mxu0 0.0
    %2338 = vmatprep.subr.mxu0 0.0
    %2339 = vmatpush1.msra.mxu0 0.0
    %2340 = vmatprep.mubr.f32.mxu0 0.0
    %2341 = vmatmul.mubr.f32.gmra.mrb[0].mxu0 %v2137
    %v2342 = vpop.f32.mrb[0].mxu0
    %v2343 = vadd.f32 0.0, %v2342
    %v2344 = vpop.f32.mrb[0].mxu0
    %v2345 = vadd.f32 0.0, %v2344
    %2346 = vdwg.mxu0
    %2347 = vmatprep.subr.mxu0 0.0
    %2348 = vmatpush1.msra.mxu0 %v2230
    %2349 = vmatprep.subr.mxu0 0.0
    %2350 = vmatpush1.msra.mxu0 %v2233
    %2351 = vmatprep.subr.mxu0 0.0
    %2352 = vmatpush1.msra.mxu0 %v2236
    %2353 = vmatprep.subr.mxu0 0.0
    %2354 = vmatpush1.msra.mxu0 %v2239
    %2355 = vmatprep.subr.mxu0 0.0
    %2356 = vmatpush1.msra.mxu0 %v2242
    %2357 = vmatprep.subr.mxu0 0.0
    %2358 = vmatpush1.msra.mxu0 %v2245
    %2359 = vmatprep.subr.mxu0 0.0
    %2360 = vmatpush1.msra.mxu0 %v2248
    %2361 = vmatprep.subr.mxu0 0.0
    %2362 = vmatpush1.msra.mxu0 %v2251
    %2363 = vmatprep.subr.mxu0 0.0
    %2364 = vmatpush1.msra.mxu0 %v2254
    %2365 = vmatprep.subr.mxu0 0.0
    %2366 = vmatpush1.msra.mxu0 %v2257
    %2367 = vmatprep.subr.mxu0 0.0
    %2368 = vmatpush1.msra.mxu0 %v2260
    %2369 = vmatprep.subr.mxu0 0.0
    %2370 = vmatpush1.msra.mxu0 %v2263
    %2371 = vmatprep.subr.mxu0 0.0
    %2372 = vmatpush1.msra.mxu0 %v2266
    %2373 = vmatprep.subr.mxu0 0.0
    %2374 = vmatpush1.msra.mxu0 %v2269
    %2375 = vmatprep.subr.mxu0 0.0
    %2376 = vmatpush1.msra.mxu0 %v2272
    %2377 = vmatprep.subr.mxu0 0.0
    %2378 = vmatpush1.msra.mxu0 %v2275
    %2379 = vmatprep.subr.mxu0 0.0
    %2380 = vmatpush1.msra.mxu0 0.0
    %2381 = vmatprep.subr.mxu0 0.0
    %2382 = vmatpush1.msra.mxu0 0.0
    %2383 = vmatprep.subr.mxu0 0.0
    %2384 = vmatpush1.msra.mxu0 0.0
    %2385 = vmatprep.subr.mxu0 0.0
    %2386 = vmatpush1.msra.mxu0 0.0
    %2387 = vmatprep.subr.mxu0 0.0
    %2388 = vmatpush1.msra.mxu0 0.0
    %2389 = vmatprep.subr.mxu0 0.0
    %2390 = vmatpush1.msra.mxu0 0.0
    %2391 = vmatprep.subr.mxu0 0.0
    %2392 = vmatpush1.msra.mxu0 0.0
    %2393 = vmatprep.subr.mxu0 0.0
    %2394 = vmatpush1.msra.mxu0 0.0
    %2395 = vmatprep.subr.mxu0 0.0
    %2396 = vmatpush1.msra.mxu0 0.0
    %2397 = vmatprep.subr.mxu0 0.0
    %2398 = vmatpush1.msra.mxu0 0.0
    %2399 = vmatprep.subr.mxu0 0.0
    %2400 = vmatpush1.msra.mxu0 0.0
    %2401 = vmatprep.subr.mxu0 0.0
    %2402 = vmatpush1.msra.mxu0 0.0
    %2403 = vmatprep.subr.mxu0 0.0
    %2404 = vmatpush1.msra.mxu0 0.0
    %2405 = vmatprep.subr.mxu0 0.0
    %2406 = vmatpush1.msra.mxu0 0.0
    %2407 = vmatprep.subr.mxu0 0.0
    %2408 = vmatpush1.msra.mxu0 0.0
    %2409 = vmatprep.subr.mxu0 0.0
    %2410 = vmatpush1.msra.mxu0 0.0
    %2411 = vmatprep.mubr.f32.mxu0 0.0
    %2412 = vmatmul.mubr.f32.gmra.mrb[0].mxu0 %v2137
    %v2413 = vpop.f32.mrb[0].mxu0
    %v2414 = vadd.f32 0.0, %v2413
    %v2415 = vpop.f32.mrb[0].mxu0
    %2416 = vdwg.mxu0
    %v2417 = vadd.f32 %v2225, %v2343
    %v2418 = vxor.u32 %v2417, 2147483648
    %v2419 = vmul.f32 %v2418, 1.442695
    %v2420 = vpow.pop %v2419
    %v2421 = vadd.f32 %v2420, 1.0
    %v2422 = vrcp.pop %v2421
    %v2423 = vmul.f32 1.0, %v2422
    %v2424 = vadd.f32 %v2226, %v2345
    %v2425 = vxor.u32 %v2424, 2147483648
    %v2426 = vmul.f32 %v2425, 1.442695
    %v2427 = vpow.pop %v2426
    %v2428 = vadd.f32 %v2427, 1.0
    %v2429 = vrcp.pop %v2428
    %v2430 = vmul.f32 1.0, %v2429
    %v2431 = vadd.f32 %v2414, %v409
    %v2432 = vmul.f32 %v2423, %v2431
    %v2433 = vadd.f32 %v2227, %v2432
    %v2434 = vtanh.pop %v2433
    %v2435 = vsub.f32 1.0, %v2430
    %v2436 = vmul.f32 %v2435, %v2434
    %v2437 = vmul.f32 %v2430, %v2137
    %v2438 = vadd.f32 %v2436, %v2437
    %v2439 = vld [vmem:[%s5] sm:$0xff]
    %v2440 = vld [vmem:[%s5 + $0x8] sm:$0xff]
    %v2441 = vld [vmem:[%s5 + $0x10] sm:$0xff]
    %v2442 = vld [vmem:[%s5 + $0x18] sm:$0xff]
    %v2443 = vld [vmem:[%s5 + $0x20] sm:$0xff]
    %v2444 = vld [vmem:[%s5 + $0x28] sm:$0xff]
    %v2445 = vld [vmem:[%s5 + $0x30] sm:$0xff]
    %v2446 = vld [vmem:[%s5 + $0x38] sm:$0xff]
    %v2447 = vld [vmem:[%s5 + $0x40] sm:$0xff]
    %v2448 = vld [vmem:[%s5 + $0x48] sm:$0xff]
    %v2449 = vld [vmem:[%s5 + $0x50] sm:$0xff]
    %v2450 = vld [vmem:[%s5 + $0x58] sm:$0xff]
    %v2451 = vld [vmem:[%s5 + $0x60] sm:$0xff]
    %v2452 = vld [vmem:[%s5 + $0x68] sm:$0xff]
    %v2453 = vld [vmem:[%s5 + $0x70] sm:$0xff]
    %v2454 = vld [vmem:[%s5 + $0x78] sm:$0xff]
    %2455 = vmatprep.subr.mxu0 0.0
    %2456 = vmatpush1.msra.mxu0 %v2439
    %2457 = vmatprep.subr.mxu0 0.0
    %2458 = vmatpush1.msra.mxu0 %v2440
    %2459 = vmatprep.subr.mxu0 0.0
    %2460 = vmatpush1.msra.mxu0 %v2441
    %2461 = vmatprep.subr.mxu0 0.0
    %2462 = vmatpush1.msra.mxu0 %v2442
    %2463 = vmatprep.subr.mxu0 0.0
    %2464 = vmatpush1.msra.mxu0 %v2443
    %2465 = vmatprep.subr.mxu0 0.0
    %2466 = vmatpush1.msra.mxu0 %v2444
    %2467 = vmatprep.subr.mxu0 0.0
    %2468 = vmatpush1.msra.mxu0 %v2445
    %2469 = vmatprep.subr.mxu0 0.0
    %2470 = vmatpush1.msra.mxu0 %v2446
    %2471 = vmatprep.subr.mxu0 0.0
    %2472 = vmatpush1.msra.mxu0 %v2447
    %2473 = vmatprep.subr.mxu0 0.0
    %2474 = vmatpush1.msra.mxu0 %v2448
    %2475 = vmatprep.subr.mxu0 0.0
    %2476 = vmatpush1.msra.mxu0 %v2449
    %2477 = vmatprep.subr.mxu0 0.0
    %2478 = vmatpush1.msra.mxu0 %v2450
    %2479 = vmatprep.subr.mxu0 0.0
    %2480 = vmatpush1.msra.mxu0 %v2451
    %2481 = vmatprep.subr.mxu0 0.0
    %2482 = vmatpush1.msra.mxu0 %v2452
    %2483 = vmatprep.subr.mxu0 0.0
    %2484 = vmatpush1.msra.mxu0 %v2453
    %2485 = vmatprep.subr.mxu0 0.0
    %2486 = vmatpush1.msra.mxu0 %v2454
    %2487 = vmatprep.subr.mxu0 0.0
    %2488 = vmatpush1.msra.mxu0 0.0
    %2489 = vmatprep.subr.mxu0 0.0
    %2490 = vmatpush1.msra.mxu0 0.0
    %2491 = vmatprep.subr.mxu0 0.0
    %2492 = vmatpush1.msra.mxu0 0.0
    %2493 = vmatprep.subr.mxu0 0.0
    %2494 = vmatpush1.msra.mxu0 0.0
    %2495 = vmatprep.subr.mxu0 0.0
    %2496 = vmatpush1.msra.mxu0 0.0
    %2497 = vmatprep.subr.mxu0 0.0
    %2498 = vmatpush1.msra.mxu0 0.0
    %2499 = vmatprep.subr.mxu0 0.0
    %2500 = vmatpush1.msra.mxu0 0.0
    %2501 = vmatprep.subr.mxu0 0.0
    %2502 = vmatpush1.msra.mxu0 0.0
    %2503 = vmatprep.subr.mxu0 0.0
    %2504 = vmatpush1.msra.mxu0 0.0
    %2505 = vmatprep.subr.mxu0 0.0
    %2506 = vmatpush1.msra.mxu0 0.0
    %2507 = vmatprep.subr.mxu0 0.0
    %2508 = vmatpush1.msra.mxu0 0.0
    %2509 = vmatprep.subr.mxu0 0.0
    %2510 = vmatpush1.msra.mxu0 0.0
    %2511 = vmatprep.subr.mxu0 0.0
    %2512 = vmatpush1.msra.mxu0 0.0
    %2513 = vmatprep.subr.mxu0 0.0
    %2514 = vmatpush1.msra.mxu0 0.0
    %2515 = vmatprep.subr.mxu0 0.0
    %2516 = vmatpush1.msra.mxu0 0.0
    %2517 = vmatprep.subr.mxu0 0.0
    %2518 = vmatpush1.msra.mxu0 0.0
    %2519 = vmatprep.mubr.f32.mxu0 0.0
    %2520 = vmatmul.mubr.f32.gmra.mrb[0].mxu0 %v2438
    %v2521 = vpop.f32.mrb[0].mxu0
    %v2522 = vadd.f32 %v416, %v2521
    %v2523 = vpop.f32.mrb[0].mxu0
    %2524 = vdwg.mxu0
    %2525 = vst [vmem:[%s7 + $0x30] sm:$0xff] %v2522
    %v2526 = vld [vmem:[#allocation2 + $0xa8] sm:$0xff]
    %v2527 = vld [vmem:[#allocation2 + $0xb0] sm:$0xff]
    %v2528 = vld [vmem:[#allocation2 + $0xb8] sm:$0xff]
    %v2529 = vld [vmem:[#allocation5] sm:$0xff]
    %v2530 = vld [vmem:[#allocation5 + $0x8] sm:$0xff]
    %v2531 = vld [vmem:[#allocation5 + $0x10] sm:$0xff]
    %v2532 = vld [vmem:[#allocation5 + $0x18] sm:$0xff]
    %v2533 = vld [vmem:[#allocation5 + $0x20] sm:$0xff]
    %v2534 = vld [vmem:[#allocation5 + $0x28] sm:$0xff]
    %v2535 = vld [vmem:[#allocation5 + $0x30] sm:$0xff]
    %v2536 = vld [vmem:[#allocation5 + $0x38] sm:$0xff]
    %v2537 = vld [vmem:[#allocation5 + $0x40] sm:$0xff]
    %v2538 = vld [vmem:[#allocation5 + $0x48] sm:$0xff]
    %v2539 = vld [vmem:[#allocation5 + $0x50] sm:$0xff]
    %v2540 = vld [vmem:[#allocation5 + $0x58] sm:$0xff]
    %v2541 = vld [vmem:[#allocation5 + $0x60] sm:$0xff]
    %v2542 = vld [vmem:[#allocation5 + $0x68] sm:$0xff]
    %v2543 = vld [vmem:[#allocation5 + $0x70] sm:$0xff]
    %v2544 = vld [vmem:[#allocation5 + $0x78] sm:$0xff]
    %v2545 = vld [vmem:[#allocation5 + $0x80] sm:$0xff]
    %v2546 = vld [vmem:[#allocation5 + $0x88] sm:$0xff]
    %v2547 = vld [vmem:[#allocation5 + $0x90] sm:$0xff]
    %v2548 = vld [vmem:[#allocation5 + $0x98] sm:$0xff]
    %v2549 = vld [vmem:[#allocation5 + $0xa0] sm:$0xff]
    %v2550 = vld [vmem:[#allocation5 + $0xa8] sm:$0xff]
    %v2551 = vld [vmem:[#allocation5 + $0xb0] sm:$0xff]
    %v2552 = vld [vmem:[#allocation5 + $0xb8] sm:$0xff]
    %v2553 = vld [vmem:[#allocation5 + $0xc0] sm:$0xff]
    %v2554 = vld [vmem:[#allocation5 + $0xc8] sm:$0xff]
    %v2555 = vld [vmem:[#allocation5 + $0xd0] sm:$0xff]
    %v2556 = vld [vmem:[#allocation5 + $0xd8] sm:$0xff]
    %v2557 = vld [vmem:[#allocation5 + $0xe0] sm:$0xff]
    %v2558 = vld [vmem:[#allocation5 + $0xe8] sm:$0xff]
    %v2559 = vld [vmem:[#allocation5 + $0xf0] sm:$0xff]
    %v2560 = vld [vmem:[#allocation5 + $0xf8] sm:$0xff]
    %v2561 = vld [vmem:[#allocation5 + $0x100] sm:$0xff]
    %v2562 = vld [vmem:[#allocation5 + $0x108] sm:$0xff]
    %v2563 = vld [vmem:[#allocation5 + $0x110] sm:$0xff]
    %v2564 = vld [vmem:[#allocation5 + $0x118] sm:$0xff]
    %v2565 = vld [vmem:[#allocation5 + $0x120] sm:$0xff]
    %v2566 = vld [vmem:[#allocation5 + $0x128] sm:$0xff]
    %v2567 = vld [vmem:[#allocation5 + $0x130] sm:$0xff]
    %v2568 = vld [vmem:[#allocation5 + $0x138] sm:$0xff]
    %v2569 = vld [vmem:[#allocation5 + $0x140] sm:$0xff]
    %v2570 = vld [vmem:[#allocation5 + $0x148] sm:$0xff]
    %v2571 = vld [vmem:[#allocation5 + $0x150] sm:$0xff]
    %v2572 = vld [vmem:[#allocation5 + $0x158] sm:$0xff]
    %v2573 = vld [vmem:[#allocation5 + $0x160] sm:$0xff]
    %v2574 = vld [vmem:[#allocation5 + $0x168] sm:$0xff]
    %v2575 = vld [vmem:[#allocation5 + $0x170] sm:$0xff]
    %v2576 = vld [vmem:[#allocation5 + $0x178] sm:$0xff]
    %2577 = vmatprep.subr.mxu0 %v2530
    %2578 = vmatpush1.msra.mxu0 %v2529
    %2579 = vmatprep.subr.mxu0 %v2533
    %2580 = vmatpush1.msra.mxu0 %v2532
    %2581 = vmatprep.subr.mxu0 %v2536
    %2582 = vmatpush1.msra.mxu0 %v2535
    %2583 = vmatprep.subr.mxu0 %v2539
    %2584 = vmatpush1.msra.mxu0 %v2538
    %2585 = vmatprep.subr.mxu0 %v2542
    %2586 = vmatpush1.msra.mxu0 %v2541
    %2587 = vmatprep.subr.mxu0 %v2545
    %2588 = vmatpush1.msra.mxu0 %v2544
    %2589 = vmatprep.subr.mxu0 %v2548
    %2590 = vmatpush1.msra.mxu0 %v2547
    %2591 = vmatprep.subr.mxu0 %v2551
    %2592 = vmatpush1.msra.mxu0 %v2550
    %2593 = vmatprep.subr.mxu0 %v2554
    %2594 = vmatpush1.msra.mxu0 %v2553
    %2595 = vmatprep.subr.mxu0 %v2557
    %2596 = vmatpush1.msra.mxu0 %v2556
    %2597 = vmatprep.subr.mxu0 %v2560
    %2598 = vmatpush1.msra.mxu0 %v2559
    %2599 = vmatprep.subr.mxu0 %v2563
    %2600 = vmatpush1.msra.mxu0 %v2562
    %2601 = vmatprep.subr.mxu0 %v2566
    %2602 = vmatpush1.msra.mxu0 %v2565
    %2603 = vmatprep.subr.mxu0 %v2569
    %2604 = vmatpush1.msra.mxu0 %v2568
    %2605 = vmatprep.subr.mxu0 %v2572
    %2606 = vmatpush1.msra.mxu0 %v2571
    %2607 = vmatprep.subr.mxu0 %v2575
    %2608 = vmatpush1.msra.mxu0 %v2574
    %2609 = vmatprep.subr.mxu0 0.0
    %2610 = vmatpush1.msra.mxu0 0.0
    %2611 = vmatprep.subr.mxu0 0.0
    %2612 = vmatpush1.msra.mxu0 0.0
    %2613 = vmatprep.subr.mxu0 0.0
    %2614 = vmatpush1.msra.mxu0 0.0
    %2615 = vmatprep.subr.mxu0 0.0
    %2616 = vmatpush1.msra.mxu0 0.0
    %2617 = vmatprep.subr.mxu0 0.0
    %2618 = vmatpush1.msra.mxu0 0.0
    %2619 = vmatprep.subr.mxu0 0.0
    %2620 = vmatpush1.msra.mxu0 0.0
    %2621 = vmatprep.subr.mxu0 0.0
    %2622 = vmatpush1.msra.mxu0 0.0
    %2623 = vmatprep.subr.mxu0 0.0
    %2624 = vmatpush1.msra.mxu0 0.0
    %2625 = vmatprep.subr.mxu0 0.0
    %2626 = vmatpush1.msra.mxu0 0.0
    %2627 = vmatprep.subr.mxu0 0.0
    %2628 = vmatpush1.msra.mxu0 0.0
    %2629 = vmatprep.subr.mxu0 0.0
    %2630 = vmatpush1.msra.mxu0 0.0
    %2631 = vmatprep.subr.mxu0 0.0
    %2632 = vmatpush1.msra.mxu0 0.0
    %2633 = vmatprep.subr.mxu0 0.0
    %2634 = vmatpush1.msra.mxu0 0.0
    %2635 = vmatprep.subr.mxu0 0.0
    %2636 = vmatpush1.msra.mxu0 0.0
    %2637 = vmatprep.subr.mxu0 0.0
    %2638 = vmatpush1.msra.mxu0 0.0
    %2639 = vmatprep.subr.mxu0 0.0
    %2640 = vmatpush1.msra.mxu0 0.0
    %2641 = vmatprep.mubr.f32.mxu0 0.0
    %2642 = vmatmul.mubr.f32.gmra.mrb[0].mxu0 %v2438
    %v2643 = vpop.f32.mrb[0].mxu0
    %v2644 = vadd.f32 0.0, %v2643
    %v2645 = vpop.f32.mrb[0].mxu0
    %v2646 = vadd.f32 0.0, %v2645
    %2647 = vdwg.mxu0
    %2648 = vmatprep.subr.mxu0 0.0
    %2649 = vmatpush1.msra.mxu0 %v2531
    %2650 = vmatprep.subr.mxu0 0.0
    %2651 = vmatpush1.msra.mxu0 %v2534
    %2652 = vmatprep.subr.mxu0 0.0
    %2653 = vmatpush1.msra.mxu0 %v2537
    %2654 = vmatprep.subr.mxu0 0.0
    %2655 = vmatpush1.msra.mxu0 %v2540
    %2656 = vmatprep.subr.mxu0 0.0
    %2657 = vmatpush1.msra.mxu0 %v2543
    %2658 = vmatprep.subr.mxu0 0.0
    %2659 = vmatpush1.msra.mxu0 %v2546
    %2660 = vmatprep.subr.mxu0 0.0
    %2661 = vmatpush1.msra.mxu0 %v2549
    %2662 = vmatprep.subr.mxu0 0.0
    %2663 = vmatpush1.msra.mxu0 %v2552
    %2664 = vmatprep.subr.mxu0 0.0
    %2665 = vmatpush1.msra.mxu0 %v2555
    %2666 = vmatprep.subr.mxu0 0.0
    %2667 = vmatpush1.msra.mxu0 %v2558
    %2668 = vmatprep.subr.mxu0 0.0
    %2669 = vmatpush1.msra.mxu0 %v2561
    %2670 = vmatprep.subr.mxu0 0.0
    %2671 = vmatpush1.msra.mxu0 %v2564
    %2672 = vmatprep.subr.mxu0 0.0
    %2673 = vmatpush1.msra.mxu0 %v2567
    %2674 = vmatprep.subr.mxu0 0.0
    %2675 = vmatpush1.msra.mxu0 %v2570
    %2676 = vmatprep.subr.mxu0 0.0
    %2677 = vmatpush1.msra.mxu0 %v2573
    %2678 = vmatprep.subr.mxu0 0.0
    %2679 = vmatpush1.msra.mxu0 %v2576
    %2680 = vmatprep.subr.mxu0 0.0
    %2681 = vmatpush1.msra.mxu0 0.0
    %2682 = vmatprep.subr.mxu0 0.0
    %2683 = vmatpush1.msra.mxu0 0.0
    %2684 = vmatprep.subr.mxu0 0.0
    %2685 = vmatpush1.msra.mxu0 0.0
    %2686 = vmatprep.subr.mxu0 0.0
    %2687 = vmatpush1.msra.mxu0 0.0
    %2688 = vmatprep.subr.mxu0 0.0
    %2689 = vmatpush1.msra.mxu0 0.0
    %2690 = vmatprep.subr.mxu0 0.0
    %2691 = vmatpush1.msra.mxu0 0.0
    %2692 = vmatprep.subr.mxu0 0.0
    %2693 = vmatpush1.msra.mxu0 0.0
    %2694 = vmatprep.subr.mxu0 0.0
    %2695 = vmatpush1.msra.mxu0 0.0
    %2696 = vmatprep.subr.mxu0 0.0
    %2697 = vmatpush1.msra.mxu0 0.0
    %2698 = vmatprep.subr.mxu0 0.0
    %2699 = vmatpush1.msra.mxu0 0.0
    %2700 = vmatprep.subr.mxu0 0.0
    %2701 = vmatpush1.msra.mxu0 0.0
    %2702 = vmatprep.subr.mxu0 0.0
    %2703 = vmatpush1.msra.mxu0 0.0
    %2704 = vmatprep.subr.mxu0 0.0
    %2705 = vmatpush1.msra.mxu0 0.0
    %2706 = vmatprep.subr.mxu0 0.0
    %2707 = vmatpush1.msra.mxu0 0.0
    %2708 = vmatprep.subr.mxu0 0.0
    %2709 = vmatpush1.msra.mxu0 0.0
    %2710 = vmatprep.subr.mxu0 0.0
    %2711 = vmatpush1.msra.mxu0 0.0
    %2712 = vmatprep.mubr.f32.mxu0 0.0
    %2713 = vmatmul.mubr.f32.gmra.mrb[0].mxu0 %v2438
    %v2714 = vpop.f32.mrb[0].mxu0
    %v2715 = vadd.f32 0.0, %v2714
    %v2716 = vpop.f32.mrb[0].mxu0
    %2717 = vdwg.mxu0
    %v2718 = vadd.f32 %v2526, %v2644
    %v2719 = vxor.u32 %v2718, 2147483648
    %v2720 = vmul.f32 %v2719, 1.442695
    %v2721 = vpow.pop %v2720
    %v2722 = vadd.f32 %v2721, 1.0
    %v2723 = vrcp.pop %v2722
    %v2724 = vmul.f32 1.0, %v2723
    %v2725 = vadd.f32 %v2527, %v2646
    %v2726 = vxor.u32 %v2725, 2147483648
    %v2727 = vmul.f32 %v2726, 1.442695
    %v2728 = vpow.pop %v2727
    %v2729 = vadd.f32 %v2728, 1.0
    %v2730 = vrcp.pop %v2729
    %v2731 = vmul.f32 1.0, %v2730
    %v2732 = vadd.f32 %v2715, %v409
    %v2733 = vmul.f32 %v2724, %v2732
    %v2734 = vadd.f32 %v2528, %v2733
    %v2735 = vtanh.pop %v2734
    %v2736 = vsub.f32 1.0, %v2731
    %v2737 = vmul.f32 %v2736, %v2735
    %v2738 = vmul.f32 %v2731, %v2438
    %v2739 = vadd.f32 %v2737, %v2738
    %v2740 = vld [vmem:[%s5] sm:$0xff]
    %v2741 = vld [vmem:[%s5 + $0x8] sm:$0xff]
    %v2742 = vld [vmem:[%s5 + $0x10] sm:$0xff]
    %v2743 = vld [vmem:[%s5 + $0x18] sm:$0xff]
    %v2744 = vld [vmem:[%s5 + $0x20] sm:$0xff]
    %v2745 = vld [vmem:[%s5 + $0x28] sm:$0xff]
    %v2746 = vld [vmem:[%s5 + $0x30] sm:$0xff]
    %v2747 = vld [vmem:[%s5 + $0x38] sm:$0xff]
    %v2748 = vld [vmem:[%s5 + $0x40] sm:$0xff]
    %v2749 = vld [vmem:[%s5 + $0x48] sm:$0xff]
    %v2750 = vld [vmem:[%s5 + $0x50] sm:$0xff]
    %v2751 = vld [vmem:[%s5 + $0x58] sm:$0xff]
    %v2752 = vld [vmem:[%s5 + $0x60] sm:$0xff]
    %v2753 = vld [vmem:[%s5 + $0x68] sm:$0xff]
    %v2754 = vld [vmem:[%s5 + $0x70] sm:$0xff]
    %v2755 = vld [vmem:[%s5 + $0x78] sm:$0xff]
    %2756 = vmatprep.subr.mxu0 0.0
    %2757 = vmatpush1.msra.mxu0 %v2740
    %2758 = vmatprep.subr.mxu0 0.0
    %2759 = vmatpush1.msra.mxu0 %v2741
    %2760 = vmatprep.subr.mxu0 0.0
    %2761 = vmatpush1.msra.mxu0 %v2742
    %2762 = vmatprep.subr.mxu0 0.0
    %2763 = vmatpush1.msra.mxu0 %v2743
    %2764 = vmatprep.subr.mxu0 0.0
    %2765 = vmatpush1.msra.mxu0 %v2744
    %2766 = vmatprep.subr.mxu0 0.0
    %2767 = vmatpush1.msra.mxu0 %v2745
    %2768 = vmatprep.subr.mxu0 0.0
    %2769 = vmatpush1.msra.mxu0 %v2746
    %2770 = vmatprep.subr.mxu0 0.0
    %2771 = vmatpush1.msra.mxu0 %v2747
    %2772 = vmatprep.subr.mxu0 0.0
    %2773 = vmatpush1.msra.mxu0 %v2748
    %2774 = vmatprep.subr.mxu0 0.0
    %2775 = vmatpush1.msra.mxu0 %v2749
    %2776 = vmatprep.subr.mxu0 0.0
    %2777 = vmatpush1.msra.mxu0 %v2750
    %2778 = vmatprep.subr.mxu0 0.0
    %2779 = vmatpush1.msra.mxu0 %v2751
    %2780 = vmatprep.subr.mxu0 0.0
    %2781 = vmatpush1.msra.mxu0 %v2752
    %2782 = vmatprep.subr.mxu0 0.0
    %2783 = vmatpush1.msra.mxu0 %v2753
    %2784 = vmatprep.subr.mxu0 0.0
    %2785 = vmatpush1.msra.mxu0 %v2754
    %2786 = vmatprep.subr.mxu0 0.0
    %2787 = vmatpush1.msra.mxu0 %v2755
    %2788 = vmatprep.subr.mxu0 0.0
    %2789 = vmatpush1.msra.mxu0 0.0
    %2790 = vmatprep.subr.mxu0 0.0
    %2791 = vmatpush1.msra.mxu0 0.0
    %2792 = vmatprep.subr.mxu0 0.0
    %2793 = vmatpush1.msra.mxu0 0.0
    %2794 = vmatprep.subr.mxu0 0.0
    %2795 = vmatpush1.msra.mxu0 0.0
    %2796 = vmatprep.subr.mxu0 0.0
    %2797 = vmatpush1.msra.mxu0 0.0
    %2798 = vmatprep.subr.mxu0 0.0
    %2799 = vmatpush1.msra.mxu0 0.0
    %2800 = vmatprep.subr.mxu0 0.0
    %2801 = vmatpush1.msra.mxu0 0.0
    %2802 = vmatprep.subr.mxu0 0.0
    %2803 = vmatpush1.msra.mxu0 0.0
    %2804 = vmatprep.subr.mxu0 0.0
    %2805 = vmatpush1.msra.mxu0 0.0
    %2806 = vmatprep.subr.mxu0 0.0
    %2807 = vmatpush1.msra.mxu0 0.0
    %2808 = vmatprep.subr.mxu0 0.0
    %2809 = vmatpush1.msra.mxu0 0.0
    %2810 = vmatprep.subr.mxu0 0.0
    %2811 = vmatpush1.msra.mxu0 0.0
    %2812 = vmatprep.subr.mxu0 0.0
    %2813 = vmatpush1.msra.mxu0 0.0
    %2814 = vmatprep.subr.mxu0 0.0
    %2815 = vmatpush1.msra.mxu0 0.0
    %2816 = vmatprep.subr.mxu0 0.0
    %2817 = vmatpush1.msra.mxu0 0.0
    %2818 = vmatprep.subr.mxu0 0.0
    %2819 = vmatpush1.msra.mxu0 0.0
    %2820 = vmatprep.mubr.f32.mxu0 0.0
    %2821 = vmatmul.mubr.f32.gmra.mrb[0].mxu0 %v2739
    %v2822 = vpop.f32.mrb[0].mxu0
    %v2823 = vadd.f32 %v416, %v2822
    %v2824 = vpop.f32.mrb[0].mxu0
    %2825 = vdwg.mxu0
    %2826 = vst [vmem:[%s7 + $0x38] sm:$0xff] %v2823
    %2827 = vst [vmem:[%s8] sm:$0xff] %v2739
    // Predicated region
    $region38: #{rnn_lm_forward.1} parent=1 // pred_check
      _
    $region39: #{rnn_lm_forward.1} parent=1 // pred_check_branch
      %2829 = sbr.rel (0) target = $region41
    $region40: #{rnn_lm_forward.1} parent=1 // pred_region
      _
    $region41: #{rnn_lm_forward.1} parent=1 // pred_fallthru
      _
    // Predicated region
    $region42: #{rnn_lm_forward.1} parent=1 // pred_check
      _
    $region43: #{rnn_lm_forward.1} parent=1 // pred_check_branch
      %2831 = sbr.rel (0) target = $region45
    $region44: #{rnn_lm_forward.1} parent=1 // pred_region
      _
    $region45: #{rnn_lm_forward.1} parent=1 // pred_fallthru
      _
    // Predicated region
    $region46: #{rnn_lm_forward.1} parent=1 // pred_check
      _
    $region47: #{rnn_lm_forward.1} parent=1 // pred_check_branch
      %2833 = sbr.rel (0) target = $region49
    $region48: #{rnn_lm_forward.1} parent=1 // pred_region
      _
    $region49: #{rnn_lm_forward.1} parent=1 // pred_fallthru
      _
    // Predicated region
    $region50: #{rnn_lm_forward.1} parent=1 // pred_check
      _
    $region51: #{rnn_lm_forward.1} parent=1 // pred_check_branch
      %2835 = sbr.rel (0) target = $region53
    $region52: #{rnn_lm_forward.1} parent=1 // pred_region
      _
    $region53: #{rnn_lm_forward.1} parent=1 // pred_fallthru
      _
    %2836 = vsyncpa [#allocation4], 1
    %2837 = vsyncpa [#allocation6], 1

</llo_original>
